<compile_context>
chip_gen: v5e
topology: v5e:2x2
jax: 0.10.0
libtpu: 0.0.40
codegen_flags: <defaults>
</compile_context>

<pallas_src>
import functools
import math

import jax
import jax.numpy as jnp
from jax.experimental import pallas as pl
from jax.experimental.pallas import tpu as pltpu

F32 = jnp.float32
_VMEM_LIMIT = 32 * 1024 * 1024


# ----------------------------------------------------------------------------
# BlockSpec helpers
# ----------------------------------------------------------------------------

def _spec_batched(shape):
    rest = len(shape) - 1
    return pl.BlockSpec((1,) + tuple(shape[1:]),
                        lambda b, _r=rest: (b,) + (0,) * _r)


def _spec_full(shape):
    nd = len(shape)
    return pl.BlockSpec(tuple(shape), lambda b, _n=nd: (0,) * _n)


# ----------------------------------------------------------------------------
# In-kernel helpers (value-level, traced inside the Pallas kernels)
# ----------------------------------------------------------------------------

def _layer_norm(x, g, b, eps=1e-5):
    mu = jnp.mean(x, axis=-1, keepdims=True)
    xc = x - mu
    var = jnp.mean(xc * xc, axis=-1, keepdims=True)
    return xc * jax.lax.rsqrt(var + eps) * g + b


def _same_conv(pad_ref, x, w_ref, b, *, ksize, pad, T):
    """'same'-padded conv (dilation 1) via a pre-zeroed VMEM pad scratch.

    pad_ref rows outside [pad, pad+T) are assumed ALREADY zero (zeroed once
    per kernel invocation); the window is fully overwritten here, so no
    re-zeroing stores are needed.  Returns (T, Cout) f32."""
    pad_ref[pl.ds(pad, T), :] = x
    cout = w_ref.shape[-1]
    acc = jnp.zeros((T, cout), F32) + b
    for k in range(ksize):
        acc = acc + jnp.dot(pad_ref[pl.ds(k, T), :], w_ref[k],
                            preferred_element_type=F32)
    return acc


# ----------------------------------------------------------------------------
# Kernel 1: pre 1x1 conv + transformer encoder (attention + FFN + LayerNorms)
# ----------------------------------------------------------------------------

def _encoder_kernel(x0_ref, mcol_ref, mrow_ref,
                    prew_ref, preb_ref,
                    qkvw_ref, qkvb_ref,
                    relkt_ref, relv_ref, ow_ref, ob_ref,
                    ln1g_ref, ln1b_ref,
                    f1w_ref, f1b_ref, f2w_ref, f2b_ref,
                    ln2g_ref, ln2b_ref,
                    h_ref, pad_ref,
                    *, n_heads, window, ksize, T, C):
    d = C // n_heads
    nb = 2 * window + 1
    scale = 1.0 / math.sqrt(d)

    x0 = x0_ref[0]                        # (T, half)
    mcol = mcol_ref[0]                    # (T, 1)
    mrow = mrow_ref[0]                    # (1, T)

    # Zero the FFN conv pad scratch once; the write window is always fully
    # overwritten so halo rows remain zero across both FFN convs.
    pad_ref[...] = jnp.zeros_like(pad_ref)

    # ---- pre 1x1 conv ----
    h = (jnp.dot(x0, prew_ref[...], preferred_element_type=F32)
         + preb_ref[...]) * mcol
    xe = h * mcol                         # encoder input (x * x_mask)

    # ---- multi-head self-attention with windowed relative-position bias ----
    am = mcol * mrow                      # (T, T) attention mask (0/1)
    row = jax.lax.broadcasted_iota(jnp.int32, (T, T), 0)
    col = jax.lax.broadcasted_iota(jnp.int32, (T, T), 1)
    rel = col - row                       # j - i
    # 9 band masks hoisted once; reused across heads and for both the
    # rel-key bias add and the rel-value band extraction.
    band = [rel == (idx - window) for idx in range(nb)]

    # fused QKV projection: one lane-dense (T,C)@(C,3C) matmul
    qkv = jnp.dot(xe, qkvw_ref[...], preferred_element_type=F32) + qkvb_ref[...]

    outs = []
    for hd in range(n_heads):
        q_h = qkv[:, hd * d:(hd + 1) * d] * scale
        k_h = qkv[:, C + hd * d:C + (hd + 1) * d]
        v_h = qkv[:, 2 * C + hd * d:2 * C + (hd + 1) * d]

        scores = jnp.dot(q_h, k_h.T, preferred_element_type=F32)

        # banded relative-key bias: only 2*window+1 distinct diagonals
        rel_logits = jnp.dot(q_h, relkt_ref[...],
                             preferred_element_type=F32)          # (T, nb)
        for idx in range(nb):
            scores = scores + jnp.where(band[idx],
                                        rel_logits[:, idx:idx + 1], 0.0)

        scores = jnp.where(am > 0.0, scores, -1e4)                 # masked_fill
        scores = scores - jnp.max(scores, axis=-1, keepdims=True)
        e = jnp.exp(scores)
        p = e / jnp.sum(e, axis=-1, keepdims=True)                 # softmax

        out_h = jnp.dot(p, v_h, preferred_element_type=F32)
        # banded relative-value contribution: extract the 9 band columns of
        # p once, then a single (T,9)@(9,d) matmul (p_attn never leaves VMEM)
        p_band = jnp.concatenate(
            [jnp.sum(jnp.where(band[idx], p, 0.0), axis=1, keepdims=True)
             for idx in range(nb)], axis=1)                         # (T, nb)
        out_h = out_h + jnp.dot(p_band, relv_ref[...],
                                preferred_element_type=F32)
        outs.append(out_h)

    # fused output projection: one (T,C)@(C,C) matmul (head-major channels)
    y = (jnp.dot(jnp.concatenate(outs, axis=1), ow_ref[...],
                 preferred_element_type=F32) + ob_ref[...])
    x1 = _layer_norm(xe + y, ln1g_ref[...], ln1b_ref[...])

    # ---- FFN: two 'same' convs with ReLU, then residual + LayerNorm ----
    pad = (ksize - 1) // 2
    t = _same_conv(pad_ref, x1 * mcol, f1w_ref, f1b_ref[...],
                   ksize=ksize, pad=pad, T=T)
    t = jnp.maximum(t, 0.0)
    t = _same_conv(pad_ref, t * mcol, f2w_ref, f2b_ref[...],
                   ksize=ksize, pad=pad, T=T)
    t = t * mcol
    x2 = _layer_norm(x1 + t, ln2g_ref[...], ln2b_ref[...])

    h_ref[0] = h + x2 * mcol              # h + pre_transformer(h*mask, mask)


def encoder_fused(p, x0, mcol, mrow, *, n_heads, window_size, kernel_size):
    B, T, _ = x0.shape
    C = p["pre_w"].shape[1]
    r2 = lambda v: v.reshape(1, -1).astype(F32)

    # fused QKV weight/bias (output channels are head-major contiguous, so the
    # in-kernel per-head slices are static contiguous lane slices of width d)
    qkvw = jnp.concatenate([p["attn_q_w"], p["attn_k_w"], p["attn_v_w"]],
                           axis=1)                                  # (C, 3C)
    qkvb = jnp.concatenate([p["attn_q_b"], p["attn_k_b"],
                            p["attn_v_b"]]).reshape(1, 3 * C)
    relkt = jnp.transpose(p["emb_rel_k"][0])                        # (d, 2w+1)
    relv = p["emb_rel_v"][0]                                        # (2w+1, d)

    args = [x0, mcol, mrow,
            p["pre_w"], r2(p["pre_b"]),
            qkvw, qkvb,
            relkt, relv, p["attn_o_w"], r2(p["attn_o_b"]),
            r2(p["ln1_g"]), r2(p["ln1_b"]),
            p["ffn1_w"], r2(p["ffn1_b"]), p["ffn2_w"], r2(p["ffn2_b"]),
            r2(p["ln2_g"]), r2(p["ln2_b"])]
    args = [a.astype(F32) for a in args]
    in_specs = ([_spec_batched(args[0].shape), _spec_batched(args[1].shape),
                 _spec_batched(args[2].shape)]
                + [_spec_full(a.shape) for a in args[3:]])

    pad_rows = T + 2 * ((kernel_size - 1) // 2)
    kern = functools.partial(_encoder_kernel, n_heads=n_heads,
                             window=window_size, ksize=kernel_size, T=T, C=C)
    return pl.pallas_call(
        kern,
        out_shape=jax.ShapeDtypeStruct((B, T, C), F32),
        grid=(B,),
        in_specs=in_specs,
        out_specs=_spec_batched((B, T, C)),
        scratch_shapes=[pltpu.VMEM((pad_rows, C), F32)],
        compiler_params=pltpu.CompilerParams(
            dimension_semantics=("parallel",),
            vmem_limit_bytes=_VMEM_LIMIT),
    )(*args)


# ----------------------------------------------------------------------------
# Kernel 2: WN stack + post 1x1 conv + affine coupling + logdet (fully fused)
# ----------------------------------------------------------------------------

def _wn_post_kernel(h_ref, x1_ref, mcol_ref,
                    inwt_ref, inws_ref, inbt_ref, inbs_ref,
                    rswr_ref, rsbr_ref, rsws_ref, rsbs_ref,
                    pmw_ref, pmb_ref, psw_ref, psb_ref,
                    x1o_ref, logdet_ref, pad_ref,
                    *, n_layers, ksize, dilation_rate, hidden, T, reverse):
    x = h_ref[0]                          # (T, hidden)
    x1 = x1_ref[0]                        # (T, half)
    mcol = mcol_ref[0]                    # (T, 1)

    pad_max = (dilation_rate ** (n_layers - 1)) * (ksize - 1) // 2
    # Zero the pad scratch ONCE.  Every layer writes x at the fixed offset
    # pad_max, so halo rows stay zero and are never re-stored.
    pad_ref[...] = jnp.zeros_like(pad_ref)

    out = jnp.zeros((T, hidden), F32)
    for i in range(n_layers):
        dil = dilation_rate ** i
        pad = dil * (ksize - 1) // 2
        pad_ref[pl.ds(pad_max, T), :] = x
        acc_t = jnp.zeros((T, hidden), F32) + inbt_ref[i]
        acc_s = jnp.zeros((T, hidden), F32) + inbs_ref[i]
        for k in range(ksize):
            xs = pad_ref[pl.ds(pad_max - pad + k * dil, T), :]
            acc_t = acc_t + jnp.dot(xs, inwt_ref[i * ksize + k],
                                    preferred_element_type=F32)
            acc_s = acc_s + jnp.dot(xs, inws_ref[i * ksize + k],
                                    preferred_element_type=F32)
        acts = jnp.tanh(acc_t) * jax.nn.sigmoid(acc_s)
        skip = jnp.dot(acts, rsws_ref[i], preferred_element_type=F32) + rsbs_ref[i]
        out = out + skip
        if i < n_layers - 1:
            res = jnp.dot(acts, rswr_ref[i], preferred_element_type=F32) + rsbr_ref[i]
            x = (x + res) * mcol

    wn = out * mcol                       # WN output never leaves VMEM

    # ---- post 1x1 conv + affine coupling + per-batch logdet ----
    m = (jnp.dot(wn, pmw_ref[...], preferred_element_type=F32)
         + pmb_ref[...]) * mcol
    logs = (jnp.dot(wn, psw_ref[...], preferred_element_type=F32)
            + psb_ref[...]) * mcol
    if reverse:
        x1o_ref[0] = (x1 - m) * jnp.exp(-logs) * mcol
        logdet_ref[0] = jnp.zeros((1, 1), F32)
    else:
        x1o_ref[0] = m + x1 * jnp.exp(logs) * mcol
        logdet_ref[0] = jnp.sum(logs, keepdims=True)   # logs already masked


def wn_post_fused(p, h, x1, mcol, *, hidden_channels, kernel_size,
                  dilation_rate, n_layers, half, reverse):
    B, T, H = h.shape
    L, K = n_layers, kernel_size
    inw = jnp.stack(p["wn_in_w"]).astype(F32)            # (L, K, H, 2H)
    inwt = inw[..., :H].reshape(L * K, H, H)
    inws = inw[..., H:].reshape(L * K, H, H)
    inb = jnp.stack(p["wn_in_b"]).astype(F32)            # (L, 2H)
    inbt = inb[:, :H].reshape(L, 1, H)
    inbs = inb[:, H:].reshape(L, 1, H)

    rswr_l, rsws_l, rsbr_l, rsbs_l = [], [], [], []
    for i in range(L):
        w = p["wn_rs_w"][i].astype(F32)
        b = p["wn_rs_b"][i].astype(F32)
        if i < L - 1:                                    # residual + skip halves
            rswr_l.append(w[:, :H]); rsws_l.append(w[:, H:])
            rsbr_l.append(b[:H]);    rsbs_l.append(b[H:])
        else:                                            # last layer: all skip
            rswr_l.append(jnp.zeros((H, H), F32)); rsws_l.append(w)
            rsbr_l.append(jnp.zeros((H,), F32));   rsbs_l.append(b)
    rswr = jnp.stack(rswr_l); rsws = jnp.stack(rsws_l)
    rsbr = jnp.stack(rsbr_l).reshape(L, 1, H)
    rsbs = jnp.stack(rsbs_l).reshape(L, 1, H)

    pw = p["post_w"].astype(F32)                         # (hidden, 2*half)
    pb = p["post_b"].astype(F32)
    pmw, psw = pw[:, :half], pw[:, half:]
    pmb = pb[:half].reshape(1, half)
    psb = pb[half:].reshape(1, half)

    args = [h.astype(F32), x1.astype(F32), mcol.astype(F32),
            inwt, inws, inbt, inbs, rswr, rsbr, rsws, rsbs,
            pmw, pmb, psw, psb]
    in_specs = ([_spec_batched(args[0].shape), _spec_batched(args[1].shape),
                 _spec_batched(args[2].shape)]
                + [_spec_full(a.shape) for a in args[3:]])

    pad_max = (dilation_rate ** (n_layers - 1)) * (kernel_size - 1) // 2
    kern = functools.partial(_wn_post_kernel, n_layers=n_layers,
                             ksize=kernel_size, dilation_rate=dilation_rate,
                             hidden=H, T=T, reverse=reverse)
    x1o, logdet = pl.pallas_call(
        kern,
        out_shape=(jax.ShapeDtypeStruct((B, T, half), F32),
                   jax.ShapeDtypeStruct((B, 1, 1), F32)),
        grid=(B,),
        in_specs=in_specs,
        out_specs=(_spec_batched((B, T, half)), _spec_batched((B, 1, 1))),
        scratch_shapes=[pltpu.VMEM((T + 2 * pad_max, H), F32)],
        compiler_params=pltpu.CompilerParams(
            dimension_semantics=("parallel",),
            vmem_limit_bytes=_VMEM_LIMIT),
    )(*args)
    return x1o, logdet.reshape(B)


# ----------------------------------------------------------------------------
# Module forward
# ----------------------------------------------------------------------------

def residual_coupling_transformers_layer2(params, x_bct, x_mask_b1t, *,
                                          channels, hidden_channels, kernel_size,
                                          dilation_rate, n_layers,
                                          n_heads=2, window_size=4, reverse=False):
    # Boundary layout is PyTorch NCT (B, C, T); kernels run channels-last (B, T, C).
    half = channels // 2
    x = jnp.transpose(x_bct, (0, 2, 1)).astype(F32)           # (B, T, C)
    mcol = jnp.transpose(x_mask_b1t, (0, 2, 1)).astype(F32)   # (B, T, 1)
    mrow = x_mask_b1t.astype(F32)                             # (B, 1, T)
    x0, x1 = x[..., :half], x[..., half:]

    h = encoder_fused(params, x0, mcol, mrow, n_heads=n_heads,
                      window_size=window_size, kernel_size=kernel_size)
    # TODO(synk): gin_channels / g conditioning path of modules.WN and
    # mean_only=True path are not wired (module defaults: g=None, mean_only=False).
    x1_new, logdet = wn_post_fused(params, h, x1, mcol,
                                   hidden_channels=hidden_channels,
                                   kernel_size=kernel_size,
                                   dilation_rate=dilation_rate,
                                   n_layers=n_layers, half=half, reverse=reverse)
    x_out = jnp.transpose(jnp.concatenate([x0, x1_new], axis=-1), (0, 2, 1))
    if reverse:
        return x_out
    return x_out, logdet


# ----------------------------------------------------------------------------
# Deterministic parameter init (shapes from the PyTorch __init__)
# ----------------------------------------------------------------------------

def init_params(key, *, channels, hidden_channels, kernel_size, dilation_rate,
                n_layers, n_heads=2, window_size=4):
    half = channels // 2
    k_ch = hidden_channels // n_heads
    it = iter(jax.random.split(key, 64))

    def nrm(shape, scale=0.1):
        return scale * jax.random.normal(next(it), shape, dtype=F32)

    p = {
        "pre_w": nrm((half, hidden_channels)), "pre_b": nrm((hidden_channels,)),
        "attn_q_w": nrm((hidden_channels, hidden_channels)), "attn_q_b": nrm((hidden_channels,)),
        "attn_k_w": nrm((hidden_channels, hidden_channels)), "attn_k_b": nrm((hidden_channels,)),
        "attn_v_w": nrm((hidden_channels, hidden_channels)), "attn_v_b": nrm((hidden_channels,)),
        "attn_o_w": nrm((hidden_channels, hidden_channels)), "attn_o_b": nrm((hidden_channels,)),
        "emb_rel_k": jax.random.normal(next(it), (1, 2 * window_size + 1, k_ch),
                                       dtype=F32) * (k_ch ** -0.5),
        "emb_rel_v": jax.random.normal(next(it), (1, 2 * window_size + 1, k_ch),
                                       dtype=F32) * (k_ch ** -0.5),
        "ln1_g": jnp.ones((hidden_channels,), F32),
        "ln1_b": jnp.zeros((hidden_channels,), F32),
        "ffn1_w": nrm((kernel_size, hidden_channels, hidden_channels)),
        "ffn1_b": nrm((hidden_channels,)),
        "ffn2_w": nrm((kernel_size, hidden_channels, hidden_channels)),
        "ffn2_b": nrm((hidden_channels,)),
        "ln2_g": jnp.ones((hidden_channels,), F32),
        "ln2_b": jnp.zeros((hidden_channels,), F32),
        # post 1x1 conv: zero-initialized exactly like the PyTorch __init__
        "post_w": jnp.zeros((hidden_channels, half * 2), F32),
        "post_b": jnp.zeros((half * 2,), F32),
    }
    wn_in_w, wn_in_b, wn_rs_w, wn_rs_b = [], [], [], []
    for i in range(n_layers):
        wn_in_w.append(nrm((kernel_size, hidden_channels, 2 * hidden_channels)))
        wn_in_b.append(nrm((2 * hidden_channels,)))
        rs = 2 * hidden_channels if i < n_layers - 1 else hidden_channels
        wn_rs_w.append(nrm((hidden_channels, rs)))
        wn_rs_b.append(nrm((rs,)))
    p.update(wn_in_w=wn_in_w, wn_in_b=wn_in_b, wn_rs_w=wn_rs_w, wn_rs_b=wn_rs_b)
    return p


if __name__ == "__main__":
    B, channels, T = 2, 8, 16
    hidden_channels, kernel_size, dilation_rate, n_layers = 32, 5, 2, 3
    half = channels // 2

    key = jax.random.PRNGKey(0)
    k_par, k_x = jax.random.split(key)
    params = init_params(k_par, channels=channels, hidden_channels=hidden_channels,
                         kernel_size=kernel_size, dilation_rate=dilation_rate,
                         n_layers=n_layers)

    x = jax.random.normal(k_x, (B, channels, T), dtype=F32)          # NCT
    lengths = jnp.array([T, T - 4])
    x_mask = (jnp.arange(T)[None, None, :] < lengths[:, None, None]).astype(F32)

    x_out, logdet = residual_coupling_transformers_layer2(
        params, x, x_mask, channels=channels, hidden_channels=hidden_channels,
        kernel_size=kernel_size, dilation_rate=dilation_rate, n_layers=n_layers)
    jax.block_until_ready((x_out, logdet))

    assert x_out.shape == (B, channels, T) and logdet.shape == (B,)
    assert bool(jnp.isfinite(x_out).all()) and bool(jnp.isfinite(logdet).all())
    # With the zero-initialized post conv (as in the PyTorch __init__):
    # m = 0, logs = 0  =>  x1_out == x1 * x_mask, x0 passthrough, logdet == 0.
    assert bool(jnp.allclose(x_out[:, :half, :], x[:, :half, :]))
    assert bool(jnp.allclose(x_out[:, half:, :], x[:, half:, :] * x_mask, atol=1e-5))
    assert bool(jnp.allclose(logdet, 0.0, atol=1e-6))
    print("KERNEL_OK")
</pallas_src>

<mosaic_0001>
module attributes {stable_mosaic.version = 11 : i64} {
  func.func @_encoder_kernel(%arg0: i32, %arg1: memref<1x16x4xf32, #tpu.memory_space<vmem>>, %arg2: memref<1x16x1xf32, #tpu.memory_space<vmem>>, %arg3: memref<1x1x16xf32, #tpu.memory_space<vmem>>, %arg4: memref<4x32xf32, #tpu.memory_space<vmem>>, %arg5: memref<1x32xf32, #tpu.memory_space<vmem>>, %arg6: memref<32x96xf32, #tpu.memory_space<vmem>>, %arg7: memref<1x96xf32, #tpu.memory_space<vmem>>, %arg8: memref<16x9xf32, #tpu.memory_space<vmem>>, %arg9: memref<9x16xf32, #tpu.memory_space<vmem>>, %arg10: memref<32x32xf32, #tpu.memory_space<vmem>>, %arg11: memref<1x32xf32, #tpu.memory_space<vmem>>, %arg12: memref<1x32xf32, #tpu.memory_space<vmem>>, %arg13: memref<1x32xf32, #tpu.memory_space<vmem>>, %arg14: memref<5x32x32xf32, #tpu.memory_space<vmem>>, %arg15: memref<1x32xf32, #tpu.memory_space<vmem>>, %arg16: memref<5x32x32xf32, #tpu.memory_space<vmem>>, %arg17: memref<1x32xf32, #tpu.memory_space<vmem>>, %arg18: memref<1x32xf32, #tpu.memory_space<vmem>>, %arg19: memref<1x32xf32, #tpu.memory_space<vmem>>, %arg20: memref<1x16x32xf32, #tpu.memory_space<vmem>>, %arg21: memref<20x32xf32, #tpu.memory_space<vmem>>) attributes {dimension_semantics = [#tpu.dimension_semantics<parallel>], iteration_bounds = array<i64: 2>, scalar_prefetch = 0 : i64, scratch_operands = 1 : i64, tpu.core_type = #tpu.core_type<tc>, window_params = [{transform_indices = @transform_0, window_bounds = array<i64: 1, 16, 4>}, {transform_indices = @transform_1, window_bounds = array<i64: 1, 16, 1>}, {transform_indices = @transform_2, window_bounds = array<i64: 1, 1, 16>}, {pipeline_mode = #tpu.pipeline_mode<synchronous>, transform_indices = @transform_3, window_bounds = array<i64: 4, 32>}, {pipeline_mode = #tpu.pipeline_mode<synchronous>, transform_indices = @transform_4, window_bounds = array<i64: 1, 32>}, {pipeline_mode = #tpu.pipeline_mode<synchronous>, transform_indices = @transform_5, window_bounds = array<i64: 32, 96>}, {pipeline_mode = #tpu.pipeline_mode<synchronous>, transform_indices = @transform_6, window_bounds = array<i64: 1, 96>}, {pipeline_mode = #tpu.pipeline_mode<synchronous>, transform_indices = @transform_7, window_bounds = array<i64: 16, 9>}, {pipeline_mode = #tpu.pipeline_mode<synchronous>, transform_indices = @transform_8, window_bounds = array<i64: 9, 16>}, {pipeline_mode = #tpu.pipeline_mode<synchronous>, transform_indices = @transform_9, window_bounds = array<i64: 32, 32>}, {pipeline_mode = #tpu.pipeline_mode<synchronous>, transform_indices = @transform_10, window_bounds = array<i64: 1, 32>}, {pipeline_mode = #tpu.pipeline_mode<synchronous>, transform_indices = @transform_11, window_bounds = array<i64: 1, 32>}, {pipeline_mode = #tpu.pipeline_mode<synchronous>, transform_indices = @transform_12, window_bounds = array<i64: 1, 32>}, {pipeline_mode = #tpu.pipeline_mode<synchronous>, transform_indices = @transform_13, window_bounds = array<i64: 5, 32, 32>}, {pipeline_mode = #tpu.pipeline_mode<synchronous>, transform_indices = @transform_14, window_bounds = array<i64: 1, 32>}, {pipeline_mode = #tpu.pipeline_mode<synchronous>, transform_indices = @transform_15, window_bounds = array<i64: 5, 32, 32>}, {pipeline_mode = #tpu.pipeline_mode<synchronous>, transform_indices = @transform_16, window_bounds = array<i64: 1, 32>}, {pipeline_mode = #tpu.pipeline_mode<synchronous>, transform_indices = @transform_17, window_bounds = array<i64: 1, 32>}, {pipeline_mode = #tpu.pipeline_mode<synchronous>, transform_indices = @transform_18, window_bounds = array<i64: 1, 32>}, {transform_indices = @transform_19, window_bounds = array<i64: 1, 16, 32>}]} {
    %c0 = arith.constant 0 : index
    %c0_0 = arith.constant 0 : index
    %c0_1 = arith.constant 0 : index
    %0 = vector.load %arg1[%c0, %c0_0, %c0_1] : memref<1x16x4xf32, #tpu.memory_space<vmem>>, vector<1x16x4xf32>
    %1 = vector.shape_cast %0 : vector<1x16x4xf32> to vector<16x4xf32>
    %c0_2 = arith.constant 0 : index
    %c0_3 = arith.constant 0 : index
    %c0_4 = arith.constant 0 : index
    %2 = vector.load %arg2[%c0_2, %c0_3, %c0_4] : memref<1x16x1xf32, #tpu.memory_space<vmem>>, vector<1x16x1xf32>
    %3 = vector.shape_cast %2 : vector<1x16x1xf32> to vector<16x1xf32>
    %c0_5 = arith.constant 0 : index
    %c0_6 = arith.constant 0 : index
    %c0_7 = arith.constant 0 : index
    %4 = vector.load %arg3[%c0_5, %c0_6, %c0_7] : memref<1x1x16xf32, #tpu.memory_space<vmem>>, vector<1x1x16xf32>
    %5 = vector.shape_cast %4 : vector<1x1x16xf32> to vector<1x16xf32>
    %cst = arith.constant 0.000000e+00 : f32
    %6 = vector.broadcast %cst : f32 to vector<20x32xf32>
    %c0_8 = arith.constant 0 : index
    %c0_9 = arith.constant 0 : index
    %7 = vector.load %arg21[%c0_8, %c0_9] : memref<20x32xf32, #tpu.memory_space<vmem>>, vector<20x32xf32>
    tpu.vector_store %arg21[%c0_8, %c0_9], %6 {strides = array<i32>} : memref<20x32xf32, #tpu.memory_space<vmem>>, vector<20x32xf32>,
    %c0_10 = arith.constant 0 : index
    %c0_11 = arith.constant 0 : index
    %8 = vector.load %arg4[%c0_10, %c0_11] : memref<4x32xf32, #tpu.memory_space<vmem>>, vector<4x32xf32>
    %cst_12 = arith.constant dense<0.000000e+00> : vector<16x32xf32>
    %9 = tpu.matmul %1, %8, %cst_12 {dimension_numbers = #tpu.dot_dimension_numbers<[1], [0], [0], [1], [0, 0, 1, 1], [], []>} : vector<16x4xf32>, vector<4x32xf32>, vector<16x32xf32> -> vector<16x32xf32>
    %c0_13 = arith.constant 0 : index
    %c0_14 = arith.constant 0 : index
    %10 = vector.load %arg5[%c0_13, %c0_14] : memref<1x32xf32, #tpu.memory_space<vmem>>, vector<1x32xf32>
    %11 = vector.broadcast %10 : vector<1x32xf32> to vector<16x32xf32>
    %12 = arith.addf %9, %11 : vector<16x32xf32>
    %13 = vector.broadcast %3 : vector<16x1xf32> to vector<16x32xf32>
    %14 = arith.mulf %12, %13 : vector<16x32xf32>
    %15 = vector.broadcast %3 : vector<16x1xf32> to vector<16x32xf32>
    %16 = arith.mulf %14, %15 : vector<16x32xf32>
    %17 = vector.broadcast %3 : vector<16x1xf32> to vector<16x16xf32>
    %18 = vector.broadcast %5 : vector<1x16xf32> to vector<16x16xf32>
    %19 = arith.mulf %17, %18 : vector<16x16xf32>
    %20 = tpu.iota {dimensions = array<i32: 0>} : vector<16x16xi32>
    %21 = tpu.iota {dimensions = array<i32: 1>} : vector<16x16xi32>
    %22 = arith.subi %21, %20 : vector<16x16xi32>
    %c-4_i32 = arith.constant -4 : i32
    %23 = vector.broadcast %c-4_i32 : i32 to vector<16x16xi32>
    %24 = arith.cmpi eq, %22, %23 : vector<16x16xi32>
    %c-3_i32 = arith.constant -3 : i32
    %25 = vector.broadcast %c-3_i32 : i32 to vector<16x16xi32>
    %26 = arith.cmpi eq, %22, %25 : vector<16x16xi32>
    %c-2_i32 = arith.constant -2 : i32
    %27 = vector.broadcast %c-2_i32 : i32 to vector<16x16xi32>
    %28 = arith.cmpi eq, %22, %27 : vector<16x16xi32>
    %c-1_i32 = arith.constant -1 : i32
    %29 = vector.broadcast %c-1_i32 : i32 to vector<16x16xi32>
    %30 = arith.cmpi eq, %22, %29 : vector<16x16xi32>
    %c0_i32 = arith.constant 0 : i32
    %31 = vector.broadcast %c0_i32 : i32 to vector<16x16xi32>
    %32 = arith.cmpi eq, %22, %31 : vector<16x16xi32>
    %c1_i32 = arith.constant 1 : i32
    %33 = vector.broadcast %c1_i32 : i32 to vector<16x16xi32>
    %34 = arith.cmpi eq, %22, %33 : vector<16x16xi32>
    %c2_i32 = arith.constant 2 : i32
    %35 = vector.broadcast %c2_i32 : i32 to vector<16x16xi32>
    %36 = arith.cmpi eq, %22, %35 : vector<16x16xi32>
    %c3_i32 = arith.constant 3 : i32
    %37 = vector.broadcast %c3_i32 : i32 to vector<16x16xi32>
    %38 = arith.cmpi eq, %22, %37 : vector<16x16xi32>
    %c4_i32 = arith.constant 4 : i32
    %39 = vector.broadcast %c4_i32 : i32 to vector<16x16xi32>
    %40 = arith.cmpi eq, %22, %39 : vector<16x16xi32>
    %c0_15 = arith.constant 0 : index
    %c0_16 = arith.constant 0 : index
    %41 = vector.load %arg6[%c0_15, %c0_16] : memref<32x96xf32, #tpu.memory_space<vmem>>, vector<32x96xf32>
    %cst_17 = arith.constant dense<0.000000e+00> : vector<16x96xf32>
    %42 = tpu.matmul %16, %41, %cst_17 {dimension_numbers = #tpu.dot_dimension_numbers<[1], [0], [0], [1], [0, 0, 1, 1], [], []>} : vector<16x32xf32>, vector<32x96xf32>, vector<16x96xf32> -> vector<16x96xf32>
    %c0_18 = arith.constant 0 : index
    %c0_19 = arith.constant 0 : index
    %43 = vector.load %arg7[%c0_18, %c0_19] : memref<1x96xf32, #tpu.memory_space<vmem>>, vector<1x96xf32>
    %44 = vector.broadcast %43 : vector<1x96xf32> to vector<16x96xf32>
    %45 = arith.addf %42, %44 : vector<16x96xf32>
    %46 = vector.extract_strided_slice %45 {offsets = [0, 0], sizes = [16, 16], strides = [1, 1]} : vector<16x96xf32> to vector<16x16xf32>
    %cst_20 = arith.constant 2.500000e-01 : f32
    %47 = vector.broadcast %cst_20 : f32 to vector<16x16xf32>
    %48 = arith.mulf %46, %47 : vector<16x16xf32>
    %49 = vector.extract_strided_slice %45 {offsets = [0, 32], sizes = [16, 16], strides = [1, 1]} : vector<16x96xf32> to vector<16x16xf32>
    %50 = vector.extract_strided_slice %45 {offsets = [0, 64], sizes = [16, 16], strides = [1, 1]} : vector<16x96xf32> to vector<16x16xf32>
    %51 = tpu.transpose %49, [1, 0] : vector<16x16xf32> -> vector<16x16xf32>
    %cst_21 = arith.constant dense<0.000000e+00> : vector<16x16xf32>
    %52 = tpu.matmul %48, %51, %cst_21 {dimension_numbers = #tpu.dot_dimension_numbers<[1], [0], [0], [1], [0, 0, 1, 1], [], []>} : vector<16x16xf32>, vector<16x16xf32>, vector<16x16xf32> -> vector<16x16xf32>
    %c0_22 = arith.constant 0 : index
    %c0_23 = arith.constant 0 : index
    %53 = vector.load %arg8[%c0_22, %c0_23] : memref<16x9xf32, #tpu.memory_space<vmem>>, vector<16x9xf32>
    %cst_24 = arith.constant dense<0.000000e+00> : vector<16x9xf32>
    %54 = tpu.matmul %48, %53, %cst_24 {dimension_numbers = #tpu.dot_dimension_numbers<[1], [0], [0], [1], [0, 0, 1, 1], [], []>} : vector<16x16xf32>, vector<16x9xf32>, vector<16x9xf32> -> vector<16x9xf32>
    %55 = vector.extract_strided_slice %54 {offsets = [0, 0], sizes = [16, 1], strides = [1, 1]} : vector<16x9xf32> to vector<16x1xf32>
    %cst_25 = arith.constant 0.000000e+00 : f32
    %56 = vector.shape_cast %55 : vector<16x1xf32> to vector<16x1xf32>
    %57 = vector.broadcast %56 : vector<16x1xf32> to vector<16x16xf32>
    %58 = vector.broadcast %cst_25 : f32 to vector<16x16xf32>
    %59 = arith.select %24, %57, %58 : vector<16x16xi1>, vector<16x16xf32>
    %60 = arith.addf %52, %59 : vector<16x16xf32>
    %61 = vector.extract_strided_slice %54 {offsets = [0, 1], sizes = [16, 1], strides = [1, 1]} : vector<16x9xf32> to vector<16x1xf32>
    %cst_26 = arith.constant 0.000000e+00 : f32
    %62 = vector.shape_cast %61 : vector<16x1xf32> to vector<16x1xf32>
    %63 = vector.broadcast %62 : vector<16x1xf32> to vector<16x16xf32>
    %64 = vector.broadcast %cst_26 : f32 to vector<16x16xf32>
    %65 = arith.select %26, %63, %64 : vector<16x16xi1>, vector<16x16xf32>
    %66 = arith.addf %60, %65 : vector<16x16xf32>
    %67 = vector.extract_strided_slice %54 {offsets = [0, 2], sizes = [16, 1], strides = [1, 1]} : vector<16x9xf32> to vector<16x1xf32>
    %cst_27 = arith.constant 0.000000e+00 : f32
    %68 = vector.shape_cast %67 : vector<16x1xf32> to vector<16x1xf32>
    %69 = vector.broadcast %68 : vector<16x1xf32> to vector<16x16xf32>
    %70 = vector.broadcast %cst_27 : f32 to vector<16x16xf32>
    %71 = arith.select %28, %69, %70 : vector<16x16xi1>, vector<16x16xf32>
    %72 = arith.addf %66, %71 : vector<16x16xf32>
    %73 = vector.extract_strided_slice %54 {offsets = [0, 3], sizes = [16, 1], strides = [1, 1]} : vector<16x9xf32> to vector<16x1xf32>
    %cst_28 = arith.constant 0.000000e+00 : f32
    %74 = vector.shape_cast %73 : vector<16x1xf32> to vector<16x1xf32>
    %75 = vector.broadcast %74 : vector<16x1xf32> to vector<16x16xf32>
    %76 = vector.broadcast %cst_28 : f32 to vector<16x16xf32>
    %77 = arith.select %30, %75, %76 : vector<16x16xi1>, vector<16x16xf32>
    %78 = arith.addf %72, %77 : vector<16x16xf32>
    %79 = vector.extract_strided_slice %54 {offsets = [0, 4], sizes = [16, 1], strides = [1, 1]} : vector<16x9xf32> to vector<16x1xf32>
    %cst_29 = arith.constant 0.000000e+00 : f32
    %80 = vector.shape_cast %79 : vector<16x1xf32> to vector<16x1xf32>
    %81 = vector.broadcast %80 : vector<16x1xf32> to vector<16x16xf32>
    %82 = vector.broadcast %cst_29 : f32 to vector<16x16xf32>
    %83 = arith.select %32, %81, %82 : vector<16x16xi1>, vector<16x16xf32>
    %84 = arith.addf %78, %83 : vector<16x16xf32>
    %85 = vector.extract_strided_slice %54 {offsets = [0, 5], sizes = [16, 1], strides = [1, 1]} : vector<16x9xf32> to vector<16x1xf32>
    %cst_30 = arith.constant 0.000000e+00 : f32
    %86 = vector.shape_cast %85 : vector<16x1xf32> to vector<16x1xf32>
    %87 = vector.broadcast %86 : vector<16x1xf32> to vector<16x16xf32>
    %88 = vector.broadcast %cst_30 : f32 to vector<16x16xf32>
    %89 = arith.select %34, %87, %88 : vector<16x16xi1>, vector<16x16xf32>
    %90 = arith.addf %84, %89 : vector<16x16xf32>
    %91 = vector.extract_strided_slice %54 {offsets = [0, 6], sizes = [16, 1], strides = [1, 1]} : vector<16x9xf32> to vector<16x1xf32>
    %cst_31 = arith.constant 0.000000e+00 : f32
    %92 = vector.shape_cast %91 : vector<16x1xf32> to vector<16x1xf32>
    %93 = vector.broadcast %92 : vector<16x1xf32> to vector<16x16xf32>
    %94 = vector.broadcast %cst_31 : f32 to vector<16x16xf32>
    %95 = arith.select %36, %93, %94 : vector<16x16xi1>, vector<16x16xf32>
    %96 = arith.addf %90, %95 : vector<16x16xf32>
    %97 = vector.extract_strided_slice %54 {offsets = [0, 7], sizes = [16, 1], strides = [1, 1]} : vector<16x9xf32> to vector<16x1xf32>
    %cst_32 = arith.constant 0.000000e+00 : f32
    %98 = vector.shape_cast %97 : vector<16x1xf32> to vector<16x1xf32>
    %99 = vector.broadcast %98 : vector<16x1xf32> to vector<16x16xf32>
    %100 = vector.broadcast %cst_32 : f32 to vector<16x16xf32>
    %101 = arith.select %38, %99, %100 : vector<16x16xi1>, vector<16x16xf32>
    %102 = arith.addf %96, %101 : vector<16x16xf32>
    %103 = vector.extract_strided_slice %54 {offsets = [0, 8], sizes = [16, 1], strides = [1, 1]} : vector<16x9xf32> to vector<16x1xf32>
    %cst_33 = arith.constant 0.000000e+00 : f32
    %104 = vector.shape_cast %103 : vector<16x1xf32> to vector<16x1xf32>
    %105 = vector.broadcast %104 : vector<16x1xf32> to vector<16x16xf32>
    %106 = vector.broadcast %cst_33 : f32 to vector<16x16xf32>
    %107 = arith.select %40, %105, %106 : vector<16x16xi1>, vector<16x16xf32>
    %108 = arith.addf %102, %107 : vector<16x16xf32>
    %cst_34 = arith.constant 0.000000e+00 : f32
    %109 = vector.broadcast %cst_34 : f32 to vector<16x16xf32>
    %110 = arith.cmpf ogt, %19, %109 : vector<16x16xf32>
    %cst_35 = arith.constant -1.000000e+04 : f32
    %111 = vector.broadcast %cst_35 : f32 to vector<16x16xf32>
    %112 = arith.select %110, %108, %111 : vector<16x16xi1>, vector<16x16xf32>
    %cst_36 = arith.constant dense<0xFF800000> : vector<16xf32>
    %113 = vector.multi_reduction <maximumf>, %112, %cst_36 [1] : vector<16x16xf32> to vector<16xf32>
    %114 = vector.shape_cast %113 : vector<16xf32> to vector<16x1xf32>
    %115 = vector.broadcast %114 : vector<16x1xf32> to vector<16x16xf32>
    %116 = arith.subf %112, %115 : vector<16x16xf32>
    %117 = math.exp %116 : vector<16x16xf32>
    %cst_37 = arith.constant dense<0.000000e+00> : vector<16xf32>
    %118 = vector.multi_reduction <add>, %117, %cst_37 [1] : vector<16x16xf32> to vector<16xf32>
    %119 = vector.shape_cast %118 : vector<16xf32> to vector<16x1xf32>
    %120 = vector.broadcast %119 : vector<16x1xf32> to vector<16x16xf32>
    %121 = arith.divf %117, %120 : vector<16x16xf32>
    %cst_38 = arith.constant dense<0.000000e+00> : vector<16x16xf32>
    %122 = tpu.matmul %121, %50, %cst_38 {dimension_numbers = #tpu.dot_dimension_numbers<[1], [0], [0], [1], [0, 0, 1, 1], [], []>} : vector<16x16xf32>, vector<16x16xf32>, vector<16x16xf32> -> vector<16x16xf32>
    %cst_39 = arith.constant 0.000000e+00 : f32
    %123 = vector.broadcast %cst_39 : f32 to vector<16x16xf32>
    %124 = arith.select %24, %121, %123 : vector<16x16xi1>, vector<16x16xf32>
    %cst_40 = arith.constant dense<0.000000e+00> : vector<16xf32>
    %125 = vector.multi_reduction <add>, %124, %cst_40 [1] : vector<16x16xf32> to vector<16xf32>
    %126 = vector.shape_cast %125 : vector<16xf32> to vector<16x1xf32>
    %cst_41 = arith.constant 0.000000e+00 : f32
    %127 = vector.broadcast %cst_41 : f32 to vector<16x16xf32>
    %128 = arith.select %26, %121, %127 : vector<16x16xi1>, vector<16x16xf32>
    %cst_42 = arith.constant dense<0.000000e+00> : vector<16xf32>
    %129 = vector.multi_reduction <add>, %128, %cst_42 [1] : vector<16x16xf32> to vector<16xf32>
    %130 = vector.shape_cast %129 : vector<16xf32> to vector<16x1xf32>
    %cst_43 = arith.constant 0.000000e+00 : f32
    %131 = vector.broadcast %cst_43 : f32 to vector<16x16xf32>
    %132 = arith.select %28, %121, %131 : vector<16x16xi1>, vector<16x16xf32>
    %cst_44 = arith.constant dense<0.000000e+00> : vector<16xf32>
    %133 = vector.multi_reduction <add>, %132, %cst_44 [1] : vector<16x16xf32> to vector<16xf32>
    %134 = vector.shape_cast %133 : vector<16xf32> to vector<16x1xf32>
    %cst_45 = arith.constant 0.000000e+00 : f32
    %135 = vector.broadcast %cst_45 : f32 to vector<16x16xf32>
    %136 = arith.select %30, %121, %135 : vector<16x16xi1>, vector<16x16xf32>
    %cst_46 = arith.constant dense<0.000000e+00> : vector<16xf32>
    %137 = vector.multi_reduction <add>, %136, %cst_46 [1] : vector<16x16xf32> to vector<16xf32>
    %138 = vector.shape_cast %137 : vector<16xf32> to vector<16x1xf32>
    %cst_47 = arith.constant 0.000000e+00 : f32
    %139 = vector.broadcast %cst_47 : f32 to vector<16x16xf32>
    %140 = arith.select %32, %121, %139 : vector<16x16xi1>, vector<16x16xf32>
    %cst_48 = arith.constant dense<0.000000e+00> : vector<16xf32>
    %141 = vector.multi_reduction <add>, %140, %cst_48 [1] : vector<16x16xf32> to vector<16xf32>
    %142 = vector.shape_cast %141 : vector<16xf32> to vector<16x1xf32>
    %cst_49 = arith.constant 0.000000e+00 : f32
    %143 = vector.broadcast %cst_49 : f32 to vector<16x16xf32>
    %144 = arith.select %34, %121, %143 : vector<16x16xi1>, vector<16x16xf32>
    %cst_50 = arith.constant dense<0.000000e+00> : vector<16xf32>
    %145 = vector.multi_reduction <add>, %144, %cst_50 [1] : vector<16x16xf32> to vector<16xf32>
    %146 = vector.shape_cast %145 : vector<16xf32> to vector<16x1xf32>
    %cst_51 = arith.constant 0.000000e+00 : f32
    %147 = vector.broadcast %cst_51 : f32 to vector<16x16xf32>
    %148 = arith.select %36, %121, %147 : vector<16x16xi1>, vector<16x16xf32>
    %cst_52 = arith.constant dense<0.000000e+00> : vector<16xf32>
    %149 = vector.multi_reduction <add>, %148, %cst_52 [1] : vector<16x16xf32> to vector<16xf32>
    %150 = vector.shape_cast %149 : vector<16xf32> to vector<16x1xf32>
    %cst_53 = arith.constant 0.000000e+00 : f32
    %151 = vector.broadcast %cst_53 : f32 to vector<16x16xf32>
    %152 = arith.select %38, %121, %151 : vector<16x16xi1>, vector<16x16xf32>
    %cst_54 = arith.constant dense<0.000000e+00> : vector<16xf32>
    %153 = vector.multi_reduction <add>, %152, %cst_54 [1] : vector<16x16xf32> to vector<16xf32>
    %154 = vector.shape_cast %153 : vector<16xf32> to vector<16x1xf32>
    %cst_55 = arith.constant 0.000000e+00 : f32
    %155 = vector.broadcast %cst_55 : f32 to vector<16x16xf32>
    %156 = arith.select %40, %121, %155 : vector<16x16xi1>, vector<16x16xf32>
    %cst_56 = arith.constant dense<0.000000e+00> : vector<16xf32>
    %157 = vector.multi_reduction <add>, %156, %cst_56 [1] : vector<16x16xf32> to vector<16xf32>
    %158 = vector.shape_cast %157 : vector<16xf32> to vector<16x1xf32>
    %159 = tpu.concatenate %126, %130, %134, %138, %142, %146, %150, %154, %158 in 1 : vector<16x1xf32>, vector<16x1xf32>, vector<16x1xf32>, vector<16x1xf32>, vector<16x1xf32>, vector<16x1xf32>, vector<16x1xf32>, vector<16x1xf32>, vector<16x1xf32> -> vector<16x9xf32>
    %c0_57 = arith.constant 0 : index
    %c0_58 = arith.constant 0 : index
    %160 = vector.load %arg9[%c0_57, %c0_58] : memref<9x16xf32, #tpu.memory_space<vmem>>, vector<9x16xf32>
    %cst_59 = arith.constant dense<0.000000e+00> : vector<16x16xf32>
    %161 = tpu.matmul %159, %160, %cst_59 {dimension_numbers = #tpu.dot_dimension_numbers<[1], [0], [0], [1], [0, 0, 1, 1], [], []>} : vector<16x9xf32>, vector<9x16xf32>, vector<16x16xf32> -> vector<16x16xf32>
    %162 = arith.addf %122, %161 : vector<16x16xf32>
    %163 = vector.extract_strided_slice %45 {offsets = [0, 16], sizes = [16, 16], strides = [1, 1]} : vector<16x96xf32> to vector<16x16xf32>
    %cst_60 = arith.constant 2.500000e-01 : f32
    %164 = vector.broadcast %cst_60 : f32 to vector<16x16xf32>
    %165 = arith.mulf %163, %164 : vector<16x16xf32>
    %166 = vector.extract_strided_slice %45 {offsets = [0, 48], sizes = [16, 16], strides = [1, 1]} : vector<16x96xf32> to vector<16x16xf32>
    %167 = vector.extract_strided_slice %45 {offsets = [0, 80], sizes = [16, 16], strides = [1, 1]} : vector<16x96xf32> to vector<16x16xf32>
    %168 = tpu.transpose %166, [1, 0] : vector<16x16xf32> -> vector<16x16xf32>
    %cst_61 = arith.constant dense<0.000000e+00> : vector<16x16xf32>
    %169 = tpu.matmul %165, %168, %cst_61 {dimension_numbers = #tpu.dot_dimension_numbers<[1], [0], [0], [1], [0, 0, 1, 1], [], []>} : vector<16x16xf32>, vector<16x16xf32>, vector<16x16xf32> -> vector<16x16xf32>
    %c0_62 = arith.constant 0 : index
    %c0_63 = arith.constant 0 : index
    %170 = vector.load %arg8[%c0_62, %c0_63] : memref<16x9xf32, #tpu.memory_space<vmem>>, vector<16x9xf32>
    %cst_64 = arith.constant dense<0.000000e+00> : vector<16x9xf32>
    %171 = tpu.matmul %165, %170, %cst_64 {dimension_numbers = #tpu.dot_dimension_numbers<[1], [0], [0], [1], [0, 0, 1, 1], [], []>} : vector<16x16xf32>, vector<16x9xf32>, vector<16x9xf32> -> vector<16x9xf32>
    %172 = vector.extract_strided_slice %171 {offsets = [0, 0], sizes = [16, 1], strides = [1, 1]} : vector<16x9xf32> to vector<16x1xf32>
    %cst_65 = arith.constant 0.000000e+00 : f32
    %173 = vector.shape_cast %172 : vector<16x1xf32> to vector<16x1xf32>
    %174 = vector.broadcast %173 : vector<16x1xf32> to vector<16x16xf32>
    %175 = vector.broadcast %cst_65 : f32 to vector<16x16xf32>
    %176 = arith.select %24, %174, %175 : vector<16x16xi1>, vector<16x16xf32>
    %177 = arith.addf %169, %176 : vector<16x16xf32>
    %178 = vector.extract_strided_slice %171 {offsets = [0, 1], sizes = [16, 1], strides = [1, 1]} : vector<16x9xf32> to vector<16x1xf32>
    %cst_66 = arith.constant 0.000000e+00 : f32
    %179 = vector.shape_cast %178 : vector<16x1xf32> to vector<16x1xf32>
    %180 = vector.broadcast %179 : vector<16x1xf32> to vector<16x16xf32>
    %181 = vector.broadcast %cst_66 : f32 to vector<16x16xf32>
    %182 = arith.select %26, %180, %181 : vector<16x16xi1>, vector<16x16xf32>
    %183 = arith.addf %177, %182 : vector<16x16xf32>
    %184 = vector.extract_strided_slice %171 {offsets = [0, 2], sizes = [16, 1], strides = [1, 1]} : vector<16x9xf32> to vector<16x1xf32>
    %cst_67 = arith.constant 0.000000e+00 : f32
    %185 = vector.shape_cast %184 : vector<16x1xf32> to vector<16x1xf32>
    %186 = vector.broadcast %185 : vector<16x1xf32> to vector<16x16xf32>
    %187 = vector.broadcast %cst_67 : f32 to vector<16x16xf32>
    %188 = arith.select %28, %186, %187 : vector<16x16xi1>, vector<16x16xf32>
    %189 = arith.addf %183, %188 : vector<16x16xf32>
    %190 = vector.extract_strided_slice %171 {offsets = [0, 3], sizes = [16, 1], strides = [1, 1]} : vector<16x9xf32> to vector<16x1xf32>
    %cst_68 = arith.constant 0.000000e+00 : f32
    %191 = vector.shape_cast %190 : vector<16x1xf32> to vector<16x1xf32>
    %192 = vector.broadcast %191 : vector<16x1xf32> to vector<16x16xf32>
    %193 = vector.broadcast %cst_68 : f32 to vector<16x16xf32>
    %194 = arith.select %30, %192, %193 : vector<16x16xi1>, vector<16x16xf32>
    %195 = arith.addf %189, %194 : vector<16x16xf32>
    %196 = vector.extract_strided_slice %171 {offsets = [0, 4], sizes = [16, 1], strides = [1, 1]} : vector<16x9xf32> to vector<16x1xf32>
    %cst_69 = arith.constant 0.000000e+00 : f32
    %197 = vector.shape_cast %196 : vector<16x1xf32> to vector<16x1xf32>
    %198 = vector.broadcast %197 : vector<16x1xf32> to vector<16x16xf32>
    %199 = vector.broadcast %cst_69 : f32 to vector<16x16xf32>
    %200 = arith.select %32, %198, %199 : vector<16x16xi1>, vector<16x16xf32>
    %201 = arith.addf %195, %200 : vector<16x16xf32>
    %202 = vector.extract_strided_slice %171 {offsets = [0, 5], sizes = [16, 1], strides = [1, 1]} : vector<16x9xf32> to vector<16x1xf32>
    %cst_70 = arith.constant 0.000000e+00 : f32
    %203 = vector.shape_cast %202 : vector<16x1xf32> to vector<16x1xf32>
    %204 = vector.broadcast %203 : vector<16x1xf32> to vector<16x16xf32>
    %205 = vector.broadcast %cst_70 : f32 to vector<16x16xf32>
    %206 = arith.select %34, %204, %205 : vector<16x16xi1>, vector<16x16xf32>
    %207 = arith.addf %201, %206 : vector<16x16xf32>
    %208 = vector.extract_strided_slice %171 {offsets = [0, 6], sizes = [16, 1], strides = [1, 1]} : vector<16x9xf32> to vector<16x1xf32>
    %cst_71 = arith.constant 0.000000e+00 : f32
    %209 = vector.shape_cast %208 : vector<16x1xf32> to vector<16x1xf32>
    %210 = vector.broadcast %209 : vector<16x1xf32> to vector<16x16xf32>
    %211 = vector.broadcast %cst_71 : f32 to vector<16x16xf32>
    %212 = arith.select %36, %210, %211 : vector<16x16xi1>, vector<16x16xf32>
    %213 = arith.addf %207, %212 : vector<16x16xf32>
    %214 = vector.extract_strided_slice %171 {offsets = [0, 7], sizes = [16, 1], strides = [1, 1]} : vector<16x9xf32> to vector<16x1xf32>
    %cst_72 = arith.constant 0.000000e+00 : f32
    %215 = vector.shape_cast %214 : vector<16x1xf32> to vector<16x1xf32>
    %216 = vector.broadcast %215 : vector<16x1xf32> to vector<16x16xf32>
    %217 = vector.broadcast %cst_72 : f32 to vector<16x16xf32>
    %218 = arith.select %38, %216, %217 : vector<16x16xi1>, vector<16x16xf32>
    %219 = arith.addf %213, %218 : vector<16x16xf32>
    %220 = vector.extract_strided_slice %171 {offsets = [0, 8], sizes = [16, 1], strides = [1, 1]} : vector<16x9xf32> to vector<16x1xf32>
    %cst_73 = arith.constant 0.000000e+00 : f32
    %221 = vector.shape_cast %220 : vector<16x1xf32> to vector<16x1xf32>
    %222 = vector.broadcast %221 : vector<16x1xf32> to vector<16x16xf32>
    %223 = vector.broadcast %cst_73 : f32 to vector<16x16xf32>
    %224 = arith.select %40, %222, %223 : vector<16x16xi1>, vector<16x16xf32>
    %225 = arith.addf %219, %224 : vector<16x16xf32>
    %cst_74 = arith.constant 0.000000e+00 : f32
    %226 = vector.broadcast %cst_74 : f32 to vector<16x16xf32>
    %227 = arith.cmpf ogt, %19, %226 : vector<16x16xf32>
    %cst_75 = arith.constant -1.000000e+04 : f32
    %228 = vector.broadcast %cst_75 : f32 to vector<16x16xf32>
    %229 = arith.select %227, %225, %228 : vector<16x16xi1>, vector<16x16xf32>
    %cst_76 = arith.constant dense<0xFF800000> : vector<16xf32>
    %230 = vector.multi_reduction <maximumf>, %229, %cst_76 [1] : vector<16x16xf32> to vector<16xf32>
    %231 = vector.shape_cast %230 : vector<16xf32> to vector<16x1xf32>
    %232 = vector.broadcast %231 : vector<16x1xf32> to vector<16x16xf32>
    %233 = arith.subf %229, %232 : vector<16x16xf32>
    %234 = math.exp %233 : vector<16x16xf32>
    %cst_77 = arith.constant dense<0.000000e+00> : vector<16xf32>
    %235 = vector.multi_reduction <add>, %234, %cst_77 [1] : vector<16x16xf32> to vector<16xf32>
    %236 = vector.shape_cast %235 : vector<16xf32> to vector<16x1xf32>
    %237 = vector.broadcast %236 : vector<16x1xf32> to vector<16x16xf32>
    %238 = arith.divf %234, %237 : vector<16x16xf32>
    %cst_78 = arith.constant dense<0.000000e+00> : vector<16x16xf32>
    %239 = tpu.matmul %238, %167, %cst_78 {dimension_numbers = #tpu.dot_dimension_numbers<[1], [0], [0], [1], [0, 0, 1, 1], [], []>} : vector<16x16xf32>, vector<16x16xf32>, vector<16x16xf32> -> vector<16x16xf32>
    %cst_79 = arith.constant 0.000000e+00 : f32
    %240 = vector.broadcast %cst_79 : f32 to vector<16x16xf32>
    %241 = arith.select %24, %238, %240 : vector<16x16xi1>, vector<16x16xf32>
    %cst_80 = arith.constant dense<0.000000e+00> : vector<16xf32>
    %242 = vector.multi_reduction <add>, %241, %cst_80 [1] : vector<16x16xf32> to vector<16xf32>
    %243 = vector.shape_cast %242 : vector<16xf32> to vector<16x1xf32>
    %cst_81 = arith.constant 0.000000e+00 : f32
    %244 = vector.broadcast %cst_81 : f32 to vector<16x16xf32>
    %245 = arith.select %26, %238, %244 : vector<16x16xi1>, vector<16x16xf32>
    %cst_82 = arith.constant dense<0.000000e+00> : vector<16xf32>
    %246 = vector.multi_reduction <add>, %245, %cst_82 [1] : vector<16x16xf32> to vector<16xf32>
    %247 = vector.shape_cast %246 : vector<16xf32> to vector<16x1xf32>
    %cst_83 = arith.constant 0.000000e+00 : f32
    %248 = vector.broadcast %cst_83 : f32 to vector<16x16xf32>
    %249 = arith.select %28, %238, %248 : vector<16x16xi1>, vector<16x16xf32>
    %cst_84 = arith.constant dense<0.000000e+00> : vector<16xf32>
    %250 = vector.multi_reduction <add>, %249, %cst_84 [1] : vector<16x16xf32> to vector<16xf32>
    %251 = vector.shape_cast %250 : vector<16xf32> to vector<16x1xf32>
    %cst_85 = arith.constant 0.000000e+00 : f32
    %252 = vector.broadcast %cst_85 : f32 to vector<16x16xf32>
    %253 = arith.select %30, %238, %252 : vector<16x16xi1>, vector<16x16xf32>
    %cst_86 = arith.constant dense<0.000000e+00> : vector<16xf32>
    %254 = vector.multi_reduction <add>, %253, %cst_86 [1] : vector<16x16xf32> to vector<16xf32>
    %255 = vector.shape_cast %254 : vector<16xf32> to vector<16x1xf32>
    %cst_87 = arith.constant 0.000000e+00 : f32
    %256 = vector.broadcast %cst_87 : f32 to vector<16x16xf32>
    %257 = arith.select %32, %238, %256 : vector<16x16xi1>, vector<16x16xf32>
    %cst_88 = arith.constant dense<0.000000e+00> : vector<16xf32>
    %258 = vector.multi_reduction <add>, %257, %cst_88 [1] : vector<16x16xf32> to vector<16xf32>
    %259 = vector.shape_cast %258 : vector<16xf32> to vector<16x1xf32>
    %cst_89 = arith.constant 0.000000e+00 : f32
    %260 = vector.broadcast %cst_89 : f32 to vector<16x16xf32>
    %261 = arith.select %34, %238, %260 : vector<16x16xi1>, vector<16x16xf32>
    %cst_90 = arith.constant dense<0.000000e+00> : vector<16xf32>
    %262 = vector.multi_reduction <add>, %261, %cst_90 [1] : vector<16x16xf32> to vector<16xf32>
    %263 = vector.shape_cast %262 : vector<16xf32> to vector<16x1xf32>
    %cst_91 = arith.constant 0.000000e+00 : f32
    %264 = vector.broadcast %cst_91 : f32 to vector<16x16xf32>
    %265 = arith.select %36, %238, %264 : vector<16x16xi1>, vector<16x16xf32>
    %cst_92 = arith.constant dense<0.000000e+00> : vector<16xf32>
    %266 = vector.multi_reduction <add>, %265, %cst_92 [1] : vector<16x16xf32> to vector<16xf32>
    %267 = vector.shape_cast %266 : vector<16xf32> to vector<16x1xf32>
    %cst_93 = arith.constant 0.000000e+00 : f32
    %268 = vector.broadcast %cst_93 : f32 to vector<16x16xf32>
    %269 = arith.select %38, %238, %268 : vector<16x16xi1>, vector<16x16xf32>
    %cst_94 = arith.constant dense<0.000000e+00> : vector<16xf32>
    %270 = vector.multi_reduction <add>, %269, %cst_94 [1] : vector<16x16xf32> to vector<16xf32>
    %271 = vector.shape_cast %270 : vector<16xf32> to vector<16x1xf32>
    %cst_95 = arith.constant 0.000000e+00 : f32
    %272 = vector.broadcast %cst_95 : f32 to vector<16x16xf32>
    %273 = arith.select %40, %238, %272 : vector<16x16xi1>, vector<16x16xf32>
    %cst_96 = arith.constant dense<0.000000e+00> : vector<16xf32>
    %274 = vector.multi_reduction <add>, %273, %cst_96 [1] : vector<16x16xf32> to vector<16xf32>
    %275 = vector.shape_cast %274 : vector<16xf32> to vector<16x1xf32>
    %276 = tpu.concatenate %243, %247, %251, %255, %259, %263, %267, %271, %275 in 1 : vector<16x1xf32>, vector<16x1xf32>, vector<16x1xf32>, vector<16x1xf32>, vector<16x1xf32>, vector<16x1xf32>, vector<16x1xf32>, vector<16x1xf32>, vector<16x1xf32> -> vector<16x9xf32>
    %c0_97 = arith.constant 0 : index
    %c0_98 = arith.constant 0 : index
    %277 = vector.load %arg9[%c0_97, %c0_98] : memref<9x16xf32, #tpu.memory_space<vmem>>, vector<9x16xf32>
    %cst_99 = arith.constant dense<0.000000e+00> : vector<16x16xf32>
    %278 = tpu.matmul %276, %277, %cst_99 {dimension_numbers = #tpu.dot_dimension_numbers<[1], [0], [0], [1], [0, 0, 1, 1], [], []>} : vector<16x9xf32>, vector<9x16xf32>, vector<16x16xf32> -> vector<16x16xf32>
    %279 = arith.addf %239, %278 : vector<16x16xf32>
    %280 = tpu.concatenate %162, %279 in 1 : vector<16x16xf32>, vector<16x16xf32> -> vector<16x32xf32>
    %c0_100 = arith.constant 0 : index
    %c0_101 = arith.constant 0 : index
    %281 = vector.load %arg10[%c0_100, %c0_101] : memref<32x32xf32, #tpu.memory_space<vmem>>, vector<32x32xf32>
    %cst_102 = arith.constant dense<0.000000e+00> : vector<16x32xf32>
    %282 = tpu.matmul %280, %281, %cst_102 {dimension_numbers = #tpu.dot_dimension_numbers<[1], [0], [0], [1], [0, 0, 1, 1], [], []>} : vector<16x32xf32>, vector<32x32xf32>, vector<16x32xf32> -> vector<16x32xf32>
    %c0_103 = arith.constant 0 : index
    %c0_104 = arith.constant 0 : index
    %283 = vector.load %arg11[%c0_103, %c0_104] : memref<1x32xf32, #tpu.memory_space<vmem>>, vector<1x32xf32>
    %284 = vector.broadcast %283 : vector<1x32xf32> to vector<16x32xf32>
    %285 = arith.addf %282, %284 : vector<16x32xf32>
    %286 = arith.addf %16, %285 : vector<16x32xf32>
    %c0_105 = arith.constant 0 : index
    %c0_106 = arith.constant 0 : index
    %287 = vector.load %arg12[%c0_105, %c0_106] : memref<1x32xf32, #tpu.memory_space<vmem>>, vector<1x32xf32>
    %c0_107 = arith.constant 0 : index
    %c0_108 = arith.constant 0 : index
    %288 = vector.load %arg13[%c0_107, %c0_108] : memref<1x32xf32, #tpu.memory_space<vmem>>, vector<1x32xf32>
    %cst_109 = arith.constant dense<0.000000e+00> : vector<16xf32>
    %289 = vector.multi_reduction <add>, %286, %cst_109 [1] : vector<16x32xf32> to vector<16xf32>
    %290 = vector.shape_cast %289 : vector<16xf32> to vector<16x1xf32>
    %cst_110 = arith.constant 3.200000e+01 : f32
    %291 = vector.broadcast %cst_110 : f32 to vector<16x1xf32>
    %292 = arith.divf %290, %291 : vector<16x1xf32>
    %293 = vector.broadcast %292 : vector<16x1xf32> to vector<16x32xf32>
    %294 = arith.subf %286, %293 : vector<16x32xf32>
    %295 = arith.mulf %294, %294 : vector<16x32xf32>
    %cst_111 = arith.constant dense<0.000000e+00> : vector<16xf32>
    %296 = vector.multi_reduction <add>, %295, %cst_111 [1] : vector<16x32xf32> to vector<16xf32>
    %297 = vector.shape_cast %296 : vector<16xf32> to vector<16x1xf32>
    %cst_112 = arith.constant 3.200000e+01 : f32
    %298 = vector.broadcast %cst_112 : f32 to vector<16x1xf32>
    %299 = arith.divf %297, %298 : vector<16x1xf32>
    %cst_113 = arith.constant 9.99999974E-6 : f32
    %300 = vector.broadcast %cst_113 : f32 to vector<16x1xf32>
    %301 = arith.addf %299, %300 : vector<16x1xf32>
    %302 = math.rsqrt %301 : vector<16x1xf32>
    %303 = vector.broadcast %302 : vector<16x1xf32> to vector<16x32xf32>
    %304 = arith.mulf %294, %303 : vector<16x32xf32>
    %305 = vector.broadcast %287 : vector<1x32xf32> to vector<16x32xf32>
    %306 = arith.mulf %304, %305 : vector<16x32xf32>
    %307 = vector.broadcast %288 : vector<1x32xf32> to vector<16x32xf32>
    %308 = arith.addf %306, %307 : vector<16x32xf32>
    %309 = vector.broadcast %3 : vector<16x1xf32> to vector<16x32xf32>
    %310 = arith.mulf %308, %309 : vector<16x32xf32>
    %c0_114 = arith.constant 0 : index
    %c0_115 = arith.constant 0 : index
    %311 = vector.load %arg15[%c0_114, %c0_115] : memref<1x32xf32, #tpu.memory_space<vmem>>, vector<1x32xf32>
    %c2 = arith.constant 2 : index
    %c0_116 = arith.constant 0 : index
    %312 = vector.load %arg21[%c2, %c0_116] : memref<20x32xf32, #tpu.memory_space<vmem>>, vector<16x32xf32>
    tpu.vector_store %arg21[%c2, %c0_116], %310 {strides = array<i32>} : memref<20x32xf32, #tpu.memory_space<vmem>>, vector<16x32xf32>,
    %cst_117 = arith.constant 0.000000e+00 : f32
    %313 = vector.broadcast %cst_117 : f32 to vector<16x32xf32>
    %314 = vector.broadcast %311 : vector<1x32xf32> to vector<16x32xf32>
    %315 = arith.addf %313, %314 : vector<16x32xf32>
    %c0_118 = arith.constant 0 : index
    %c0_119 = arith.constant 0 : index
    %316 = vector.load %arg21[%c0_118, %c0_119] : memref<20x32xf32, #tpu.memory_space<vmem>>, vector<16x32xf32>
    %c0_120 = arith.constant 0 : index
    %c0_121 = arith.constant 0 : index
    %c0_122 = arith.constant 0 : index
    %317 = vector.load %arg14[%c0_120, %c0_121, %c0_122] : memref<5x32x32xf32, #tpu.memory_space<vmem>>, vector<1x32x32xf32>
    %318 = vector.shape_cast %317 : vector<1x32x32xf32> to vector<32x32xf32>
    %cst_123 = arith.constant dense<0.000000e+00> : vector<16x32xf32>
    %319 = tpu.matmul %316, %318, %cst_123 {dimension_numbers = #tpu.dot_dimension_numbers<[1], [0], [0], [1], [0, 0, 1, 1], [], []>} : vector<16x32xf32>, vector<32x32xf32>, vector<16x32xf32> -> vector<16x32xf32>
    %320 = arith.addf %315, %319 : vector<16x32xf32>
    %c1 = arith.constant 1 : index
    %c0_124 = arith.constant 0 : index
    %321 = vector.load %arg21[%c1, %c0_124] : memref<20x32xf32, #tpu.memory_space<vmem>>, vector<16x32xf32>
    %c1_125 = arith.constant 1 : index
    %c0_126 = arith.constant 0 : index
    %c0_127 = arith.constant 0 : index
    %322 = vector.load %arg14[%c1_125, %c0_126, %c0_127] : memref<5x32x32xf32, #tpu.memory_space<vmem>>, vector<1x32x32xf32>
    %323 = vector.shape_cast %322 : vector<1x32x32xf32> to vector<32x32xf32>
    %cst_128 = arith.constant dense<0.000000e+00> : vector<16x32xf32>
    %324 = tpu.matmul %321, %323, %cst_128 {dimension_numbers = #tpu.dot_dimension_numbers<[1], [0], [0], [1], [0, 0, 1, 1], [], []>} : vector<16x32xf32>, vector<32x32xf32>, vector<16x32xf32> -> vector<16x32xf32>
    %325 = arith.addf %320, %324 : vector<16x32xf32>
    %c2_129 = arith.constant 2 : index
    %c0_130 = arith.constant 0 : index
    %326 = vector.load %arg21[%c2_129, %c0_130] : memref<20x32xf32, #tpu.memory_space<vmem>>, vector<16x32xf32>
    %c2_131 = arith.constant 2 : index
    %c0_132 = arith.constant 0 : index
    %c0_133 = arith.constant 0 : index
    %327 = vector.load %arg14[%c2_131, %c0_132, %c0_133] : memref<5x32x32xf32, #tpu.memory_space<vmem>>, vector<1x32x32xf32>
    %328 = vector.shape_cast %327 : vector<1x32x32xf32> to vector<32x32xf32>
    %cst_134 = arith.constant dense<0.000000e+00> : vector<16x32xf32>
    %329 = tpu.matmul %326, %328, %cst_134 {dimension_numbers = #tpu.dot_dimension_numbers<[1], [0], [0], [1], [0, 0, 1, 1], [], []>} : vector<16x32xf32>, vector<32x32xf32>, vector<16x32xf32> -> vector<16x32xf32>
    %330 = arith.addf %325, %329 : vector<16x32xf32>
    %c3 = arith.constant 3 : index
    %c0_135 = arith.constant 0 : index
    %331 = vector.load %arg21[%c3, %c0_135] : memref<20x32xf32, #tpu.memory_space<vmem>>, vector<16x32xf32>
    %c3_136 = arith.constant 3 : index
    %c0_137 = arith.constant 0 : index
    %c0_138 = arith.constant 0 : index
    %332 = vector.load %arg14[%c3_136, %c0_137, %c0_138] : memref<5x32x32xf32, #tpu.memory_space<vmem>>, vector<1x32x32xf32>
    %333 = vector.shape_cast %332 : vector<1x32x32xf32> to vector<32x32xf32>
    %cst_139 = arith.constant dense<0.000000e+00> : vector<16x32xf32>
    %334 = tpu.matmul %331, %333, %cst_139 {dimension_numbers = #tpu.dot_dimension_numbers<[1], [0], [0], [1], [0, 0, 1, 1], [], []>} : vector<16x32xf32>, vector<32x32xf32>, vector<16x32xf32> -> vector<16x32xf32>
    %335 = arith.addf %330, %334 : vector<16x32xf32>
    %c4 = arith.constant 4 : index
    %c0_140 = arith.constant 0 : index
    %336 = vector.load %arg21[%c4, %c0_140] : memref<20x32xf32, #tpu.memory_space<vmem>>, vector<16x32xf32>
    %c4_141 = arith.constant 4 : index
    %c0_142 = arith.constant 0 : index
    %c0_143 = arith.constant 0 : index
    %337 = vector.load %arg14[%c4_141, %c0_142, %c0_143] : memref<5x32x32xf32, #tpu.memory_space<vmem>>, vector<1x32x32xf32>
    %338 = vector.shape_cast %337 : vector<1x32x32xf32> to vector<32x32xf32>
    %cst_144 = arith.constant dense<0.000000e+00> : vector<16x32xf32>
    %339 = tpu.matmul %336, %338, %cst_144 {dimension_numbers = #tpu.dot_dimension_numbers<[1], [0], [0], [1], [0, 0, 1, 1], [], []>} : vector<16x32xf32>, vector<32x32xf32>, vector<16x32xf32> -> vector<16x32xf32>
    %340 = arith.addf %335, %339 : vector<16x32xf32>
    %cst_145 = arith.constant 0.000000e+00 : f32
    %341 = vector.broadcast %cst_145 : f32 to vector<16x32xf32>
    %342 = arith.maximumf %340, %341 : vector<16x32xf32>
    %343 = vector.broadcast %3 : vector<16x1xf32> to vector<16x32xf32>
    %344 = arith.mulf %342, %343 : vector<16x32xf32>
    %c0_146 = arith.constant 0 : index
    %c0_147 = arith.constant 0 : index
    %345 = vector.load %arg17[%c0_146, %c0_147] : memref<1x32xf32, #tpu.memory_space<vmem>>, vector<1x32xf32>
    %c2_148 = arith.constant 2 : index
    %c0_149 = arith.constant 0 : index
    %346 = vector.load %arg21[%c2_148, %c0_149] : memref<20x32xf32, #tpu.memory_space<vmem>>, vector<16x32xf32>
    tpu.vector_store %arg21[%c2_148, %c0_149], %344 {strides = array<i32>} : memref<20x32xf32, #tpu.memory_space<vmem>>, vector<16x32xf32>,
    %cst_150 = arith.constant 0.000000e+00 : f32
    %347 = vector.broadcast %cst_150 : f32 to vector<16x32xf32>
    %348 = vector.broadcast %345 : vector<1x32xf32> to vector<16x32xf32>
    %349 = arith.addf %347, %348 : vector<16x32xf32>
    %c0_151 = arith.constant 0 : index
    %c0_152 = arith.constant 0 : index
    %350 = vector.load %arg21[%c0_151, %c0_152] : memref<20x32xf32, #tpu.memory_space<vmem>>, vector<16x32xf32>
    %c0_153 = arith.constant 0 : index
    %c0_154 = arith.constant 0 : index
    %c0_155 = arith.constant 0 : index
    %351 = vector.load %arg16[%c0_153, %c0_154, %c0_155] : memref<5x32x32xf32, #tpu.memory_space<vmem>>, vector<1x32x32xf32>
    %352 = vector.shape_cast %351 : vector<1x32x32xf32> to vector<32x32xf32>
    %cst_156 = arith.constant dense<0.000000e+00> : vector<16x32xf32>
    %353 = tpu.matmul %350, %352, %cst_156 {dimension_numbers = #tpu.dot_dimension_numbers<[1], [0], [0], [1], [0, 0, 1, 1], [], []>} : vector<16x32xf32>, vector<32x32xf32>, vector<16x32xf32> -> vector<16x32xf32>
    %354 = arith.addf %349, %353 : vector<16x32xf32>
    %c1_157 = arith.constant 1 : index
    %c0_158 = arith.constant 0 : index
    %355 = vector.load %arg21[%c1_157, %c0_158] : memref<20x32xf32, #tpu.memory_space<vmem>>, vector<16x32xf32>
    %c1_159 = arith.constant 1 : index
    %c0_160 = arith.constant 0 : index
    %c0_161 = arith.constant 0 : index
    %356 = vector.load %arg16[%c1_159, %c0_160, %c0_161] : memref<5x32x32xf32, #tpu.memory_space<vmem>>, vector<1x32x32xf32>
    %357 = vector.shape_cast %356 : vector<1x32x32xf32> to vector<32x32xf32>
    %cst_162 = arith.constant dense<0.000000e+00> : vector<16x32xf32>
    %358 = tpu.matmul %355, %357, %cst_162 {dimension_numbers = #tpu.dot_dimension_numbers<[1], [0], [0], [1], [0, 0, 1, 1], [], []>} : vector<16x32xf32>, vector<32x32xf32>, vector<16x32xf32> -> vector<16x32xf32>
    %359 = arith.addf %354, %358 : vector<16x32xf32>
    %c2_163 = arith.constant 2 : index
    %c0_164 = arith.constant 0 : index
    %360 = vector.load %arg21[%c2_163, %c0_164] : memref<20x32xf32, #tpu.memory_space<vmem>>, vector<16x32xf32>
    %c2_165 = arith.constant 2 : index
    %c0_166 = arith.constant 0 : index
    %c0_167 = arith.constant 0 : index
    %361 = vector.load %arg16[%c2_165, %c0_166, %c0_167] : memref<5x32x32xf32, #tpu.memory_space<vmem>>, vector<1x32x32xf32>
    %362 = vector.shape_cast %361 : vector<1x32x32xf32> to vector<32x32xf32>
    %cst_168 = arith.constant dense<0.000000e+00> : vector<16x32xf32>
    %363 = tpu.matmul %360, %362, %cst_168 {dimension_numbers = #tpu.dot_dimension_numbers<[1], [0], [0], [1], [0, 0, 1, 1], [], []>} : vector<16x32xf32>, vector<32x32xf32>, vector<16x32xf32> -> vector<16x32xf32>
    %364 = arith.addf %359, %363 : vector<16x32xf32>
    %c3_169 = arith.constant 3 : index
    %c0_170 = arith.constant 0 : index
    %365 = vector.load %arg21[%c3_169, %c0_170] : memref<20x32xf32, #tpu.memory_space<vmem>>, vector<16x32xf32>
    %c3_171 = arith.constant 3 : index
    %c0_172 = arith.constant 0 : index
    %c0_173 = arith.constant 0 : index
    %366 = vector.load %arg16[%c3_171, %c0_172, %c0_173] : memref<5x32x32xf32, #tpu.memory_space<vmem>>, vector<1x32x32xf32>
    %367 = vector.shape_cast %366 : vector<1x32x32xf32> to vector<32x32xf32>
    %cst_174 = arith.constant dense<0.000000e+00> : vector<16x32xf32>
    %368 = tpu.matmul %365, %367, %cst_174 {dimension_numbers = #tpu.dot_dimension_numbers<[1], [0], [0], [1], [0, 0, 1, 1], [], []>} : vector<16x32xf32>, vector<32x32xf32>, vector<16x32xf32> -> vector<16x32xf32>
    %369 = arith.addf %364, %368 : vector<16x32xf32>
    %c4_175 = arith.constant 4 : index
    %c0_176 = arith.constant 0 : index
    %370 = vector.load %arg21[%c4_175, %c0_176] : memref<20x32xf32, #tpu.memory_space<vmem>>, vector<16x32xf32>
    %c4_177 = arith.constant 4 : index
    %c0_178 = arith.constant 0 : index
    %c0_179 = arith.constant 0 : index
    %371 = vector.load %arg16[%c4_177, %c0_178, %c0_179] : memref<5x32x32xf32, #tpu.memory_space<vmem>>, vector<1x32x32xf32>
    %372 = vector.shape_cast %371 : vector<1x32x32xf32> to vector<32x32xf32>
    %cst_180 = arith.constant dense<0.000000e+00> : vector<16x32xf32>
    %373 = tpu.matmul %370, %372, %cst_180 {dimension_numbers = #tpu.dot_dimension_numbers<[1], [0], [0], [1], [0, 0, 1, 1], [], []>} : vector<16x32xf32>, vector<32x32xf32>, vector<16x32xf32> -> vector<16x32xf32>
    %374 = arith.addf %369, %373 : vector<16x32xf32>
    %375 = vector.broadcast %3 : vector<16x1xf32> to vector<16x32xf32>
    %376 = arith.mulf %374, %375 : vector<16x32xf32>
    %377 = arith.addf %308, %376 : vector<16x32xf32>
    %c0_181 = arith.constant 0 : index
    %c0_182 = arith.constant 0 : index
    %378 = vector.load %arg18[%c0_181, %c0_182] : memref<1x32xf32, #tpu.memory_space<vmem>>, vector<1x32xf32>
    %c0_183 = arith.constant 0 : index
    %c0_184 = arith.constant 0 : index
    %379 = vector.load %arg19[%c0_183, %c0_184] : memref<1x32xf32, #tpu.memory_space<vmem>>, vector<1x32xf32>
    %cst_185 = arith.constant dense<0.000000e+00> : vector<16xf32>
    %380 = vector.multi_reduction <add>, %377, %cst_185 [1] : vector<16x32xf32> to vector<16xf32>
    %381 = vector.shape_cast %380 : vector<16xf32> to vector<16x1xf32>
    %cst_186 = arith.constant 3.200000e+01 : f32
    %382 = vector.broadcast %cst_186 : f32 to vector<16x1xf32>
    %383 = arith.divf %381, %382 : vector<16x1xf32>
    %384 = vector.broadcast %383 : vector<16x1xf32> to vector<16x32xf32>
    %385 = arith.subf %377, %384 : vector<16x32xf32>
    %386 = arith.mulf %385, %385 : vector<16x32xf32>
    %cst_187 = arith.constant dense<0.000000e+00> : vector<16xf32>
    %387 = vector.multi_reduction <add>, %386, %cst_187 [1] : vector<16x32xf32> to vector<16xf32>
    %388 = vector.shape_cast %387 : vector<16xf32> to vector<16x1xf32>
    %cst_188 = arith.constant 3.200000e+01 : f32
    %389 = vector.broadcast %cst_188 : f32 to vector<16x1xf32>
    %390 = arith.divf %388, %389 : vector<16x1xf32>
    %cst_189 = arith.constant 9.99999974E-6 : f32
    %391 = vector.broadcast %cst_189 : f32 to vector<16x1xf32>
    %392 = arith.addf %390, %391 : vector<16x1xf32>
    %393 = math.rsqrt %392 : vector<16x1xf32>
    %394 = vector.broadcast %393 : vector<16x1xf32> to vector<16x32xf32>
    %395 = arith.mulf %385, %394 : vector<16x32xf32>
    %396 = vector.broadcast %378 : vector<1x32xf32> to vector<16x32xf32>
    %397 = arith.mulf %395, %396 : vector<16x32xf32>
    %398 = vector.broadcast %379 : vector<1x32xf32> to vector<16x32xf32>
    %399 = arith.addf %397, %398 : vector<16x32xf32>
    %400 = vector.broadcast %3 : vector<16x1xf32> to vector<16x32xf32>
    %401 = arith.mulf %399, %400 : vector<16x32xf32>
    %402 = arith.addf %14, %401 : vector<16x32xf32>
    %c0_190 = arith.constant 0 : index
    %c0_191 = arith.constant 0 : index
    %c0_192 = arith.constant 0 : index
    %403 = vector.load %arg20[%c0_190, %c0_191, %c0_192] : memref<1x16x32xf32, #tpu.memory_space<vmem>>, vector<1x16x32xf32>
    %404 = vector.shape_cast %403 : vector<1x16x32xf32> to vector<16x32xf32>
    %405 = vector.shape_cast %402 : vector<16x32xf32> to vector<1x16x32xf32>
    tpu.vector_store %arg20[%c0_190, %c0_191, %c0_192], %405 {strides = array<i32>} : memref<1x16x32xf32, #tpu.memory_space<vmem>>, vector<1x16x32xf32>,
    return
  }
  func.func @transform_0(%arg0: i32) -> (i32, i32, i32) {
    %c0_i32 = arith.constant 0 : i32
    %c0_i32_0 = arith.constant 0 : i32
    %c0_i32_1 = arith.constant 0 : i32
    return %arg0, %c0_i32, %c0_i32_0 : i32, i32, i32
  }
  func.func @transform_1(%arg0: i32) -> (i32, i32, i32) {
    %c0_i32 = arith.constant 0 : i32
    %c0_i32_0 = arith.constant 0 : i32
    %c0_i32_1 = arith.constant 0 : i32
    return %arg0, %c0_i32, %c0_i32_0 : i32, i32, i32
  }
  func.func @transform_2(%arg0: i32) -> (i32, i32, i32) {
    %c0_i32 = arith.constant 0 : i32
    %c0_i32_0 = arith.constant 0 : i32
    %c0_i32_1 = arith.constant 0 : i32
    return %arg0, %c0_i32, %c0_i32_0 : i32, i32, i32
  }
  func.func @transform_3(%arg0: i32) -> (i32, i32) {
    %c0_i32 = arith.constant 0 : i32
    %c0_i32_0 = arith.constant 0 : i32
    %c0_i32_1 = arith.constant 0 : i32
    return %c0_i32, %c0_i32_0 : i32, i32
  }
  func.func @transform_4(%arg0: i32) -> (i32, i32) {
    %c0_i32 = arith.constant 0 : i32
    %c0_i32_0 = arith.constant 0 : i32
    %c0_i32_1 = arith.constant 0 : i32
    return %c0_i32, %c0_i32_0 : i32, i32
  }
  func.func @transform_5(%arg0: i32) -> (i32, i32) {
    %c0_i32 = arith.constant 0 : i32
    %c0_i32_0 = arith.constant 0 : i32
    %c0_i32_1 = arith.constant 0 : i32
    return %c0_i32, %c0_i32_0 : i32, i32
  }
  func.func @transform_6(%arg0: i32) -> (i32, i32) {
    %c0_i32 = arith.constant 0 : i32
    %c0_i32_0 = arith.constant 0 : i32
    %c0_i32_1 = arith.constant 0 : i32
    return %c0_i32, %c0_i32_0 : i32, i32
  }
  func.func @transform_7(%arg0: i32) -> (i32, i32) {
    %c0_i32 = arith.constant 0 : i32
    %c0_i32_0 = arith.constant 0 : i32
    %c0_i32_1 = arith.constant 0 : i32
    return %c0_i32, %c0_i32_0 : i32, i32
  }
  func.func @transform_8(%arg0: i32) -> (i32, i32) {
    %c0_i32 = arith.constant 0 : i32
    %c0_i32_0 = arith.constant 0 : i32
    %c0_i32_1 = arith.constant 0 : i32
    return %c0_i32, %c0_i32_0 : i32, i32
  }
  func.func @transform_9(%arg0: i32) -> (i32, i32) {
    %c0_i32 = arith.constant 0 : i32
    %c0_i32_0 = arith.constant 0 : i32
    %c0_i32_1 = arith.constant 0 : i32
    return %c0_i32, %c0_i32_0 : i32, i32
  }
  func.func @transform_10(%arg0: i32) -> (i32, i32) {
    %c0_i32 = arith.constant 0 : i32
    %c0_i32_0 = arith.constant 0 : i32
    %c0_i32_1 = arith.constant 0 : i32
    return %c0_i32, %c0_i32_0 : i32, i32
  }
  func.func @transform_11(%arg0: i32) -> (i32, i32) {
    %c0_i32 = arith.constant 0 : i32
    %c0_i32_0 = arith.constant 0 : i32
    %c0_i32_1 = arith.constant 0 : i32
    return %c0_i32, %c0_i32_0 : i32, i32
  }
  func.func @transform_12(%arg0: i32) -> (i32, i32) {
    %c0_i32 = arith.constant 0 : i32
    %c0_i32_0 = arith.constant 0 : i32
    %c0_i32_1 = arith.constant 0 : i32
    return %c0_i32, %c0_i32_0 : i32, i32
  }
  func.func @transform_13(%arg0: i32) -> (i32, i32, i32) {
    %c0_i32 = arith.constant 0 : i32
    %c0_i32_0 = arith.constant 0 : i32
    %c0_i32_1 = arith.constant 0 : i32
    %c0_i32_2 = arith.constant 0 : i32
    return %c0_i32, %c0_i32_0, %c0_i32_1 : i32, i32, i32
  }
  func.func @transform_14(%arg0: i32) -> (i32, i32) {
    %c0_i32 = arith.constant 0 : i32
    %c0_i32_0 = arith.constant 0 : i32
    %c0_i32_1 = arith.constant 0 : i32
    return %c0_i32, %c0_i32_0 : i32, i32
  }
  func.func @transform_15(%arg0: i32) -> (i32, i32, i32) {
    %c0_i32 = arith.constant 0 : i32
    %c0_i32_0 = arith.constant 0 : i32
    %c0_i32_1 = arith.constant 0 : i32
    %c0_i32_2 = arith.constant 0 : i32
    return %c0_i32, %c0_i32_0, %c0_i32_1 : i32, i32, i32
  }
  func.func @transform_16(%arg0: i32) -> (i32, i32) {
    %c0_i32 = arith.constant 0 : i32
    %c0_i32_0 = arith.constant 0 : i32
    %c0_i32_1 = arith.constant 0 : i32
    return %c0_i32, %c0_i32_0 : i32, i32
  }
  func.func @transform_17(%arg0: i32) -> (i32, i32) {
    %c0_i32 = arith.constant 0 : i32
    %c0_i32_0 = arith.constant 0 : i32
    %c0_i32_1 = arith.constant 0 : i32
    return %c0_i32, %c0_i32_0 : i32, i32
  }
  func.func @transform_18(%arg0: i32) -> (i32, i32) {
    %c0_i32 = arith.constant 0 : i32
    %c0_i32_0 = arith.constant 0 : i32
    %c0_i32_1 = arith.constant 0 : i32
    return %c0_i32, %c0_i32_0 : i32, i32
  }
  func.func @transform_19(%arg0: i32) -> (i32, i32, i32) {
    %c0_i32 = arith.constant 0 : i32
    %c0_i32_0 = arith.constant 0 : i32
    %c0_i32_1 = arith.constant 0 : i32
    return %arg0, %c0_i32, %c0_i32_0 : i32, i32, i32
  }
}

</mosaic_0001>

<llo_original>
// kernel: tpu_custom_call.1
$region0: #{tpu_custom_call.1}
  #allocation0 [shape = 'u32[]', space=smem, size = 0x4, offset = 0x4, fixed_abs, tag = 'smem constant byte address 0x4 - core index']
  #allocation1 [shape = 'u32[72,128]{1,0:T(1,128)}', space=vmem, size = 0x9000, scoped, tag = 'internal scratch']
  #allocation2 [shape = 'f32[20,32]{1,0:T(8,128)}', space=vmem, size = 0x3000, scoped, tag = 'scratch operand']
  %s0 = inlined_call_operand.vmem [shape: f32[2,16,4], index: 0, kind: input, shape index: {}]
  %s1 = inlined_call_operand.vmem [shape: f32[2,16,1], index: 1, kind: input, shape index: {}]
  %s2 = inlined_call_operand.vmem [shape: f32[2,1,16], index: 2, kind: input, shape index: {}]
  %s3 = inlined_call_operand.vmem [shape: f32[4,32], index: 3, kind: input, shape index: {}]
  %s4 = inlined_call_operand.vmem [shape: f32[1,32], index: 4, kind: input, shape index: {}]
  %s5 = inlined_call_operand.vmem [shape: f32[32,96], index: 5, kind: input, shape index: {}]
  %s6 = inlined_call_operand.vmem [shape: f32[1,96], index: 6, kind: input, shape index: {}]
  %s7 = inlined_call_operand.hbm [shape: f32[16,9], index: 7, kind: input, shape index: {}]
  %s8 = inlined_call_operand.hbm [shape: f32[9,16], index: 8, kind: input, shape index: {}]
  %s9 = inlined_call_operand.vmem [shape: f32[32,32], index: 9, kind: input, shape index: {}]
  %s10 = inlined_call_operand.vmem [shape: f32[1,32], index: 10, kind: input, shape index: {}]
  %s11 = inlined_call_operand.vmem [shape: f32[1,32], index: 11, kind: input, shape index: {}]
  %s12 = inlined_call_operand.vmem [shape: f32[1,32], index: 12, kind: input, shape index: {}]
  %s13 = inlined_call_operand.hbm [shape: f32[5,32,32], index: 13, kind: input, shape index: {}]
  %s14 = inlined_call_operand.vmem [shape: f32[1,32], index: 14, kind: input, shape index: {}]
  %s15 = inlined_call_operand.hbm [shape: f32[5,32,32], index: 15, kind: input, shape index: {}]
  %s16 = inlined_call_operand.vmem [shape: f32[1,32], index: 16, kind: input, shape index: {}]
  %s17 = inlined_call_operand.vmem [shape: f32[1,32], index: 17, kind: input, shape index: {}]
  %s18 = inlined_call_operand.vmem [shape: f32[1,32], index: 18, kind: input, shape index: {}]
  %s19 = inlined_call_operand.hbm [shape: f32[2,16,32], index: 19, kind: output, shape index: {}]
  %s20 = sld [smem:[#allocation0]]
  $region125: #{tpu_custom_call.1} parent=0
    _
  %s22 = ssub.s32 1, %s20
  %s23 = scalar_select 0, %s22, %s20
  $region1: #{tpu_custom_call.1} parent=0
    #allocation3 [shape = 'u8[8192]{0}', space=vmem, size = 0x2000, scoped, tag = 'input window, operand 7, single buffered']
    #allocation4 [shape = 's32[2]{0}', space=sflag, size = 0x8, scoped, tag = 'scoped memory for tpu_custom_call.1']
    #allocation5 [shape = 's32[2]{0}', space=sflag, size = 0x8, scoped, tag = 'scoped memory for tpu_custom_call.1']
    #allocation6 [shape = 'u8[8192]{0}', space=vmem, size = 0x2000, scoped, tag = 'input window, operand 8, single buffered']
    #allocation7 [shape = 's32[1]{0}', space=sflag, size = 0x4, scoped, tag = 'scoped memory for tpu_custom_call.1']
    #allocation8 [shape = 'u8[81920]{0}', space=vmem, size = 0x14000, scoped, tag = 'input window, operand 13, single buffered']
    #allocation9 [shape = 'u8[81920]{0}', space=vmem, size = 0x14000, scoped, tag = 'input window, operand 15, single buffered']
    #allocation10 [shape = 's32[1]{0}', space=sflag, size = 0x4, scoped, tag = 'scoped memory for tpu_custom_call.1']
    #allocation11 [shape = 'u8[16384]{0}', space=vmem, size = 0x4000, scoped, tag = 'output window, operand 0']
    %24 = vsyncpa [#allocation4], 0
    %25 = vsyncpa [#allocation7], 0
    %26 = vsyncpa [#allocation10], 0
    %27 = vsyncpa [#allocation5], 0
    %s28 = scalar_lea.sflag [#allocation5], 1
    %29 = vsyncpa %s28, 0
    loop: start=0, step=1, limit=4
    $region2: #{tpu_custom_call.1} parent=1 // loop_pre_header
      _
    $region3: #{tpu_custom_call.1} parent=1 // loop_header
      %s31 = sphi 0, %s35
      %p32 = scmp.ge.s32.totalorder %s31, 4
      %s41 = sphi 0, %s43
      %s44 = sphi 0, %s41
      %s45 = sphi 0, %s44
      %s61 = sphi 0, %s45
      %s67 = sphi 0, %s69
      %s70 = sphi 0, %s67
      %s71 = sphi 0, %s70
      %s87 = sphi 0, %s71
      %s93 = sphi 0, %s95
      %s96 = sphi 0, %s93
      %s97 = sphi 0, %s96
      %s113 = sphi 0, %s97
      %s117 = sphi 0, %s117
      %s119 = sphi 0, %s117
      %s120 = sphi 0, %s119
      %s134 = sphi 0, %s120
      %s138 = sphi 0, %s138
      %s140 = sphi 0, %s138
      %s141 = sphi 0, %s140
      %s155 = sphi 0, %s141
      %s159 = sphi 0, %s159
      %s161 = sphi 0, %s159
      %s162 = sphi 0, %s161
      %s176 = sphi 0, %s162
      %s180 = sphi 0, %s180
      %s182 = sphi 0, %s180
      %s183 = sphi 0, %s182
      %s197 = sphi 0, %s183
      %s201 = sphi 0, %s201
      %s203 = sphi 0, %s201
      %s204 = sphi 0, %s203
      %s218 = sphi 0, %s204
      %s222 = sphi 0, %s222
      %s224 = sphi 0, %s222
      %s225 = sphi 0, %s224
      %s239 = sphi 0, %s225
      %s243 = sphi 0, %s243
      %s245 = sphi 0, %s243
      %s246 = sphi 0, %s245
      %s260 = sphi 0, %s246
      %s264 = sphi 0, %s264
      %s266 = sphi 0, %s264
      %s267 = sphi 0, %s266
      %s281 = sphi 0, %s267
      %s285 = sphi 0, %s285
      %s287 = sphi 0, %s285
      %s288 = sphi 0, %s287
      %s302 = sphi 0, %s288
      %s306 = sphi 0, %s306
      %s308 = sphi 0, %s306
      %s309 = sphi 0, %s308
      %s323 = sphi 0, %s309
      %s327 = sphi 0, %s327
      %s329 = sphi 0, %s327
      %s330 = sphi 0, %s329
      %s344 = sphi 0, %s330
      %s348 = sphi 0, %s348
      %s350 = sphi 0, %s348
      %s351 = sphi 0, %s350
      %s365 = sphi 0, %s351
      %s369 = sphi 0, %s369
      %s371 = sphi 0, %s369
      %s372 = sphi 0, %s371
      %s386 = sphi 0, %s372
      %s390 = sphi 0, %s390
      %s392 = sphi 0, %s390
      %s393 = sphi 0, %s392
      %s407 = sphi 0, %s393
      %s411 = sphi 0, %s411
      %s413 = sphi 0, %s411
      %s414 = sphi 0, %s413
      %s428 = sphi 0, %s414
      %s432 = sphi 0, %s432
      %s434 = sphi 0, %s432
      %s435 = sphi 0, %s434
      %s449 = sphi 0, %s435
      %s455 = sphi 0, %s457
      %s458 = sphi 0, %s455
      %s459 = sphi 0, %s458
      %s475 = sphi 0, %s459
    $region4: #{tpu_custom_call.1} parent=1 // loop_header_branch
      %34 = sbr.rel (%p32) target = $region8
    $region5: #{tpu_custom_call.1} parent=1 // loop_body
      %s36 = ssub.s32 %s31, 1
      %s37 = ssub.s32 %s31, 2
      %s38 = sadd.s32 %s31, 1
      %s39 = ssub.s32 %s31, %s38
      %p40 = scmp.eq.s32.totalorder %s39, 0
      %s42 = sadd.s32 %s41, 1
      %s43 = scalar_select %p40, %s41, %s42
      %p46 = pneg %p40
      %p47 = scmp.eq.s32.totalorder %s31, 1
      %p48 = por %p46, %p47
      %p49 = scmp.ne.s32.totalorder %s41, %s44
      %p50 = scmp.eq.s32.totalorder %s31, 0
      %p51 = por %p49, %p50
      %p52 = scmp.ne.s32.totalorder %s41, %s44
      %p53 = scmp.eq.s32.totalorder %s36, 1
      %p54 = por %p52, %p53
      %p55 = scmp.ne.s32.totalorder %s44, %s45
      %p56 = scmp.eq.s32.totalorder %s36, 0
      %p57 = por %p55, %p56
      %p58 = scmp.ne.s32.totalorder %s44, %s45
      %p59 = scmp.eq.s32.totalorder %s37, 1
      %p60 = por %p58, %p59
      %p62 = scmp.ne.s32.totalorder %s45, %s61
      %p63 = scmp.eq.s32.totalorder %s37, 0
      %p64 = por %p62, %p63
      %s65 = ssub.s32 %s31, %s38
      %p66 = scmp.eq.s32.totalorder %s65, 0
      %s68 = sadd.s32 %s67, 1
      %s69 = scalar_select %p66, %s67, %s68
      %p72 = pneg %p66
      %p73 = scmp.eq.s32.totalorder %s31, 1
      %p74 = por %p72, %p73
      %p75 = scmp.ne.s32.totalorder %s67, %s70
      %p76 = scmp.eq.s32.totalorder %s31, 0
      %p77 = por %p75, %p76
      %p78 = scmp.ne.s32.totalorder %s67, %s70
      %p79 = scmp.eq.s32.totalorder %s36, 1
      %p80 = por %p78, %p79
      %p81 = scmp.ne.s32.totalorder %s70, %s71
      %p82 = scmp.eq.s32.totalorder %s36, 0
      %p83 = por %p81, %p82
      %p84 = scmp.ne.s32.totalorder %s70, %s71
      %p85 = scmp.eq.s32.totalorder %s37, 1
      %p86 = por %p84, %p85
      %p88 = scmp.ne.s32.totalorder %s71, %s87
      %p89 = scmp.eq.s32.totalorder %s37, 0
      %p90 = por %p88, %p89
      %s91 = ssub.s32 %s31, %s38
      %p92 = scmp.eq.s32.totalorder %s91, 0
      %s94 = sadd.s32 %s93, 1
      %s95 = scalar_select %p92, %s93, %s94
      %p98 = pneg %p92
      %p99 = scmp.eq.s32.totalorder %s31, 1
      %p100 = por %p98, %p99
      %p101 = scmp.ne.s32.totalorder %s93, %s96
      %p102 = scmp.eq.s32.totalorder %s31, 0
      %p103 = por %p101, %p102
      %p104 = scmp.ne.s32.totalorder %s93, %s96
      %p105 = scmp.eq.s32.totalorder %s36, 1
      %p106 = por %p104, %p105
      %p107 = scmp.ne.s32.totalorder %s96, %s97
      %p108 = scmp.eq.s32.totalorder %s36, 0
      %p109 = por %p107, %p108
      %p110 = scmp.ne.s32.totalorder %s96, %s97
      %p111 = scmp.eq.s32.totalorder %s37, 1
      %p112 = por %p110, %p111
      %p114 = scmp.ne.s32.totalorder %s97, %s113
      %p115 = scmp.eq.s32.totalorder %s37, 0
      %p116 = por %p114, %p115
      %s118 = sadd.s32 %s117, 1
      %p121 = scmp.eq.s32.totalorder %s31, 1
      %p122 = scmp.ne.s32.totalorder %s117, %s119
      %p123 = scmp.eq.s32.totalorder %s31, 0
      %p124 = por %p122, %p123
      %p125 = scmp.ne.s32.totalorder %s117, %s119
      %p126 = scmp.eq.s32.totalorder %s36, 1
      %p127 = por %p125, %p126
      %p128 = scmp.ne.s32.totalorder %s119, %s120
      %p129 = scmp.eq.s32.totalorder %s36, 0
      %p130 = por %p128, %p129
      %p131 = scmp.ne.s32.totalorder %s119, %s120
      %p132 = scmp.eq.s32.totalorder %s37, 1
      %p133 = por %p131, %p132
      %p135 = scmp.ne.s32.totalorder %s120, %s134
      %p136 = scmp.eq.s32.totalorder %s37, 0
      %p137 = por %p135, %p136
      %s139 = sadd.s32 %s138, 1
      %p142 = scmp.eq.s32.totalorder %s31, 1
      %p143 = scmp.ne.s32.totalorder %s138, %s140
      %p144 = scmp.eq.s32.totalorder %s31, 0
      %p145 = por %p143, %p144
      %p146 = scmp.ne.s32.totalorder %s138, %s140
      %p147 = scmp.eq.s32.totalorder %s36, 1
      %p148 = por %p146, %p147
      %p149 = scmp.ne.s32.totalorder %s140, %s141
      %p150 = scmp.eq.s32.totalorder %s36, 0
      %p151 = por %p149, %p150
      %p152 = scmp.ne.s32.totalorder %s140, %s141
      %p153 = scmp.eq.s32.totalorder %s37, 1
      %p154 = por %p152, %p153
      %p156 = scmp.ne.s32.totalorder %s141, %s155
      %p157 = scmp.eq.s32.totalorder %s37, 0
      %p158 = por %p156, %p157
      %s160 = sadd.s32 %s159, 1
      %p163 = scmp.eq.s32.totalorder %s31, 1
      %p164 = scmp.ne.s32.totalorder %s159, %s161
      %p165 = scmp.eq.s32.totalorder %s31, 0
      %p166 = por %p164, %p165
      %p167 = scmp.ne.s32.totalorder %s159, %s161
      %p168 = scmp.eq.s32.totalorder %s36, 1
      %p169 = por %p167, %p168
      %p170 = scmp.ne.s32.totalorder %s161, %s162
      %p171 = scmp.eq.s32.totalorder %s36, 0
      %p172 = por %p170, %p171
      %p173 = scmp.ne.s32.totalorder %s161, %s162
      %p174 = scmp.eq.s32.totalorder %s37, 1
      %p175 = por %p173, %p174
      %p177 = scmp.ne.s32.totalorder %s162, %s176
      %p178 = scmp.eq.s32.totalorder %s37, 0
      %p179 = por %p177, %p178
      %s181 = sadd.s32 %s180, 1
      %p184 = scmp.eq.s32.totalorder %s31, 1
      %p185 = scmp.ne.s32.totalorder %s180, %s182
      %p186 = scmp.eq.s32.totalorder %s31, 0
      %p187 = por %p185, %p186
      %p188 = scmp.ne.s32.totalorder %s180, %s182
      %p189 = scmp.eq.s32.totalorder %s36, 1
      %p190 = por %p188, %p189
      %p191 = scmp.ne.s32.totalorder %s182, %s183
      %p192 = scmp.eq.s32.totalorder %s36, 0
      %p193 = por %p191, %p192
      %p194 = scmp.ne.s32.totalorder %s182, %s183
      %p195 = scmp.eq.s32.totalorder %s37, 1
      %p196 = por %p194, %p195
      %p198 = scmp.ne.s32.totalorder %s183, %s197
      %p199 = scmp.eq.s32.totalorder %s37, 0
      %p200 = por %p198, %p199
      %s202 = sadd.s32 %s201, 1
      %p205 = scmp.eq.s32.totalorder %s31, 1
      %p206 = scmp.ne.s32.totalorder %s201, %s203
      %p207 = scmp.eq.s32.totalorder %s31, 0
      %p208 = por %p206, %p207
      %p209 = scmp.ne.s32.totalorder %s201, %s203
      %p210 = scmp.eq.s32.totalorder %s36, 1
      %p211 = por %p209, %p210
      %p212 = scmp.ne.s32.totalorder %s203, %s204
      %p213 = scmp.eq.s32.totalorder %s36, 0
      %p214 = por %p212, %p213
      %p215 = scmp.ne.s32.totalorder %s203, %s204
      %p216 = scmp.eq.s32.totalorder %s37, 1
      %p217 = por %p215, %p216
      %p219 = scmp.ne.s32.totalorder %s204, %s218
      %p220 = scmp.eq.s32.totalorder %s37, 0
      %p221 = por %p219, %p220
      %s223 = sadd.s32 %s222, 1
      %p226 = scmp.eq.s32.totalorder %s31, 1
      %p227 = scmp.ne.s32.totalorder %s222, %s224
      %p228 = scmp.eq.s32.totalorder %s31, 0
      %p229 = por %p227, %p228
      %p230 = scmp.ne.s32.totalorder %s222, %s224
      %p231 = scmp.eq.s32.totalorder %s36, 1
      %p232 = por %p230, %p231
      %p233 = scmp.ne.s32.totalorder %s224, %s225
      %p234 = scmp.eq.s32.totalorder %s36, 0
      %p235 = por %p233, %p234
      %p236 = scmp.ne.s32.totalorder %s224, %s225
      %p237 = scmp.eq.s32.totalorder %s37, 1
      %p238 = por %p236, %p237
      %p240 = scmp.ne.s32.totalorder %s225, %s239
      %p241 = scmp.eq.s32.totalorder %s37, 0
      %p242 = por %p240, %p241
      %s244 = sadd.s32 %s243, 1
      %p247 = scmp.eq.s32.totalorder %s31, 1
      %p248 = scmp.ne.s32.totalorder %s243, %s245
      %p249 = scmp.eq.s32.totalorder %s31, 0
      %p250 = por %p248, %p249
      %p251 = scmp.ne.s32.totalorder %s243, %s245
      %p252 = scmp.eq.s32.totalorder %s36, 1
      %p253 = por %p251, %p252
      %p254 = scmp.ne.s32.totalorder %s245, %s246
      %p255 = scmp.eq.s32.totalorder %s36, 0
      %p256 = por %p254, %p255
      %p257 = scmp.ne.s32.totalorder %s245, %s246
      %p258 = scmp.eq.s32.totalorder %s37, 1
      %p259 = por %p257, %p258
      %p261 = scmp.ne.s32.totalorder %s246, %s260
      %p262 = scmp.eq.s32.totalorder %s37, 0
      %p263 = por %p261, %p262
      %s265 = sadd.s32 %s264, 1
      %p268 = scmp.eq.s32.totalorder %s31, 1
      %p269 = scmp.ne.s32.totalorder %s264, %s266
      %p270 = scmp.eq.s32.totalorder %s31, 0
      %p271 = por %p269, %p270
      %p272 = scmp.ne.s32.totalorder %s264, %s266
      %p273 = scmp.eq.s32.totalorder %s36, 1
      %p274 = por %p272, %p273
      %p275 = scmp.ne.s32.totalorder %s266, %s267
      %p276 = scmp.eq.s32.totalorder %s36, 0
      %p277 = por %p275, %p276
      %p278 = scmp.ne.s32.totalorder %s266, %s267
      %p279 = scmp.eq.s32.totalorder %s37, 1
      %p280 = por %p278, %p279
      %p282 = scmp.ne.s32.totalorder %s267, %s281
      %p283 = scmp.eq.s32.totalorder %s37, 0
      %p284 = por %p282, %p283
      %s286 = sadd.s32 %s285, 1
      %p289 = scmp.eq.s32.totalorder %s31, 1
      %p290 = scmp.ne.s32.totalorder %s285, %s287
      %p291 = scmp.eq.s32.totalorder %s31, 0
      %p292 = por %p290, %p291
      %p293 = scmp.ne.s32.totalorder %s285, %s287
      %p294 = scmp.eq.s32.totalorder %s36, 1
      %p295 = por %p293, %p294
      %p296 = scmp.ne.s32.totalorder %s287, %s288
      %p297 = scmp.eq.s32.totalorder %s36, 0
      %p298 = por %p296, %p297
      %p299 = scmp.ne.s32.totalorder %s287, %s288
      %p300 = scmp.eq.s32.totalorder %s37, 1
      %p301 = por %p299, %p300
      %p303 = scmp.ne.s32.totalorder %s288, %s302
      %p304 = scmp.eq.s32.totalorder %s37, 0
      %p305 = por %p303, %p304
      %s307 = sadd.s32 %s306, 1
      %p310 = scmp.eq.s32.totalorder %s31, 1
      %p311 = scmp.ne.s32.totalorder %s306, %s308
      %p312 = scmp.eq.s32.totalorder %s31, 0
      %p313 = por %p311, %p312
      %p314 = scmp.ne.s32.totalorder %s306, %s308
      %p315 = scmp.eq.s32.totalorder %s36, 1
      %p316 = por %p314, %p315
      %p317 = scmp.ne.s32.totalorder %s308, %s309
      %p318 = scmp.eq.s32.totalorder %s36, 0
      %p319 = por %p317, %p318
      %p320 = scmp.ne.s32.totalorder %s308, %s309
      %p321 = scmp.eq.s32.totalorder %s37, 1
      %p322 = por %p320, %p321
      %p324 = scmp.ne.s32.totalorder %s309, %s323
      %p325 = scmp.eq.s32.totalorder %s37, 0
      %p326 = por %p324, %p325
      %s328 = sadd.s32 %s327, 1
      %p331 = scmp.eq.s32.totalorder %s31, 1
      %p332 = scmp.ne.s32.totalorder %s327, %s329
      %p333 = scmp.eq.s32.totalorder %s31, 0
      %p334 = por %p332, %p333
      %p335 = scmp.ne.s32.totalorder %s327, %s329
      %p336 = scmp.eq.s32.totalorder %s36, 1
      %p337 = por %p335, %p336
      %p338 = scmp.ne.s32.totalorder %s329, %s330
      %p339 = scmp.eq.s32.totalorder %s36, 0
      %p340 = por %p338, %p339
      %p341 = scmp.ne.s32.totalorder %s329, %s330
      %p342 = scmp.eq.s32.totalorder %s37, 1
      %p343 = por %p341, %p342
      %p345 = scmp.ne.s32.totalorder %s330, %s344
      %p346 = scmp.eq.s32.totalorder %s37, 0
      %p347 = por %p345, %p346
      %s349 = sadd.s32 %s348, 1
      %p352 = scmp.eq.s32.totalorder %s31, 1
      %p353 = scmp.ne.s32.totalorder %s348, %s350
      %p354 = scmp.eq.s32.totalorder %s31, 0
      %p355 = por %p353, %p354
      %p356 = scmp.ne.s32.totalorder %s348, %s350
      %p357 = scmp.eq.s32.totalorder %s36, 1
      %p358 = por %p356, %p357
      %p359 = scmp.ne.s32.totalorder %s350, %s351
      %p360 = scmp.eq.s32.totalorder %s36, 0
      %p361 = por %p359, %p360
      %p362 = scmp.ne.s32.totalorder %s350, %s351
      %p363 = scmp.eq.s32.totalorder %s37, 1
      %p364 = por %p362, %p363
      %p366 = scmp.ne.s32.totalorder %s351, %s365
      %p367 = scmp.eq.s32.totalorder %s37, 0
      %p368 = por %p366, %p367
      %s370 = sadd.s32 %s369, 1
      %p373 = scmp.eq.s32.totalorder %s31, 1
      %p374 = scmp.ne.s32.totalorder %s369, %s371
      %p375 = scmp.eq.s32.totalorder %s31, 0
      %p376 = por %p374, %p375
      %p377 = scmp.ne.s32.totalorder %s369, %s371
      %p378 = scmp.eq.s32.totalorder %s36, 1
      %p379 = por %p377, %p378
      %p380 = scmp.ne.s32.totalorder %s371, %s372
      %p381 = scmp.eq.s32.totalorder %s36, 0
      %p382 = por %p380, %p381
      %p383 = scmp.ne.s32.totalorder %s371, %s372
      %p384 = scmp.eq.s32.totalorder %s37, 1
      %p385 = por %p383, %p384
      %p387 = scmp.ne.s32.totalorder %s372, %s386
      %p388 = scmp.eq.s32.totalorder %s37, 0
      %p389 = por %p387, %p388
      %s391 = sadd.s32 %s390, 1
      %p394 = scmp.eq.s32.totalorder %s31, 1
      %p395 = scmp.ne.s32.totalorder %s390, %s392
      %p396 = scmp.eq.s32.totalorder %s31, 0
      %p397 = por %p395, %p396
      %p398 = scmp.ne.s32.totalorder %s390, %s392
      %p399 = scmp.eq.s32.totalorder %s36, 1
      %p400 = por %p398, %p399
      %p401 = scmp.ne.s32.totalorder %s392, %s393
      %p402 = scmp.eq.s32.totalorder %s36, 0
      %p403 = por %p401, %p402
      %p404 = scmp.ne.s32.totalorder %s392, %s393
      %p405 = scmp.eq.s32.totalorder %s37, 1
      %p406 = por %p404, %p405
      %p408 = scmp.ne.s32.totalorder %s393, %s407
      %p409 = scmp.eq.s32.totalorder %s37, 0
      %p410 = por %p408, %p409
      %s412 = sadd.s32 %s411, 1
      %p415 = scmp.eq.s32.totalorder %s31, 1
      %p416 = scmp.ne.s32.totalorder %s411, %s413
      %p417 = scmp.eq.s32.totalorder %s31, 0
      %p418 = por %p416, %p417
      %p419 = scmp.ne.s32.totalorder %s411, %s413
      %p420 = scmp.eq.s32.totalorder %s36, 1
      %p421 = por %p419, %p420
      %p422 = scmp.ne.s32.totalorder %s413, %s414
      %p423 = scmp.eq.s32.totalorder %s36, 0
      %p424 = por %p422, %p423
      %p425 = scmp.ne.s32.totalorder %s413, %s414
      %p426 = scmp.eq.s32.totalorder %s37, 1
      %p427 = por %p425, %p426
      %p429 = scmp.ne.s32.totalorder %s414, %s428
      %p430 = scmp.eq.s32.totalorder %s37, 0
      %p431 = por %p429, %p430
      %s433 = sadd.s32 %s432, 1
      %p436 = scmp.eq.s32.totalorder %s31, 1
      %p437 = scmp.ne.s32.totalorder %s432, %s434
      %p438 = scmp.eq.s32.totalorder %s31, 0
      %p439 = por %p437, %p438
      %p440 = scmp.ne.s32.totalorder %s432, %s434
      %p441 = scmp.eq.s32.totalorder %s36, 1
      %p442 = por %p440, %p441
      %p443 = scmp.ne.s32.totalorder %s434, %s435
      %p444 = scmp.eq.s32.totalorder %s36, 0
      %p445 = por %p443, %p444
      %p446 = scmp.ne.s32.totalorder %s434, %s435
      %p447 = scmp.eq.s32.totalorder %s37, 1
      %p448 = por %p446, %p447
      %p450 = scmp.ne.s32.totalorder %s435, %s449
      %p451 = scmp.eq.s32.totalorder %s37, 0
      %p452 = por %p450, %p451
      %s453 = ssub.s32 %s31, %s38
      %p454 = scmp.eq.s32.totalorder %s453, 0
      %s456 = sadd.s32 %s455, 1
      %s457 = scalar_select %p454, %s455, %s456
      %p460 = pneg %p454
      %p461 = scmp.eq.s32.totalorder %s31, 1
      %p462 = por %p460, %p461
      %p463 = scmp.ne.s32.totalorder %s455, %s458
      %p464 = scmp.eq.s32.totalorder %s31, 0
      %p465 = por %p463, %p464
      %p466 = scmp.ne.s32.totalorder %s455, %s458
      %p467 = scmp.eq.s32.totalorder %s36, 1
      %p468 = por %p466, %p467
      %p469 = scmp.ne.s32.totalorder %s458, %s459
      %p470 = scmp.eq.s32.totalorder %s36, 0
      %p471 = por %p469, %p470
      %p472 = scmp.ne.s32.totalorder %s458, %s459
      %p473 = scmp.eq.s32.totalorder %s37, 1
      %p474 = por %p472, %p473
      %p476 = scmp.ne.s32.totalorder %s459, %s475
      %p477 = scmp.eq.s32.totalorder %s37, 0
      %p478 = por %p476, %p477
      %p479 = scmp.le.s32.totalorder 1, %s31
      %p480 = scmp.lt.s32.totalorder %s31, 3
      %p481 = pnand %p479, %p480
      %p482 = pneg %p481
      // Predicated region
      $region9: #{tpu_custom_call.1} parent=5 // pred_check
        _
      $region10: #{tpu_custom_call.1} parent=5 // pred_check_branch
        %484 = sbr.rel (%p481) target = $region12
      $region11: #{tpu_custom_call.1} parent=5 // pred_region
        %s485 = ssub.s32 %s31, 1
        // Predicated region
        $region13: #{tpu_custom_call.1} parent=11 // pred_check
          %p486 = pneg %p130
        $region14: #{tpu_custom_call.1} parent=11 // pred_check_branch
          %488 = sbr.rel (%p486) target = $region16
        $region15: #{tpu_custom_call.1} parent=11 // pred_region
          _
        $region16: #{tpu_custom_call.1} parent=11 // pred_fallthru
          _
        // Predicated region
        $region17: #{tpu_custom_call.1} parent=11 // pred_check
          %p489 = pneg %p151
        $region18: #{tpu_custom_call.1} parent=11 // pred_check_branch
          %491 = sbr.rel (%p489) target = $region20
        $region19: #{tpu_custom_call.1} parent=11 // pred_region
          _
        $region20: #{tpu_custom_call.1} parent=11 // pred_fallthru
          _
        // Predicated region
        $region21: #{tpu_custom_call.1} parent=11 // pred_check
          %p492 = pneg %p172
        $region22: #{tpu_custom_call.1} parent=11 // pred_check_branch
          %494 = sbr.rel (%p492) target = $region24
        $region23: #{tpu_custom_call.1} parent=11 // pred_region
          _
        $region24: #{tpu_custom_call.1} parent=11 // pred_fallthru
          _
        // Predicated region
        $region25: #{tpu_custom_call.1} parent=11 // pred_check
          %p495 = pneg %p193
        $region26: #{tpu_custom_call.1} parent=11 // pred_check_branch
          %497 = sbr.rel (%p495) target = $region28
        $region27: #{tpu_custom_call.1} parent=11 // pred_region
          _
        $region28: #{tpu_custom_call.1} parent=11 // pred_fallthru
          _
        // Predicated region
        $region29: #{tpu_custom_call.1} parent=11 // pred_check
          %p498 = pneg %p214
        $region30: #{tpu_custom_call.1} parent=11 // pred_check_branch
          %500 = sbr.rel (%p498) target = $region32
        $region31: #{tpu_custom_call.1} parent=11 // pred_region
          %502 = vsyncadd [#allocation4], 0
          %s503 = sshll.u32 %s7, 4
          %s504 = int_to_ptr.hbm [resolvable:$true] %s503
          %s505 = sshll.u32 [#allocation3], 4
          %s506 = int_to_ptr.vmem [resolvable:$true] %s505
          %511 = dma.hbm_to_vmem [thread:$0]  %s504, 256, %s506, [#allocation4], 128, 128, 8
        $region32: #{tpu_custom_call.1} parent=11 // pred_fallthru
          _
        // Predicated region
        $region33: #{tpu_custom_call.1} parent=11 // pred_check
          %p512 = pneg %p235
        $region34: #{tpu_custom_call.1} parent=11 // pred_check_branch
          %514 = sbr.rel (%p512) target = $region36
        $region35: #{tpu_custom_call.1} parent=11 // pred_region
          %516 = vsyncadd [#allocation7], 0
          %s517 = sshll.u32 %s8, 4
          %s518 = int_to_ptr.hbm [resolvable:$true] %s517
          %s519 = sshll.u32 [#allocation6], 4
          %s520 = int_to_ptr.vmem [resolvable:$true] %s519
          %525 = dma.hbm_to_vmem [thread:$0]  %s518, 256, %s520, [#allocation7], 128, 128, 8
        $region36: #{tpu_custom_call.1} parent=11 // pred_fallthru
          _
        // Predicated region
        $region37: #{tpu_custom_call.1} parent=11 // pred_check
          %p526 = pneg %p256
        $region38: #{tpu_custom_call.1} parent=11 // pred_check_branch
          %528 = sbr.rel (%p526) target = $region40
        $region39: #{tpu_custom_call.1} parent=11 // pred_region
          _
        $region40: #{tpu_custom_call.1} parent=11 // pred_fallthru
          _
        // Predicated region
        $region41: #{tpu_custom_call.1} parent=11 // pred_check
          %p529 = pneg %p277
        $region42: #{tpu_custom_call.1} parent=11 // pred_check_branch
          %531 = sbr.rel (%p529) target = $region44
        $region43: #{tpu_custom_call.1} parent=11 // pred_region
          _
        $region44: #{tpu_custom_call.1} parent=11 // pred_fallthru
          _
        // Predicated region
        $region45: #{tpu_custom_call.1} parent=11 // pred_check
          %p532 = pneg %p298
        $region46: #{tpu_custom_call.1} parent=11 // pred_check_branch
          %534 = sbr.rel (%p532) target = $region48
        $region47: #{tpu_custom_call.1} parent=11 // pred_region
          _
        $region48: #{tpu_custom_call.1} parent=11 // pred_fallthru
          _
        // Predicated region
        $region49: #{tpu_custom_call.1} parent=11 // pred_check
          %p535 = pneg %p319
        $region50: #{tpu_custom_call.1} parent=11 // pred_check_branch
          %537 = sbr.rel (%p535) target = $region52
        $region51: #{tpu_custom_call.1} parent=11 // pred_region
          _
        $region52: #{tpu_custom_call.1} parent=11 // pred_fallthru
          _
        // Predicated region
        $region53: #{tpu_custom_call.1} parent=11 // pred_check
          %p538 = pneg %p340
        $region54: #{tpu_custom_call.1} parent=11 // pred_check_branch
          %540 = sbr.rel (%p538) target = $region56
        $region55: #{tpu_custom_call.1} parent=11 // pred_region
          %542 = vsyncadd [#allocation7], 0
          %s543 = sshll.u32 %s13, 4
          %s544 = int_to_ptr.hbm [resolvable:$true] %s543
          %s545 = sshll.u32 [#allocation8], 4
          %s546 = int_to_ptr.vmem [resolvable:$true] %s545
          %551 = dma.hbm_to_vmem [thread:$0]  %s544, 2560, %s546, [#allocation7], 128, 128, 8
        $region56: #{tpu_custom_call.1} parent=11 // pred_fallthru
          _
        // Predicated region
        $region57: #{tpu_custom_call.1} parent=11 // pred_check
          %p552 = pneg %p361
        $region58: #{tpu_custom_call.1} parent=11 // pred_check_branch
          %554 = sbr.rel (%p552) target = $region60
        $region59: #{tpu_custom_call.1} parent=11 // pred_region
          _
        $region60: #{tpu_custom_call.1} parent=11 // pred_fallthru
          _
        // Predicated region
        $region61: #{tpu_custom_call.1} parent=11 // pred_check
          %p555 = pneg %p382
        $region62: #{tpu_custom_call.1} parent=11 // pred_check_branch
          %557 = sbr.rel (%p555) target = $region64
        $region63: #{tpu_custom_call.1} parent=11 // pred_region
          %559 = vsyncadd [#allocation10], 0
          %s560 = sshll.u32 %s15, 4
          %s561 = int_to_ptr.hbm [resolvable:$true] %s560
          %s562 = sshll.u32 [#allocation9], 4
          %s563 = int_to_ptr.vmem [resolvable:$true] %s562
          %568 = dma.hbm_to_vmem [thread:$0]  %s561, 2560, %s563, [#allocation10], 128, 128, 8
        $region64: #{tpu_custom_call.1} parent=11 // pred_fallthru
          _
        // Predicated region
        $region65: #{tpu_custom_call.1} parent=11 // pred_check
          %p569 = pneg %p403
        $region66: #{tpu_custom_call.1} parent=11 // pred_check_branch
          %571 = sbr.rel (%p569) target = $region68
        $region67: #{tpu_custom_call.1} parent=11 // pred_region
          _
        $region68: #{tpu_custom_call.1} parent=11 // pred_fallthru
          _
        // Predicated region
        $region69: #{tpu_custom_call.1} parent=11 // pred_check
          %p572 = pneg %p424
        $region70: #{tpu_custom_call.1} parent=11 // pred_check_branch
          %574 = sbr.rel (%p572) target = $region72
        $region71: #{tpu_custom_call.1} parent=11 // pred_region
          _
        $region72: #{tpu_custom_call.1} parent=11 // pred_fallthru
          _
        // Predicated region
        $region73: #{tpu_custom_call.1} parent=11 // pred_check
          %p575 = pneg %p445
        $region74: #{tpu_custom_call.1} parent=11 // pred_check_branch
          %577 = sbr.rel (%p575) target = $region76
        $region75: #{tpu_custom_call.1} parent=11 // pred_region
          _
        $region76: #{tpu_custom_call.1} parent=11 // pred_fallthru
          _
      $region12: #{tpu_custom_call.1} parent=5 // pred_fallthru
        _
      %p578 = scmp.lt.s32.totalorder %s31, 2
      // Predicated region
      $region77: #{tpu_custom_call.1} parent=5 // pred_check
        %p579 = pneg %p578
      $region78: #{tpu_custom_call.1} parent=5 // pred_check_branch
        %581 = sbr.rel (%p579) target = $region80
      $region79: #{tpu_custom_call.1} parent=5 // pred_region
        // Predicated region
        $region81: #{tpu_custom_call.1} parent=79 // pred_check
          %p582 = pneg %p51
        $region82: #{tpu_custom_call.1} parent=79 // pred_check_branch
          %584 = sbr.rel (%p582) target = $region84
        $region83: #{tpu_custom_call.1} parent=79 // pred_region
          %p585 = scmp.lt.s32.totalorder %s31, 1
          %s586 = scalar_select %p585, %s31, 1
          %s587 = smul.addr %s586, 2
          %s588 = smul.addr %s587, 8
          %s589 = scalar_lea.vmem %s0, %s588
        $region84: #{tpu_custom_call.1} parent=79 // pred_fallthru
          _
        // Predicated region
        $region85: #{tpu_custom_call.1} parent=79 // pred_check
          %p590 = pneg %p77
        $region86: #{tpu_custom_call.1} parent=79 // pred_check_branch
          %592 = sbr.rel (%p590) target = $region88
        $region87: #{tpu_custom_call.1} parent=79 // pred_region
          %p593 = scmp.lt.s32.totalorder %s31, 1
          %s594 = scalar_select %p593, %s31, 1
          %s595 = smul.addr %s594, 2
          %s596 = smul.addr %s595, 8
          %s597 = scalar_lea.vmem %s1, %s596
        $region88: #{tpu_custom_call.1} parent=79 // pred_fallthru
          _
        // Predicated region
        $region89: #{tpu_custom_call.1} parent=79 // pred_check
          %p598 = pneg %p103
        $region90: #{tpu_custom_call.1} parent=79 // pred_check_branch
          %600 = sbr.rel (%p598) target = $region92
        $region91: #{tpu_custom_call.1} parent=79 // pred_region
          %p601 = scmp.lt.s32.totalorder %s31, 1
          %s602 = scalar_select %p601, %s31, 1
          %s603 = scalar_lea.vmem %s2, %s602
        $region92: #{tpu_custom_call.1} parent=79 // pred_fallthru
          _
      $region80: #{tpu_custom_call.1} parent=5 // pred_fallthru
        _
      %p604 = scmp.le.s32.totalorder 1, %s31
      %p605 = scmp.lt.s32.totalorder %s31, 3
      %p606 = pnand %p604, %p605
      %p607 = pneg %p606
      // Predicated region
      $region93: #{tpu_custom_call.1} parent=5 // pred_check
        _
      $region94: #{tpu_custom_call.1} parent=5 // pred_check_branch
        %609 = sbr.rel (%p606) target = $region96
      $region95: #{tpu_custom_call.1} parent=5 // pred_region
        %s610 = ssub.s32 %s31, 1
        // Predicated region
        $region97: #{tpu_custom_call.1} parent=95 // pred_check
          %p611 = pneg %p214
        $region98: #{tpu_custom_call.1} parent=95 // pred_check_branch
          %613 = sbr.rel (%p611) target = $region100
        $region99: #{tpu_custom_call.1} parent=95 // pred_region
          %615 = dma.done [#allocation4], 256
        $region100: #{tpu_custom_call.1} parent=95 // pred_fallthru
          _
        // Predicated region
        $region101: #{tpu_custom_call.1} parent=95 // pred_check
          %p616 = pneg %p235
        $region102: #{tpu_custom_call.1} parent=95 // pred_check_branch
          %618 = sbr.rel (%p616) target = $region104
        $region103: #{tpu_custom_call.1} parent=95 // pred_region
          %620 = dma.done [#allocation7], 256
        $region104: #{tpu_custom_call.1} parent=95 // pred_fallthru
          _
        // Predicated region
        $region105: #{tpu_custom_call.1} parent=95 // pred_check
          %p621 = pneg %p340
        $region106: #{tpu_custom_call.1} parent=95 // pred_check_branch
          %623 = sbr.rel (%p621) target = $region108
        $region107: #{tpu_custom_call.1} parent=95 // pred_region
          %625 = dma.done [#allocation7], 2560
        $region108: #{tpu_custom_call.1} parent=95 // pred_fallthru
          _
        // Predicated region
        $region109: #{tpu_custom_call.1} parent=95 // pred_check
          %p626 = pneg %p382
        $region110: #{tpu_custom_call.1} parent=95 // pred_check_branch
          %628 = sbr.rel (%p626) target = $region112
        $region111: #{tpu_custom_call.1} parent=95 // pred_region
          %630 = dma.done [#allocation10], 2560
        $region112: #{tpu_custom_call.1} parent=95 // pred_fallthru
          _
        %p631 = scmp.lt.s32.totalorder %s36, 1
        %s632 = scalar_select %p631, %s36, 1
        %s633 = smul.addr %s632, 2
        %s634 = smul.addr %s633, 8
        %s635 = scalar_lea.vmem %s0, %s634
        %p636 = pneg %p57
        %p637 = pneg %p54
        %p638 = scmp.lt.s32.totalorder %s36, 1
        %s639 = scalar_select %p638, %s36, 1
        %s640 = smul.addr %s639, 2
        %s641 = smul.addr %s640, 8
        %s642 = scalar_lea.vmem %s1, %s641
        %p643 = pneg %p83
        %p644 = pneg %p80
        %p645 = scmp.lt.s32.totalorder %s36, 1
        %s646 = scalar_select %p645, %s36, 1
        %s647 = scalar_lea.vmem %s2, %s646
        %p648 = pneg %p109
        %p649 = pneg %p106
        %p650 = pneg %p130
        %p651 = pneg %p127
        %p652 = pneg %p151
        %p653 = pneg %p148
        %p654 = pneg %p172
        %p655 = pneg %p169
        %p656 = pneg %p193
        %p657 = pneg %p190
        %p658 = pneg %p214
        %p659 = pneg %p211
        %p660 = pneg %p235
        %p661 = pneg %p232
        %p662 = pneg %p256
        %p663 = pneg %p253
        %p664 = pneg %p277
        %p665 = pneg %p274
        %p666 = pneg %p298
        %p667 = pneg %p295
        %p668 = pneg %p319
        %p669 = pneg %p316
        %p670 = pneg %p340
        %p671 = pneg %p337
        %p672 = pneg %p361
        %p673 = pneg %p358
        %p674 = pneg %p382
        %p675 = pneg %p379
        %p676 = pneg %p403
        %p677 = pneg %p400
        %p678 = pneg %p424
        %p679 = pneg %p421
        %p680 = pneg %p445
        %p681 = pneg %p442
        %p682 = pneg %p471
        %p683 = pneg %p468
        %s684 = sand.u32 %s458, 1
        %s685 = scalar_lea.sflag [#allocation5], %s684
        %s686 = sand.u32 %s458, 1
        %s687 = smul.addr %s686, 16
        %s688 = scalar_lea.vmem [#allocation11], %s687
        %p689 = scmp.lt.s32.totalorder %s36, 1
        %s690 = scalar_select %p689, %s36, 1
        %s691 = smul.addr %s690, 2
        %s692 = smul.addr %s691, 8
        %s693 = scalar_lea.vmem %s0, %s692
        %p694 = scmp.lt.s32.totalorder %s36, 1
        %s695 = scalar_select %p694, %s36, 1
        %s696 = smul.addr %s695, 2
        %s697 = smul.addr %s696, 8
        %s698 = scalar_lea.vmem %s1, %s697
        %p699 = scmp.lt.s32.totalorder %s36, 1
        %s700 = scalar_select %p699, %s36, 1
        %s701 = scalar_lea.vmem %s2, %s700
        %v702 = vld [vmem:[%s693] sm:$0xff]
        %v703 = vld [vmem:[%s693 + $0x8] sm:$0xff]
        %v704 = vld [vmem:[%s698] sm:$0xff]
        %v705 = vld [vmem:[%s698 + $0x8] sm:$0xff]
        %v706 = vld [vmem:[%s701] sm:$0x1]
        %vm707 = vcmask 261120
        %708 = vst.msk [vmem:[#allocation2] sm:$0xff] %vm707, 0.0
        %709 = vst.msk [vmem:[#allocation2 + $0x8] sm:$0xff] %vm707, 0.0
        %vm710 = vcmask 257024
        %711 = vst.msk [vmem:[#allocation2 + $0x10] sm:$0xf] %vm710, 0.0
        %v712 = vld [vmem:[%s3] sm:$0xf]
        %v713 = vld [vmem:[%s4] sm:$0x1]
        %v715 = vperm.slane %v713, 0
        %vm717 = vcmask 31744
        %v719 = vsel %vm717, %v702, 0
        %v722 = vsel %vm717, %v703, 0
        %vm724 = vcmask 1043456
        %v726 = vsel %vm724, %v712, 0
        %728 = vmatpush.msra.mxu0 0.0
        %729 = vmatpush.msra.mxu0 0.0
        %730 = vmatpush.msra.mxu0 0.0
        %731 = vmatpush.msra.mxu0 0.0
        %732 = vmatpush.msra.mxu0 0.0
        %733 = vmatpush.msra.mxu0 0.0
        %734 = vmatpush.msra.mxu0 0.0
        %735 = vmatpush.msra.mxu0 0.0
        %736 = vmatpush.msra.mxu0 0.0
        %737 = vmatpush.msra.mxu0 0.0
        %738 = vmatpush.msra.mxu0 0.0
        %739 = vmatpush.msra.mxu0 0.0
        %740 = vmatpush.msra.mxu0 0.0
        %741 = vmatpush.msra.mxu0 0.0
        %742 = vmatpush.msra.mxu0 0.0
        %743 = vmatpush.msra.mxu0 %v726
        %744 = vmatmul.f32.gmra.mxu0 %v719
        %v745 = vpop.f32.mrf.mxu0
        %v746 = vadd.f32 %v715, %v745
        %747 = vmatmul.f32.gmra.mxu0 %v722
        %v748 = vpop.f32.mrf.mxu0
        %v749 = vadd.f32 %v715, %v748
        %750 = vdwg.mxu0
        %752 = vset.pattern.permute.xlu0 0
        %753 = vperm.xlu0 %752, %v704
        %v754 = vpop.permute.xlu0 %753
        %757 = vset.pattern.permute.xlu0 0
        %758 = vperm.xlu0 %757, %v705
        %v759 = vpop.permute.xlu0 %758
        %v761 = vmul.f32 %v746, %v754
        %v762 = vmul.f32 %v749, %v759
        %v763 = vmul.f32 %v761, %v754
        %v764 = vmul.f32 %v762, %v759
        %v766 = vperm.slane %v706, 0
        %v768 = vmul.f32 %v754, %v766
        %v769 = vmul.f32 %v759, %v766
        %v770 = vlaneseq
        %v771 = vshrl.u32 %v770, 7
        %v772 = vadd.s32 %v771, 8
        %v773 = vlaneseq
        %v774 = vand.u32 %v773, 127
        %v775 = vsub.s32 %v774, %v771
        %v776 = vsub.s32 %v774, %v772
        %vm777 = vcmp.eq.s32.totalorder %v775, 4294967292
        %vm778 = vcmp.eq.s32.totalorder %v776, 4294967292
        %vm779 = vcmp.eq.s32.totalorder %v775, 4294967293
        %vm780 = vcmp.eq.s32.totalorder %v776, 4294967293
        %vm781 = vcmp.eq.s32.totalorder %v775, 4294967294
        %vm782 = vcmp.eq.s32.totalorder %v776, 4294967294
        %vm783 = vcmp.eq.s32.totalorder %v775, 4294967295
        %vm784 = vcmp.eq.s32.totalorder %v776, 4294967295
        %vm785 = vcmp.eq.s32.totalorder %v775, 0
        %vm786 = vcmp.eq.s32.totalorder %v776, 0
        %vm787 = vcmp.eq.s32.totalorder %v775, 1
        %vm788 = vcmp.eq.s32.totalorder %v776, 1
        %vm789 = vcmp.eq.s32.totalorder %v775, 2
        %vm790 = vcmp.eq.s32.totalorder %v776, 2
        %vm791 = vcmp.eq.s32.totalorder %v775, 3
        %vm792 = vcmp.eq.s32.totalorder %v776, 3
        %vm793 = vcmp.eq.s32.totalorder %v775, 4
        %vm794 = vcmp.eq.s32.totalorder %v776, 4
        %v795 = vld [vmem:[%s5] sm:$0xff]
        %v796 = vld [vmem:[%s5 + $0x8] sm:$0xff]
        %v797 = vld [vmem:[%s5 + $0x10] sm:$0xff]
        %v798 = vld [vmem:[%s5 + $0x18] sm:$0xff]
        %v799 = vld [vmem:[%s6] sm:$0x1]
        %v801 = vperm.slane %v799, 0
        %v804 = vsel %vm707, %v763, 0
        %v807 = vsel %vm707, %v764, 0
        %809 = vmatpush.msra.mxu0 0.0
        %810 = vmatpush.msra.mxu0 0.0
        %811 = vmatpush.msra.mxu0 0.0
        %812 = vmatpush.msra.mxu0 0.0
        %813 = vmatpush.msra.mxu0 0.0
        %814 = vmatpush.msra.mxu0 0.0
        %815 = vmatpush.msra.mxu0 0.0
        %816 = vmatpush.msra.mxu0 0.0
        %817 = vmatpush.msra.mxu0 0.0
        %818 = vmatpush.msra.mxu0 0.0
        %819 = vmatpush.msra.mxu0 0.0
        %820 = vmatpush.msra.mxu0 0.0
        %821 = vmatpush.msra.mxu0 %v798
        %822 = vmatpush.msra.mxu0 %v797
        %823 = vmatpush.msra.mxu0 %v796
        %824 = vmatpush.msra.mxu0 %v795
        %825 = vmatmul.f32.gmra.mxu0 %v804
        %v826 = vpop.f32.mrf.mxu0
        %v827 = vadd.f32 %v801, %v826
        %828 = vmatmul.f32.gmra.mxu0 %v807
        %v829 = vpop.f32.mrf.mxu0
        %v830 = vadd.f32 %v801, %v829
        %831 = vdwg.mxu0
        %v832 = vmul.f32 %v827, 0.25
        %v833 = vmul.f32 %v830, 0.25
        %v834 = vld [vmem:[#allocation3] sm:$0xff]
        %v835 = vld [vmem:[#allocation3 + $0x8] sm:$0xff]
        %vm836 = vcmask 130048
        %v838 = vsel %vm836, %v832, 0
        %v841 = vsel %vm836, %v833, 0
        %843 = vmatpush.msra.mxu0 0.0
        %844 = vmatpush.msra.mxu0 0.0
        %845 = vmatpush.msra.mxu0 0.0
        %846 = vmatpush.msra.mxu0 0.0
        %847 = vmatpush.msra.mxu0 0.0
        %848 = vmatpush.msra.mxu0 0.0
        %849 = vmatpush.msra.mxu0 0.0
        %850 = vmatpush.msra.mxu0 0.0
        %851 = vmatpush.msra.mxu0 0.0
        %852 = vmatpush.msra.mxu0 0.0
        %853 = vmatpush.msra.mxu0 0.0
        %854 = vmatpush.msra.mxu0 0.0
        %855 = vmatpush.msra.mxu0 0.0
        %856 = vmatpush.msra.mxu0 0.0
        %857 = vmatpush.msra.mxu0 %v835
        %858 = vmatpush.msra.mxu0 %v834
        %859 = vmatmul.f32.gmra.mxu0 %v838
        %v860 = vpop.f32.mrf.mxu0
        %v861 = vadd.f32 0.0, %v860
        %862 = vmatmul.f32.gmra.mxu0 %v841
        %v863 = vpop.f32.mrf.mxu0
        %v864 = vadd.f32 0.0, %v863
        %865 = vdwg.mxu0
        %867 = vset.pattern.permute.xlu0 0
        %868 = vperm.xlu0 %867, %v861
        %v869 = vpop.permute.xlu0 %868
        %872 = vset.pattern.permute.xlu0 0
        %873 = vperm.xlu0 %872, %v864
        %v874 = vpop.permute.xlu0 %873
        %v876 = vsel %vm777, %v869, 0.0
        %v877 = vsel %vm778, %v874, 0.0
        %880 = vrot.lane.b32.xlu0 %v827, 96
        %v881 = vpop.permute.xlu0 %880
        %882 = vrot.lane.b32.xlu0 %v830, 96
        %v883 = vpop.permute.xlu0 %882
        %v884 = vsel %vm836, %v881, 0
        %v886 = vsel %vm836, %v883, 0
        %888 = vmatpush.xpose.msra.mxu0 0.0
        %889 = vmatpush.xpose.msra.mxu0 0.0
        %890 = vmatpush.xpose.msra.mxu0 0.0
        %891 = vmatpush.xpose.msra.mxu0 0.0
        %892 = vmatpush.xpose.msra.mxu0 0.0
        %893 = vmatpush.xpose.msra.mxu0 0.0
        %894 = vmatpush.xpose.msra.mxu0 0.0
        %895 = vmatpush.xpose.msra.mxu0 0.0
        %896 = vmatpush.xpose.msra.mxu0 0.0
        %897 = vmatpush.xpose.msra.mxu0 0.0
        %898 = vmatpush.xpose.msra.mxu0 0.0
        %899 = vmatpush.xpose.msra.mxu0 0.0
        %900 = vmatpush.xpose.msra.mxu0 0.0
        %901 = vmatpush.xpose.msra.mxu0 0.0
        %902 = vmatpush.xpose.msra.mxu0 %v886
        %903 = vmatpush.xpose.msra.mxu0 %v884
        %904 = vmatmul.f32.gmra.mxu0 %v838
        %v905 = vpop.f32.mrf.mxu0
        %v906 = vadd.f32 %v876, %v905
        %907 = vmatmul.f32.gmra.mxu0 %v841
        %v908 = vpop.f32.mrf.mxu0
        %v909 = vadd.f32 %v877, %v908
        %910 = vdwg.mxu0
        %911 = vset.pattern.permute.xlu0 1
        %912 = vperm.xlu0 %911, %v861
        %v913 = vpop.permute.xlu0 %912
        %915 = vset.pattern.permute.xlu0 1
        %916 = vperm.xlu0 %915, %v864
        %v917 = vpop.permute.xlu0 %916
        %v919 = vsel %vm779, %v913, 0.0
        %v920 = vsel %vm780, %v917, 0.0
        %v921 = vadd.f32 %v906, %v919
        %v922 = vadd.f32 %v909, %v920
        %923 = vset.pattern.permute.xlu0 2
        %924 = vperm.xlu0 %923, %v861
        %v925 = vpop.permute.xlu0 %924
        %927 = vset.pattern.permute.xlu0 2
        %928 = vperm.xlu0 %927, %v864
        %v929 = vpop.permute.xlu0 %928
        %v931 = vsel %vm781, %v925, 0.0
        %v932 = vsel %vm782, %v929, 0.0
        %v933 = vadd.f32 %v921, %v931
        %v934 = vadd.f32 %v922, %v932
        %935 = vset.pattern.permute.xlu0 3
        %936 = vperm.xlu0 %935, %v861
        %v937 = vpop.permute.xlu0 %936
        %939 = vset.pattern.permute.xlu0 3
        %940 = vperm.xlu0 %939, %v864
        %v941 = vpop.permute.xlu0 %940
        %v943 = vsel %vm783, %v937, 0.0
        %v944 = vsel %vm784, %v941, 0.0
        %v945 = vadd.f32 %v933, %v943
        %v946 = vadd.f32 %v934, %v944
        %947 = vset.pattern.permute.xlu0 4
        %948 = vperm.xlu0 %947, %v861
        %v949 = vpop.permute.xlu0 %948
        %951 = vset.pattern.permute.xlu0 4
        %952 = vperm.xlu0 %951, %v864
        %v953 = vpop.permute.xlu0 %952
        %v955 = vsel %vm785, %v949, 0.0
        %v956 = vsel %vm786, %v953, 0.0
        %v957 = vadd.f32 %v945, %v955
        %v958 = vadd.f32 %v946, %v956
        %959 = vset.pattern.permute.xlu0 5
        %960 = vperm.xlu0 %959, %v861
        %v961 = vpop.permute.xlu0 %960
        %963 = vset.pattern.permute.xlu0 5
        %964 = vperm.xlu0 %963, %v864
        %v965 = vpop.permute.xlu0 %964
        %v967 = vsel %vm787, %v961, 0.0
        %v968 = vsel %vm788, %v965, 0.0
        %v969 = vadd.f32 %v957, %v967
        %v970 = vadd.f32 %v958, %v968
        %971 = vset.pattern.permute.xlu0 6
        %972 = vperm.xlu0 %971, %v861
        %v973 = vpop.permute.xlu0 %972
        %975 = vset.pattern.permute.xlu0 6
        %976 = vperm.xlu0 %975, %v864
        %v977 = vpop.permute.xlu0 %976
        %v979 = vsel %vm789, %v973, 0.0
        %v980 = vsel %vm790, %v977, 0.0
        %v981 = vadd.f32 %v969, %v979
        %v982 = vadd.f32 %v970, %v980
        %983 = vset.pattern.permute.xlu0 7
        %984 = vperm.xlu0 %983, %v861
        %v985 = vpop.permute.xlu0 %984
        %987 = vset.pattern.permute.xlu0 7
        %988 = vperm.xlu0 %987, %v864
        %v989 = vpop.permute.xlu0 %988
        %v991 = vsel %vm791, %v985, 0.0
        %v992 = vsel %vm792, %v989, 0.0
        %v993 = vadd.f32 %v981, %v991
        %v994 = vadd.f32 %v982, %v992
        %995 = vset.pattern.permute.xlu0 8
        %996 = vperm.xlu0 %995, %v861
        %v997 = vpop.permute.xlu0 %996
        %999 = vset.pattern.permute.xlu0 8
        %1000 = vperm.xlu0 %999, %v864
        %v1001 = vpop.permute.xlu0 %1000
        %v1003 = vsel %vm793, %v997, 0.0
        %v1004 = vsel %vm794, %v1001, 0.0
        %v1005 = vadd.f32 %v993, %v1003
        %v1006 = vadd.f32 %v994, %v1004
        %vm1007 = vcmp.gt.f32.partialorder %v768, 0.0
        %vm1008 = vcmp.gt.f32.partialorder %v769, 0.0
        %v1009 = vsel %vm1007, %v1005, -10000.0
        %v1010 = vsel %vm1008, %v1006, -10000.0
        %v1011 = vsel %vm836, %v1009, -inf
        %1012 = vmax.xlane.f32.xlu0 %v1011
        %v1013 = vpop.xlane.xlu0 %1012
        %v1014 = vsel %vm836, %v1010, -inf
        %1015 = vmax.xlane.f32.xlu0 %v1014
        %v1016 = vpop.xlane.xlu0 %1015
        %v1017 = vsub.f32 %v1009, %v1013
        %v1018 = vsub.f32 %v1010, %v1016
        %v1019 = vmul.f32 %v1017, 1.442695
        %v1020 = vpow.pop %v1019
        %v1021 = vmul.f32 %v1018, 1.442695
        %v1022 = vpow.pop %v1021
        %v1023 = vsel %vm836, %v1020, 0.0
        %1024 = vadd.xlane.f32.xlu0 %v1023
        %v1025 = vpop.xlane.xlu0 %1024
        %v1026 = vsel %vm836, %v1022, 0.0
        %1027 = vadd.xlane.f32.xlu0 %v1026
        %v1028 = vpop.xlane.xlu0 %1027
        %v1029 = vrcp.pop %v1025
        %v1030 = vmul.f32 %v1025, %v1029
        %v1031 = vsub.f32 1.0, %v1030
        %v1032 = vmul.f32 %v1029, %v1031
        %v1033 = vadd.f32 %v1029, %v1032
        %vm1034 = vweird.f32 %v1025
        %vm1035 = vweird.f32 %v1029
        %vm1036 = vmor %vm1034, %vm1035
        %v1037 = vsel %vm1036, %v1029, %v1033
        %v1038 = vand.u32 2147483647, %v1025
        %vm1039 = vcmp.eq.f32.partialorder %v1038, 8.507059e+37
        %v1040 = vand.u32 %v1025, 2147483648
        %v1041 = vor.u32 1.1754944e-38, %v1040
        %v1042 = vsel %vm1039, %v1041, %v1037
        %v1043 = vmul.f32 %v1020, %v1042
        %v1044 = vrcp.pop %v1028
        %v1045 = vmul.f32 %v1028, %v1044
        %v1046 = vsub.f32 1.0, %v1045
        %v1047 = vmul.f32 %v1044, %v1046
        %v1048 = vadd.f32 %v1044, %v1047
        %vm1049 = vweird.f32 %v1028
        %vm1050 = vweird.f32 %v1044
        %vm1051 = vmor %vm1049, %vm1050
        %v1052 = vsel %vm1051, %v1044, %v1048
        %v1053 = vand.u32 2147483647, %v1028
        %vm1054 = vcmp.eq.f32.partialorder %v1053, 8.507059e+37
        %v1055 = vand.u32 %v1028, 2147483648
        %v1056 = vor.u32 1.1754944e-38, %v1055
        %v1057 = vsel %vm1054, %v1056, %v1052
        %v1058 = vmul.f32 %v1022, %v1057
        %v1059 = vsel %vm777, %v1043, 0.0
        %v1060 = vsel %vm778, %v1058, 0.0
        %v1061 = vsel %vm836, %v1059, 0.0
        %1062 = vadd.xlane.f32.xlu0 %v1061
        %v1063 = vpop.xlane.xlu0 %1062
        %v1064 = vsel %vm836, %v1060, 0.0
        %1065 = vadd.xlane.f32.xlu0 %v1064
        %v1066 = vpop.xlane.xlu0 %1065
        %v1067 = vsel %vm779, %v1043, 0.0
        %v1068 = vsel %vm780, %v1058, 0.0
        %v1069 = vsel %vm836, %v1067, 0.0
        %1070 = vadd.xlane.f32.xlu0 %v1069
        %v1071 = vpop.xlane.xlu0 %1070
        %v1072 = vsel %vm836, %v1068, 0.0
        %1073 = vadd.xlane.f32.xlu0 %v1072
        %v1074 = vpop.xlane.xlu0 %1073
        %v1075 = vsel %vm781, %v1043, 0.0
        %v1076 = vsel %vm782, %v1058, 0.0
        %v1077 = vsel %vm836, %v1075, 0.0
        %1078 = vadd.xlane.f32.xlu0 %v1077
        %v1079 = vpop.xlane.xlu0 %1078
        %v1080 = vsel %vm836, %v1076, 0.0
        %1081 = vadd.xlane.f32.xlu0 %v1080
        %v1082 = vpop.xlane.xlu0 %1081
        %v1083 = vsel %vm783, %v1043, 0.0
        %v1084 = vsel %vm784, %v1058, 0.0
        %v1085 = vsel %vm836, %v1083, 0.0
        %1086 = vadd.xlane.f32.xlu0 %v1085
        %v1087 = vpop.xlane.xlu0 %1086
        %v1088 = vsel %vm836, %v1084, 0.0
        %1089 = vadd.xlane.f32.xlu0 %v1088
        %v1090 = vpop.xlane.xlu0 %1089
        %v1091 = vsel %vm785, %v1043, 0.0
        %v1092 = vsel %vm786, %v1058, 0.0
        %v1093 = vsel %vm836, %v1091, 0.0
        %1094 = vadd.xlane.f32.xlu0 %v1093
        %v1095 = vpop.xlane.xlu0 %1094
        %v1096 = vsel %vm836, %v1092, 0.0
        %1097 = vadd.xlane.f32.xlu0 %v1096
        %v1098 = vpop.xlane.xlu0 %1097
        %v1099 = vsel %vm787, %v1043, 0.0
        %v1100 = vsel %vm788, %v1058, 0.0
        %v1101 = vsel %vm836, %v1099, 0.0
        %1102 = vadd.xlane.f32.xlu0 %v1101
        %v1103 = vpop.xlane.xlu0 %1102
        %v1104 = vsel %vm836, %v1100, 0.0
        %1105 = vadd.xlane.f32.xlu0 %v1104
        %v1106 = vpop.xlane.xlu0 %1105
        %v1107 = vsel %vm789, %v1043, 0.0
        %v1108 = vsel %vm790, %v1058, 0.0
        %v1109 = vsel %vm836, %v1107, 0.0
        %1110 = vadd.xlane.f32.xlu0 %v1109
        %v1111 = vpop.xlane.xlu0 %1110
        %v1112 = vsel %vm836, %v1108, 0.0
        %1113 = vadd.xlane.f32.xlu0 %v1112
        %v1114 = vpop.xlane.xlu0 %1113
        %v1115 = vsel %vm791, %v1043, 0.0
        %v1116 = vsel %vm792, %v1058, 0.0
        %v1117 = vsel %vm836, %v1115, 0.0
        %1118 = vadd.xlane.f32.xlu0 %v1117
        %v1119 = vpop.xlane.xlu0 %1118
        %v1120 = vsel %vm836, %v1116, 0.0
        %1121 = vadd.xlane.f32.xlu0 %v1120
        %v1122 = vpop.xlane.xlu0 %1121
        %v1123 = vsel %vm793, %v1043, 0.0
        %v1124 = vsel %vm794, %v1058, 0.0
        %v1125 = vsel %vm836, %v1123, 0.0
        %1126 = vadd.xlane.f32.xlu0 %v1125
        %v1127 = vpop.xlane.xlu0 %1126
        %v1128 = vsel %vm836, %v1124, 0.0
        %1129 = vadd.xlane.f32.xlu0 %v1128
        %v1130 = vpop.xlane.xlu0 %1129
        %vm1131 = vcmask 7168
        %v1132 = vsel %vm1131, %v1063, %v1071
        %v1133 = vsel %vm1131, %v1066, %v1074
        %vm1134 = vcmask 15360
        %v1135 = vsel %vm1134, %v1132, %v1079
        %v1136 = vsel %vm1134, %v1133, %v1082
        %vm1137 = vcmask 23552
        %v1138 = vsel %vm1137, %v1135, %v1087
        %v1139 = vsel %vm1137, %v1136, %v1090
        %v1140 = vsel %vm717, %v1138, %v1095
        %v1141 = vsel %vm717, %v1139, %v1098
        %vm1142 = vcmask 39936
        %v1143 = vsel %vm1142, %v1140, %v1103
        %v1144 = vsel %vm1142, %v1141, %v1106
        %vm1145 = vcmask 48128
        %v1146 = vsel %vm1145, %v1143, %v1111
        %v1147 = vsel %vm1145, %v1144, %v1114
        %vm1148 = vcmask 56320
        %v1149 = vsel %vm1148, %v1146, %v1119
        %v1150 = vsel %vm1148, %v1147, %v1122
        %vm1151 = vcmask 64512
        %v1152 = vsel %vm1151, %v1149, %v1127
        %v1153 = vsel %vm1151, %v1150, %v1130
        %v1154 = vld [vmem:[#allocation6] sm:$0xff]
        %v1155 = vld [vmem:[#allocation6 + $0x8] sm:$0x1]
        %vm1156 = vcmask 72704
        %v1158 = vsel %vm1156, %v1152, 0
        %v1161 = vsel %vm1156, %v1153, 0
        %vm1163 = vcmask 1040384
        %v1165 = vsel %vm1163, %v1155, 0
        %1167 = vmatpush.msra.mxu0 0.0
        %1168 = vmatpush.msra.mxu0 0.0
        %1169 = vmatpush.msra.mxu0 0.0
        %1170 = vmatpush.msra.mxu0 0.0
        %1171 = vmatpush.msra.mxu0 0.0
        %1172 = vmatpush.msra.mxu0 0.0
        %1173 = vmatpush.msra.mxu0 0.0
        %1174 = vmatpush.msra.mxu0 0.0
        %1175 = vmatpush.msra.mxu0 0.0
        %1176 = vmatpush.msra.mxu0 0.0
        %1177 = vmatpush.msra.mxu0 0.0
        %1178 = vmatpush.msra.mxu0 0.0
        %1179 = vmatpush.msra.mxu0 0.0
        %1180 = vmatpush.msra.mxu0 0.0
        %1181 = vmatpush.msra.mxu0 %v1165
        %1182 = vmatpush.msra.mxu0 %v1154
        %1183 = vmatmul.f32.gmra.mxu0 %v1158
        %v1184 = vpop.f32.mrf.mxu0
        %v1185 = vadd.f32 0.0, %v1184
        %1186 = vmatmul.f32.gmra.mxu0 %v1161
        %v1187 = vpop.f32.mrf.mxu0
        %v1188 = vadd.f32 0.0, %v1187
        %1189 = vdwg.mxu0
        %1190 = vrot.lane.b32.xlu0 %v827, 64
        %v1191 = vpop.permute.xlu0 %1190
        %1192 = vrot.lane.b32.xlu0 %v830, 64
        %v1193 = vpop.permute.xlu0 %1192
        %v1197 = vsel %vm836, %v1043, 0
        %v1200 = vsel %vm836, %v1058, 0
        %1202 = vmatpush.msra.mxu0 0.0
        %1203 = vmatpush.msra.mxu0 0.0
        %1204 = vmatpush.msra.mxu0 0.0
        %1205 = vmatpush.msra.mxu0 0.0
        %1206 = vmatpush.msra.mxu0 0.0
        %1207 = vmatpush.msra.mxu0 0.0
        %1208 = vmatpush.msra.mxu0 0.0
        %1209 = vmatpush.msra.mxu0 0.0
        %1210 = vmatpush.msra.mxu0 0.0
        %1211 = vmatpush.msra.mxu0 0.0
        %1212 = vmatpush.msra.mxu0 0.0
        %1213 = vmatpush.msra.mxu0 0.0
        %1214 = vmatpush.msra.mxu0 0.0
        %1215 = vmatpush.msra.mxu0 0.0
        %1216 = vmatpush.msra.mxu0 %v1193
        %1217 = vmatpush.msra.mxu0 %v1191
        %1218 = vmatmul.f32.gmra.mxu0 %v1197
        %v1219 = vpop.f32.mrf.mxu0
        %v1220 = vadd.f32 %v1185, %v1219
        %1221 = vmatmul.f32.gmra.mxu0 %v1200
        %v1222 = vpop.f32.mrf.mxu0
        %v1223 = vadd.f32 %v1188, %v1222
        %1224 = vdwg.mxu0
        %1225 = vrot.lane.b32.xlu0 %v832, 112
        %v1226 = vpop.permute.xlu0 %1225
        %1227 = vrot.lane.b32.xlu0 %v833, 112
        %v1228 = vpop.permute.xlu0 %1227
        %v1229 = vsel %vm836, %v1226, 0
        %v1231 = vsel %vm836, %v1228, 0
        %1233 = vmatpush.msra.mxu0 0.0
        %1234 = vmatpush.msra.mxu0 0.0
        %1235 = vmatpush.msra.mxu0 0.0
        %1236 = vmatpush.msra.mxu0 0.0
        %1237 = vmatpush.msra.mxu0 0.0
        %1238 = vmatpush.msra.mxu0 0.0
        %1239 = vmatpush.msra.mxu0 0.0
        %1240 = vmatpush.msra.mxu0 0.0
        %1241 = vmatpush.msra.mxu0 0.0
        %1242 = vmatpush.msra.mxu0 0.0
        %1243 = vmatpush.msra.mxu0 0.0
        %1244 = vmatpush.msra.mxu0 0.0
        %1245 = vmatpush.msra.mxu0 0.0
        %1246 = vmatpush.msra.mxu0 0.0
        %1247 = vmatpush.msra.mxu0 %v835
        %1248 = vmatpush.msra.mxu0 %v834
        %1249 = vmatmul.f32.gmra.mxu0 %v1229
        %v1250 = vpop.f32.mrf.mxu0
        %v1251 = vadd.f32 0.0, %v1250
        %1252 = vmatmul.f32.gmra.mxu0 %v1231
        %v1253 = vpop.f32.mrf.mxu0
        %v1254 = vadd.f32 0.0, %v1253
        %1255 = vdwg.mxu0
        %1257 = vset.pattern.permute.xlu0 0
        %1258 = vperm.xlu0 %1257, %v1251
        %v1259 = vpop.permute.xlu0 %1258
        %1262 = vset.pattern.permute.xlu0 0
        %1263 = vperm.xlu0 %1262, %v1254
        %v1264 = vpop.permute.xlu0 %1263
        %v1266 = vsel %vm777, %v1259, 0.0
        %v1267 = vsel %vm778, %v1264, 0.0
        %1268 = vrot.lane.b32.xlu0 %v827, 80
        %v1269 = vpop.permute.xlu0 %1268
        %1270 = vrot.lane.b32.xlu0 %v830, 80
        %v1271 = vpop.permute.xlu0 %1270
        %v1272 = vsel %vm836, %v1269, 0
        %v1274 = vsel %vm836, %v1271, 0
        %1276 = vmatpush.xpose.msra.mxu0 0.0
        %1277 = vmatpush.xpose.msra.mxu0 0.0
        %1278 = vmatpush.xpose.msra.mxu0 0.0
        %1279 = vmatpush.xpose.msra.mxu0 0.0
        %1280 = vmatpush.xpose.msra.mxu0 0.0
        %1281 = vmatpush.xpose.msra.mxu0 0.0
        %1282 = vmatpush.xpose.msra.mxu0 0.0
        %1283 = vmatpush.xpose.msra.mxu0 0.0
        %1284 = vmatpush.xpose.msra.mxu0 0.0
        %1285 = vmatpush.xpose.msra.mxu0 0.0
        %1286 = vmatpush.xpose.msra.mxu0 0.0
        %1287 = vmatpush.xpose.msra.mxu0 0.0
        %1288 = vmatpush.xpose.msra.mxu0 0.0
        %1289 = vmatpush.xpose.msra.mxu0 0.0
        %1290 = vmatpush.xpose.msra.mxu0 %v1274
        %1291 = vmatpush.xpose.msra.mxu0 %v1272
        %1292 = vmatmul.f32.gmra.mxu0 %v1229
        %v1293 = vpop.f32.mrf.mxu0
        %v1294 = vadd.f32 %v1266, %v1293
        %1295 = vmatmul.f32.gmra.mxu0 %v1231
        %v1296 = vpop.f32.mrf.mxu0
        %v1297 = vadd.f32 %v1267, %v1296
        %1298 = vdwg.mxu0
        %1299 = vset.pattern.permute.xlu0 1
        %1300 = vperm.xlu0 %1299, %v1251
        %v1301 = vpop.permute.xlu0 %1300
        %1303 = vset.pattern.permute.xlu0 1
        %1304 = vperm.xlu0 %1303, %v1254
        %v1305 = vpop.permute.xlu0 %1304
        %v1307 = vsel %vm779, %v1301, 0.0
        %v1308 = vsel %vm780, %v1305, 0.0
        %v1309 = vadd.f32 %v1294, %v1307
        %v1310 = vadd.f32 %v1297, %v1308
        %1311 = vset.pattern.permute.xlu0 2
        %1312 = vperm.xlu0 %1311, %v1251
        %v1313 = vpop.permute.xlu0 %1312
        %1315 = vset.pattern.permute.xlu0 2
        %1316 = vperm.xlu0 %1315, %v1254
        %v1317 = vpop.permute.xlu0 %1316
        %v1319 = vsel %vm781, %v1313, 0.0
        %v1320 = vsel %vm782, %v1317, 0.0
        %v1321 = vadd.f32 %v1309, %v1319
        %v1322 = vadd.f32 %v1310, %v1320
        %1323 = vset.pattern.permute.xlu0 3
        %1324 = vperm.xlu0 %1323, %v1251
        %v1325 = vpop.permute.xlu0 %1324
        %1327 = vset.pattern.permute.xlu0 3
        %1328 = vperm.xlu0 %1327, %v1254
        %v1329 = vpop.permute.xlu0 %1328
        %v1331 = vsel %vm783, %v1325, 0.0
        %v1332 = vsel %vm784, %v1329, 0.0
        %v1333 = vadd.f32 %v1321, %v1331
        %v1334 = vadd.f32 %v1322, %v1332
        %1335 = vset.pattern.permute.xlu0 4
        %1336 = vperm.xlu0 %1335, %v1251
        %v1337 = vpop.permute.xlu0 %1336
        %1339 = vset.pattern.permute.xlu0 4
        %1340 = vperm.xlu0 %1339, %v1254
        %v1341 = vpop.permute.xlu0 %1340
        %v1343 = vsel %vm785, %v1337, 0.0
        %v1344 = vsel %vm786, %v1341, 0.0
        %v1345 = vadd.f32 %v1333, %v1343
        %v1346 = vadd.f32 %v1334, %v1344
        %1347 = vset.pattern.permute.xlu0 5
        %1348 = vperm.xlu0 %1347, %v1251
        %v1349 = vpop.permute.xlu0 %1348
        %1351 = vset.pattern.permute.xlu0 5
        %1352 = vperm.xlu0 %1351, %v1254
        %v1353 = vpop.permute.xlu0 %1352
        %v1355 = vsel %vm787, %v1349, 0.0
        %v1356 = vsel %vm788, %v1353, 0.0
        %v1357 = vadd.f32 %v1345, %v1355
        %v1358 = vadd.f32 %v1346, %v1356
        %1359 = vset.pattern.permute.xlu0 6
        %1360 = vperm.xlu0 %1359, %v1251
        %v1361 = vpop.permute.xlu0 %1360
        %1363 = vset.pattern.permute.xlu0 6
        %1364 = vperm.xlu0 %1363, %v1254
        %v1365 = vpop.permute.xlu0 %1364
        %v1367 = vsel %vm789, %v1361, 0.0
        %v1368 = vsel %vm790, %v1365, 0.0
        %v1369 = vadd.f32 %v1357, %v1367
        %v1370 = vadd.f32 %v1358, %v1368
        %1371 = vset.pattern.permute.xlu0 7
        %1372 = vperm.xlu0 %1371, %v1251
        %v1373 = vpop.permute.xlu0 %1372
        %1375 = vset.pattern.permute.xlu0 7
        %1376 = vperm.xlu0 %1375, %v1254
        %v1377 = vpop.permute.xlu0 %1376
        %v1379 = vsel %vm791, %v1373, 0.0
        %v1380 = vsel %vm792, %v1377, 0.0
        %v1381 = vadd.f32 %v1369, %v1379
        %v1382 = vadd.f32 %v1370, %v1380
        %1383 = vset.pattern.permute.xlu0 8
        %1384 = vperm.xlu0 %1383, %v1251
        %v1385 = vpop.permute.xlu0 %1384
        %1387 = vset.pattern.permute.xlu0 8
        %1388 = vperm.xlu0 %1387, %v1254
        %v1389 = vpop.permute.xlu0 %1388
        %v1391 = vsel %vm793, %v1385, 0.0
        %v1392 = vsel %vm794, %v1389, 0.0
        %v1393 = vadd.f32 %v1381, %v1391
        %v1394 = vadd.f32 %v1382, %v1392
        %v1395 = vsel %vm1007, %v1393, -10000.0
        %v1396 = vsel %vm1008, %v1394, -10000.0
        %v1397 = vsel %vm836, %v1395, -inf
        %1398 = vmax.xlane.f32.xlu0 %v1397
        %v1399 = vpop.xlane.xlu0 %1398
        %v1400 = vsel %vm836, %v1396, -inf
        %1401 = vmax.xlane.f32.xlu0 %v1400
        %v1402 = vpop.xlane.xlu0 %1401
        %v1403 = vsub.f32 %v1395, %v1399
        %v1404 = vsub.f32 %v1396, %v1402
        %v1405 = vmul.f32 %v1403, 1.442695
        %v1406 = vpow.pop %v1405
        %v1407 = vmul.f32 %v1404, 1.442695
        %v1408 = vpow.pop %v1407
        %v1409 = vsel %vm836, %v1406, 0.0
        %1410 = vadd.xlane.f32.xlu0 %v1409
        %v1411 = vpop.xlane.xlu0 %1410
        %v1412 = vsel %vm836, %v1408, 0.0
        %1413 = vadd.xlane.f32.xlu0 %v1412
        %v1414 = vpop.xlane.xlu0 %1413
        %v1415 = vrcp.pop %v1411
        %v1416 = vmul.f32 %v1411, %v1415
        %v1417 = vsub.f32 1.0, %v1416
        %v1418 = vmul.f32 %v1415, %v1417
        %v1419 = vadd.f32 %v1415, %v1418
        %vm1420 = vweird.f32 %v1411
        %vm1421 = vweird.f32 %v1415
        %vm1422 = vmor %vm1420, %vm1421
        %v1423 = vsel %vm1422, %v1415, %v1419
        %v1424 = vand.u32 2147483647, %v1411
        %vm1425 = vcmp.eq.f32.partialorder %v1424, 8.507059e+37
        %v1426 = vand.u32 %v1411, 2147483648
        %v1427 = vor.u32 1.1754944e-38, %v1426
        %v1428 = vsel %vm1425, %v1427, %v1423
        %v1429 = vmul.f32 %v1406, %v1428
        %v1430 = vrcp.pop %v1414
        %v1431 = vmul.f32 %v1414, %v1430
        %v1432 = vsub.f32 1.0, %v1431
        %v1433 = vmul.f32 %v1430, %v1432
        %v1434 = vadd.f32 %v1430, %v1433
        %vm1435 = vweird.f32 %v1414
        %vm1436 = vweird.f32 %v1430
        %vm1437 = vmor %vm1435, %vm1436
        %v1438 = vsel %vm1437, %v1430, %v1434
        %v1439 = vand.u32 2147483647, %v1414
        %vm1440 = vcmp.eq.f32.partialorder %v1439, 8.507059e+37
        %v1441 = vand.u32 %v1414, 2147483648
        %v1442 = vor.u32 1.1754944e-38, %v1441
        %v1443 = vsel %vm1440, %v1442, %v1438
        %v1444 = vmul.f32 %v1408, %v1443
        %v1445 = vsel %vm777, %v1429, 0.0
        %v1446 = vsel %vm778, %v1444, 0.0
        %v1447 = vsel %vm836, %v1445, 0.0
        %1448 = vadd.xlane.f32.xlu0 %v1447
        %v1449 = vpop.xlane.xlu0 %1448
        %v1450 = vsel %vm836, %v1446, 0.0
        %1451 = vadd.xlane.f32.xlu0 %v1450
        %v1452 = vpop.xlane.xlu0 %1451
        %v1453 = vsel %vm779, %v1429, 0.0
        %v1454 = vsel %vm780, %v1444, 0.0
        %v1455 = vsel %vm836, %v1453, 0.0
        %1456 = vadd.xlane.f32.xlu0 %v1455
        %v1457 = vpop.xlane.xlu0 %1456
        %v1458 = vsel %vm836, %v1454, 0.0
        %1459 = vadd.xlane.f32.xlu0 %v1458
        %v1460 = vpop.xlane.xlu0 %1459
        %v1461 = vsel %vm781, %v1429, 0.0
        %v1462 = vsel %vm782, %v1444, 0.0
        %v1463 = vsel %vm836, %v1461, 0.0
        %1464 = vadd.xlane.f32.xlu0 %v1463
        %v1465 = vpop.xlane.xlu0 %1464
        %v1466 = vsel %vm836, %v1462, 0.0
        %1467 = vadd.xlane.f32.xlu0 %v1466
        %v1468 = vpop.xlane.xlu0 %1467
        %v1469 = vsel %vm783, %v1429, 0.0
        %v1470 = vsel %vm784, %v1444, 0.0
        %v1471 = vsel %vm836, %v1469, 0.0
        %1472 = vadd.xlane.f32.xlu0 %v1471
        %v1473 = vpop.xlane.xlu0 %1472
        %v1474 = vsel %vm836, %v1470, 0.0
        %1475 = vadd.xlane.f32.xlu0 %v1474
        %v1476 = vpop.xlane.xlu0 %1475
        %v1477 = vsel %vm785, %v1429, 0.0
        %v1478 = vsel %vm786, %v1444, 0.0
        %v1479 = vsel %vm836, %v1477, 0.0
        %1480 = vadd.xlane.f32.xlu0 %v1479
        %v1481 = vpop.xlane.xlu0 %1480
        %v1482 = vsel %vm836, %v1478, 0.0
        %1483 = vadd.xlane.f32.xlu0 %v1482
        %v1484 = vpop.xlane.xlu0 %1483
        %v1485 = vsel %vm787, %v1429, 0.0
        %v1486 = vsel %vm788, %v1444, 0.0
        %v1487 = vsel %vm836, %v1485, 0.0
        %1488 = vadd.xlane.f32.xlu0 %v1487
        %v1489 = vpop.xlane.xlu0 %1488
        %v1490 = vsel %vm836, %v1486, 0.0
        %1491 = vadd.xlane.f32.xlu0 %v1490
        %v1492 = vpop.xlane.xlu0 %1491
        %v1493 = vsel %vm789, %v1429, 0.0
        %v1494 = vsel %vm790, %v1444, 0.0
        %v1495 = vsel %vm836, %v1493, 0.0
        %1496 = vadd.xlane.f32.xlu0 %v1495
        %v1497 = vpop.xlane.xlu0 %1496
        %v1498 = vsel %vm836, %v1494, 0.0
        %1499 = vadd.xlane.f32.xlu0 %v1498
        %v1500 = vpop.xlane.xlu0 %1499
        %v1501 = vsel %vm791, %v1429, 0.0
        %v1502 = vsel %vm792, %v1444, 0.0
        %v1503 = vsel %vm836, %v1501, 0.0
        %1504 = vadd.xlane.f32.xlu0 %v1503
        %v1505 = vpop.xlane.xlu0 %1504
        %v1506 = vsel %vm836, %v1502, 0.0
        %1507 = vadd.xlane.f32.xlu0 %v1506
        %v1508 = vpop.xlane.xlu0 %1507
        %v1509 = vsel %vm793, %v1429, 0.0
        %v1510 = vsel %vm794, %v1444, 0.0
        %v1511 = vsel %vm836, %v1509, 0.0
        %1512 = vadd.xlane.f32.xlu0 %v1511
        %v1513 = vpop.xlane.xlu0 %1512
        %v1514 = vsel %vm836, %v1510, 0.0
        %1515 = vadd.xlane.f32.xlu0 %v1514
        %v1516 = vpop.xlane.xlu0 %1515
        %v1517 = vsel %vm1131, %v1449, %v1457
        %v1518 = vsel %vm1131, %v1452, %v1460
        %v1519 = vsel %vm1134, %v1517, %v1465
        %v1520 = vsel %vm1134, %v1518, %v1468
        %v1521 = vsel %vm1137, %v1519, %v1473
        %v1522 = vsel %vm1137, %v1520, %v1476
        %v1523 = vsel %vm717, %v1521, %v1481
        %v1524 = vsel %vm717, %v1522, %v1484
        %v1525 = vsel %vm1142, %v1523, %v1489
        %v1526 = vsel %vm1142, %v1524, %v1492
        %v1527 = vsel %vm1145, %v1525, %v1497
        %v1528 = vsel %vm1145, %v1526, %v1500
        %v1529 = vsel %vm1148, %v1527, %v1505
        %v1530 = vsel %vm1148, %v1528, %v1508
        %v1531 = vsel %vm1151, %v1529, %v1513
        %v1532 = vsel %vm1151, %v1530, %v1516
        %v1534 = vsel %vm1156, %v1531, 0
        %v1537 = vsel %vm1156, %v1532, 0
        %1539 = vmatpush.msra.mxu0 0.0
        %1540 = vmatpush.msra.mxu0 0.0
        %1541 = vmatpush.msra.mxu0 0.0
        %1542 = vmatpush.msra.mxu0 0.0
        %1543 = vmatpush.msra.mxu0 0.0
        %1544 = vmatpush.msra.mxu0 0.0
        %1545 = vmatpush.msra.mxu0 0.0
        %1546 = vmatpush.msra.mxu0 0.0
        %1547 = vmatpush.msra.mxu0 0.0
        %1548 = vmatpush.msra.mxu0 0.0
        %1549 = vmatpush.msra.mxu0 0.0
        %1550 = vmatpush.msra.mxu0 0.0
        %1551 = vmatpush.msra.mxu0 0.0
        %1552 = vmatpush.msra.mxu0 0.0
        %1553 = vmatpush.msra.mxu0 %v1165
        %1554 = vmatpush.msra.mxu0 %v1154
        %1555 = vmatmul.f32.gmra.mxu0 %v1534
        %v1556 = vpop.f32.mrf.mxu0
        %v1557 = vadd.f32 0.0, %v1556
        %1558 = vmatmul.f32.gmra.mxu0 %v1537
        %v1559 = vpop.f32.mrf.mxu0
        %v1560 = vadd.f32 0.0, %v1559
        %1561 = vdwg.mxu0
        %1562 = vrot.lane.b32.xlu0 %v827, 48
        %v1563 = vpop.permute.xlu0 %1562
        %1564 = vrot.lane.b32.xlu0 %v830, 48
        %v1565 = vpop.permute.xlu0 %1564
        %v1569 = vsel %vm836, %v1429, 0
        %v1572 = vsel %vm836, %v1444, 0
        %1574 = vmatpush.msra.mxu0 0.0
        %1575 = vmatpush.msra.mxu0 0.0
        %1576 = vmatpush.msra.mxu0 0.0
        %1577 = vmatpush.msra.mxu0 0.0
        %1578 = vmatpush.msra.mxu0 0.0
        %1579 = vmatpush.msra.mxu0 0.0
        %1580 = vmatpush.msra.mxu0 0.0
        %1581 = vmatpush.msra.mxu0 0.0
        %1582 = vmatpush.msra.mxu0 0.0
        %1583 = vmatpush.msra.mxu0 0.0
        %1584 = vmatpush.msra.mxu0 0.0
        %1585 = vmatpush.msra.mxu0 0.0
        %1586 = vmatpush.msra.mxu0 0.0
        %1587 = vmatpush.msra.mxu0 0.0
        %1588 = vmatpush.msra.mxu0 %v1565
        %1589 = vmatpush.msra.mxu0 %v1563
        %1590 = vmatmul.f32.gmra.mxu0 %v1569
        %v1591 = vpop.f32.mrf.mxu0
        %v1592 = vadd.f32 %v1557, %v1591
        %1593 = vmatmul.f32.gmra.mxu0 %v1572
        %v1594 = vpop.f32.mrf.mxu0
        %v1595 = vadd.f32 %v1560, %v1594
        %1596 = vdwg.mxu0
        %1599 = vrot.lane.b32.xlu0 %v1592, 16
        %v1600 = vpop.permute.xlu0 %1599
        %1601 = vrot.lane.b32.xlu0 %v1595, 16
        %v1602 = vpop.permute.xlu0 %1601
        %v1605 = vsel %vm836, %v1220, %v1600
        %v1606 = vsel %vm836, %v1223, %v1602
        %v1607 = vld [vmem:[%s9] sm:$0xff]
        %v1608 = vld [vmem:[%s9 + $0x8] sm:$0xff]
        %v1609 = vld [vmem:[%s9 + $0x10] sm:$0xff]
        %v1610 = vld [vmem:[%s9 + $0x18] sm:$0xff]
        %v1611 = vld [vmem:[%s10] sm:$0x1]
        %v1613 = vperm.slane %v1611, 0
        %v1616 = vsel %vm707, %v1605, 0
        %v1619 = vsel %vm707, %v1606, 0
        %1621 = vmatpush.msra.mxu0 0.0
        %1622 = vmatpush.msra.mxu0 0.0
        %1623 = vmatpush.msra.mxu0 0.0
        %1624 = vmatpush.msra.mxu0 0.0
        %1625 = vmatpush.msra.mxu0 0.0
        %1626 = vmatpush.msra.mxu0 0.0
        %1627 = vmatpush.msra.mxu0 0.0
        %1628 = vmatpush.msra.mxu0 0.0
        %1629 = vmatpush.msra.mxu0 0.0
        %1630 = vmatpush.msra.mxu0 0.0
        %1631 = vmatpush.msra.mxu0 0.0
        %1632 = vmatpush.msra.mxu0 0.0
        %1633 = vmatpush.msra.mxu0 %v1610
        %1634 = vmatpush.msra.mxu0 %v1609
        %1635 = vmatpush.msra.mxu0 %v1608
        %1636 = vmatpush.msra.mxu0 %v1607
        %1637 = vmatmul.f32.gmra.mxu0 %v1616
        %v1638 = vpop.f32.mrf.mxu0
        %v1639 = vadd.f32 %v1613, %v1638
        %1640 = vmatmul.f32.gmra.mxu0 %v1619
        %v1641 = vpop.f32.mrf.mxu0
        %v1642 = vadd.f32 %v1613, %v1641
        %1643 = vdwg.mxu0
        %v1644 = vadd.f32 %v763, %v1639
        %v1645 = vadd.f32 %v764, %v1642
        %v1646 = vld [vmem:[%s11] sm:$0x1]
        %v1647 = vld [vmem:[%s12] sm:$0x1]
        %v1648 = vsel %vm707, %v1644, 0.0
        %1649 = vadd.xlane.f32.xlu0 %v1648
        %v1650 = vpop.xlane.xlu0 %1649
        %v1651 = vsel %vm707, %v1645, 0.0
        %1652 = vadd.xlane.f32.xlu0 %v1651
        %v1653 = vpop.xlane.xlu0 %1652
        %v1654 = vrcp.pop 32.0
        %v1655 = vmul.f32 32.0, %v1654
        %v1656 = vsub.f32 1.0, %v1655
        %v1657 = vmul.f32 %v1654, %v1656
        %v1658 = vadd.f32 %v1654, %v1657
        %vm1659 = vweird.f32 %v1654
        %v1660 = vsel %vm1659, %v1654, %v1658
        %v1661 = vmul.f32 %v1650, %v1660
        %v1662 = vmul.f32 %v1653, %v1660
        %v1663 = vsub.f32 %v1644, %v1661
        %v1664 = vsub.f32 %v1645, %v1662
        %v1665 = vmul.f32 %v1663, %v1663
        %v1666 = vmul.f32 %v1664, %v1664
        %v1667 = vsel %vm707, %v1665, 0.0
        %1668 = vadd.xlane.f32.xlu0 %v1667
        %v1669 = vpop.xlane.xlu0 %1668
        %v1670 = vsel %vm707, %v1666, 0.0
        %1671 = vadd.xlane.f32.xlu0 %v1670
        %v1672 = vpop.xlane.xlu0 %1671
        %v1673 = vmul.f32 %v1669, %v1660
        %v1674 = vmul.f32 %v1672, %v1660
        %v1675 = vadd.f32 %v1673, 1e-05
        %v1676 = vadd.f32 %v1674, 1e-05
        %v1677 = vrsqrt.pop %v1675
        %v1678 = vmul.f32 %v1677, %v1675
        %v1679 = vmul.f32 %v1678, %v1677
        %v1680 = vmul.f32 0.5, %v1679
        %v1681 = vsub.f32 1.5, %v1680
        %v1682 = vmul.f32 %v1677, %v1681
        %vm1683 = vweird.f32 %v1675
        %vm1684 = vweird.f32 %v1677
        %vm1685 = vmor %vm1683, %vm1684
        %v1686 = vsel %vm1685, %v1677, %v1682
        %v1687 = vrsqrt.pop %v1676
        %v1688 = vmul.f32 %v1687, %v1676
        %v1689 = vmul.f32 %v1688, %v1687
        %v1690 = vmul.f32 0.5, %v1689
        %v1691 = vsub.f32 1.5, %v1690
        %v1692 = vmul.f32 %v1687, %v1691
        %vm1693 = vweird.f32 %v1676
        %vm1694 = vweird.f32 %v1687
        %vm1695 = vmor %vm1693, %vm1694
        %v1696 = vsel %vm1695, %v1687, %v1692
        %v1697 = vmul.f32 %v1663, %v1686
        %v1698 = vmul.f32 %v1664, %v1696
        %v1700 = vperm.slane %v1646, 0
        %v1702 = vmul.f32 %v1697, %v1700
        %v1703 = vmul.f32 %v1698, %v1700
        %v1705 = vperm.slane %v1647, 0
        %v1707 = vadd.f32 %v1702, %v1705
        %v1708 = vadd.f32 %v1703, %v1705
        %v1709 = vmul.f32 %v1707, %v754
        %v1710 = vmul.f32 %v1708, %v759
        %v1711 = vld [vmem:[%s14] sm:$0x1]
        %1712 = vst.msk [vmem:[#allocation2 + $0x2] sm:$0xff] %vm707, %v1709
        %1713 = vst.msk [vmem:[#allocation2 + $0xa] sm:$0xff] %vm707, %v1710
        %v1715 = vperm.slane %v1711, 0
        %v1717 = vadd.f32 %v1715, 0.0
        %v1718 = vld [vmem:[#allocation2] sm:$0xff]
        %v1719 = vld [vmem:[#allocation2 + $0x8] sm:$0xff]
        %v1720 = vld [vmem:[#allocation8] sm:$0xff]
        %v1721 = vld [vmem:[#allocation8 + $0x8] sm:$0xff]
        %v1722 = vld [vmem:[#allocation8 + $0x10] sm:$0xff]
        %v1723 = vld [vmem:[#allocation8 + $0x18] sm:$0xff]
        %v1725 = vsel %vm707, %v1718, 0
        %v1728 = vsel %vm707, %v1719, 0
        %1730 = vmatpush.msra.mxu0 0.0
        %1731 = vmatpush.msra.mxu0 0.0
        %1732 = vmatpush.msra.mxu0 0.0
        %1733 = vmatpush.msra.mxu0 0.0
        %1734 = vmatpush.msra.mxu0 0.0
        %1735 = vmatpush.msra.mxu0 0.0
        %1736 = vmatpush.msra.mxu0 0.0
        %1737 = vmatpush.msra.mxu0 0.0
        %1738 = vmatpush.msra.mxu0 0.0
        %1739 = vmatpush.msra.mxu0 0.0
        %1740 = vmatpush.msra.mxu0 0.0
        %1741 = vmatpush.msra.mxu0 0.0
        %1742 = vmatpush.msra.mxu0 %v1723
        %1743 = vmatpush.msra.mxu0 %v1722
        %1744 = vmatpush.msra.mxu0 %v1721
        %1745 = vmatpush.msra.mxu0 %v1720
        %1746 = vmatmul.f32.gmra.mxu0 %v1725
        %v1747 = vpop.f32.mrf.mxu0
        %v1748 = vadd.f32 0.0, %v1747
        %1749 = vmatmul.f32.gmra.mxu0 %v1728
        %v1750 = vpop.f32.mrf.mxu0
        %v1751 = vadd.f32 0.0, %v1750
        %1752 = vdwg.mxu0
        %v1753 = vadd.f32 %v1717, %v1748
        %v1754 = vadd.f32 %v1717, %v1751
        %v1755 = vld [vmem:[#allocation2 + $0x1] sm:$0xff]
        %v1756 = vld [vmem:[#allocation2 + $0x9] sm:$0xff]
        %s1757 = scalar_lea.vmem [#allocation8], 32
        %v1758 = vld [vmem:[%s1757] sm:$0xff]
        %v1759 = vld [vmem:[%s1757 + $0x8] sm:$0xff]
        %v1760 = vld [vmem:[%s1757 + $0x10] sm:$0xff]
        %v1761 = vld [vmem:[%s1757 + $0x18] sm:$0xff]
        %v1763 = vsel %vm707, %v1755, 0
        %v1766 = vsel %vm707, %v1756, 0
        %1768 = vmatpush.msra.mxu0 0.0
        %1769 = vmatpush.msra.mxu0 0.0
        %1770 = vmatpush.msra.mxu0 0.0
        %1771 = vmatpush.msra.mxu0 0.0
        %1772 = vmatpush.msra.mxu0 0.0
        %1773 = vmatpush.msra.mxu0 0.0
        %1774 = vmatpush.msra.mxu0 0.0
        %1775 = vmatpush.msra.mxu0 0.0
        %1776 = vmatpush.msra.mxu0 0.0
        %1777 = vmatpush.msra.mxu0 0.0
        %1778 = vmatpush.msra.mxu0 0.0
        %1779 = vmatpush.msra.mxu0 0.0
        %1780 = vmatpush.msra.mxu0 %v1761
        %1781 = vmatpush.msra.mxu0 %v1760
        %1782 = vmatpush.msra.mxu0 %v1759
        %1783 = vmatpush.msra.mxu0 %v1758
        %1784 = vmatmul.f32.gmra.mxu0 %v1763
        %v1785 = vpop.f32.mrf.mxu0
        %v1786 = vadd.f32 0.0, %v1785
        %1787 = vmatmul.f32.gmra.mxu0 %v1766
        %v1788 = vpop.f32.mrf.mxu0
        %v1789 = vadd.f32 0.0, %v1788
        %1790 = vdwg.mxu0
        %v1791 = vadd.f32 %v1753, %v1786
        %v1792 = vadd.f32 %v1754, %v1789
        %v1793 = vld [vmem:[#allocation2 + $0x2] sm:$0xff]
        %v1794 = vld [vmem:[#allocation2 + $0xa] sm:$0xff]
        %s1795 = scalar_lea.vmem [#allocation8], 64
        %v1796 = vld [vmem:[%s1795] sm:$0xff]
        %v1797 = vld [vmem:[%s1795 + $0x8] sm:$0xff]
        %v1798 = vld [vmem:[%s1795 + $0x10] sm:$0xff]
        %v1799 = vld [vmem:[%s1795 + $0x18] sm:$0xff]
        %v1801 = vsel %vm707, %v1793, 0
        %v1804 = vsel %vm707, %v1794, 0
        %1806 = vmatpush.msra.mxu0 0.0
        %1807 = vmatpush.msra.mxu0 0.0
        %1808 = vmatpush.msra.mxu0 0.0
        %1809 = vmatpush.msra.mxu0 0.0
        %1810 = vmatpush.msra.mxu0 0.0
        %1811 = vmatpush.msra.mxu0 0.0
        %1812 = vmatpush.msra.mxu0 0.0
        %1813 = vmatpush.msra.mxu0 0.0
        %1814 = vmatpush.msra.mxu0 0.0
        %1815 = vmatpush.msra.mxu0 0.0
        %1816 = vmatpush.msra.mxu0 0.0
        %1817 = vmatpush.msra.mxu0 0.0
        %1818 = vmatpush.msra.mxu0 %v1799
        %1819 = vmatpush.msra.mxu0 %v1798
        %1820 = vmatpush.msra.mxu0 %v1797
        %1821 = vmatpush.msra.mxu0 %v1796
        %1822 = vmatmul.f32.gmra.mxu0 %v1801
        %v1823 = vpop.f32.mrf.mxu0
        %v1824 = vadd.f32 0.0, %v1823
        %1825 = vmatmul.f32.gmra.mxu0 %v1804
        %v1826 = vpop.f32.mrf.mxu0
        %v1827 = vadd.f32 0.0, %v1826
        %1828 = vdwg.mxu0
        %v1829 = vadd.f32 %v1791, %v1824
        %v1830 = vadd.f32 %v1792, %v1827
        %v1831 = vld [vmem:[#allocation2 + $0x3] sm:$0xff]
        %v1832 = vld [vmem:[#allocation2 + $0xb] sm:$0xff]
        %s1833 = scalar_lea.vmem [#allocation8], 96
        %v1834 = vld [vmem:[%s1833] sm:$0xff]
        %v1835 = vld [vmem:[%s1833 + $0x8] sm:$0xff]
        %v1836 = vld [vmem:[%s1833 + $0x10] sm:$0xff]
        %v1837 = vld [vmem:[%s1833 + $0x18] sm:$0xff]
        %v1839 = vsel %vm707, %v1831, 0
        %v1842 = vsel %vm707, %v1832, 0
        %1844 = vmatpush.msra.mxu0 0.0
        %1845 = vmatpush.msra.mxu0 0.0
        %1846 = vmatpush.msra.mxu0 0.0
        %1847 = vmatpush.msra.mxu0 0.0
        %1848 = vmatpush.msra.mxu0 0.0
        %1849 = vmatpush.msra.mxu0 0.0
        %1850 = vmatpush.msra.mxu0 0.0
        %1851 = vmatpush.msra.mxu0 0.0
        %1852 = vmatpush.msra.mxu0 0.0
        %1853 = vmatpush.msra.mxu0 0.0
        %1854 = vmatpush.msra.mxu0 0.0
        %1855 = vmatpush.msra.mxu0 0.0
        %1856 = vmatpush.msra.mxu0 %v1837
        %1857 = vmatpush.msra.mxu0 %v1836
        %1858 = vmatpush.msra.mxu0 %v1835
        %1859 = vmatpush.msra.mxu0 %v1834
        %1860 = vmatmul.f32.gmra.mxu0 %v1839
        %v1861 = vpop.f32.mrf.mxu0
        %v1862 = vadd.f32 0.0, %v1861
        %1863 = vmatmul.f32.gmra.mxu0 %v1842
        %v1864 = vpop.f32.mrf.mxu0
        %v1865 = vadd.f32 0.0, %v1864
        %1866 = vdwg.mxu0
        %v1867 = vadd.f32 %v1829, %v1862
        %v1868 = vadd.f32 %v1830, %v1865
        %v1869 = vld [vmem:[#allocation2 + $0x4] sm:$0xff]
        %v1870 = vld [vmem:[#allocation2 + $0xc] sm:$0xff]
        %s1871 = scalar_lea.vmem [#allocation8], 128
        %v1872 = vld [vmem:[%s1871] sm:$0xff]
        %v1873 = vld [vmem:[%s1871 + $0x8] sm:$0xff]
        %v1874 = vld [vmem:[%s1871 + $0x10] sm:$0xff]
        %v1875 = vld [vmem:[%s1871 + $0x18] sm:$0xff]
        %v1877 = vsel %vm707, %v1869, 0
        %v1880 = vsel %vm707, %v1870, 0
        %1882 = vmatpush.msra.mxu0 0.0
        %1883 = vmatpush.msra.mxu0 0.0
        %1884 = vmatpush.msra.mxu0 0.0
        %1885 = vmatpush.msra.mxu0 0.0
        %1886 = vmatpush.msra.mxu0 0.0
        %1887 = vmatpush.msra.mxu0 0.0
        %1888 = vmatpush.msra.mxu0 0.0
        %1889 = vmatpush.msra.mxu0 0.0
        %1890 = vmatpush.msra.mxu0 0.0
        %1891 = vmatpush.msra.mxu0 0.0
        %1892 = vmatpush.msra.mxu0 0.0
        %1893 = vmatpush.msra.mxu0 0.0
        %1894 = vmatpush.msra.mxu0 %v1875
        %1895 = vmatpush.msra.mxu0 %v1874
        %1896 = vmatpush.msra.mxu0 %v1873
        %1897 = vmatpush.msra.mxu0 %v1872
        %1898 = vmatmul.f32.gmra.mxu0 %v1877
        %v1899 = vpop.f32.mrf.mxu0
        %v1900 = vadd.f32 0.0, %v1899
        %1901 = vmatmul.f32.gmra.mxu0 %v1880
        %v1902 = vpop.f32.mrf.mxu0
        %v1903 = vadd.f32 0.0, %v1902
        %1904 = vdwg.mxu0
        %v1905 = vadd.f32 %v1867, %v1900
        %v1906 = vadd.f32 %v1868, %v1903
        %v1907 = vmax.f32 %v1905, 0.0
        %v1908 = vmax.f32 %v1906, 0.0
        %v1909 = vmul.f32 %v1907, %v754
        %v1910 = vmul.f32 %v1908, %v759
        %v1911 = vld [vmem:[%s16] sm:$0x1]
        %1912 = vst.msk [vmem:[#allocation2 + $0x2] sm:$0xff] %vm707, %v1909
        %1913 = vst.msk [vmem:[#allocation2 + $0xa] sm:$0xff] %vm707, %v1910
        %v1915 = vperm.slane %v1911, 0
        %v1917 = vadd.f32 %v1915, 0.0
        %v1918 = vld [vmem:[#allocation2] sm:$0xff]
        %v1919 = vld [vmem:[#allocation2 + $0x8] sm:$0xff]
        %v1920 = vld [vmem:[#allocation9] sm:$0xff]
        %v1921 = vld [vmem:[#allocation9 + $0x8] sm:$0xff]
        %v1922 = vld [vmem:[#allocation9 + $0x10] sm:$0xff]
        %v1923 = vld [vmem:[#allocation9 + $0x18] sm:$0xff]
        %v1925 = vsel %vm707, %v1918, 0
        %v1928 = vsel %vm707, %v1919, 0
        %1930 = vmatpush.msra.mxu0 0.0
        %1931 = vmatpush.msra.mxu0 0.0
        %1932 = vmatpush.msra.mxu0 0.0
        %1933 = vmatpush.msra.mxu0 0.0
        %1934 = vmatpush.msra.mxu0 0.0
        %1935 = vmatpush.msra.mxu0 0.0
        %1936 = vmatpush.msra.mxu0 0.0
        %1937 = vmatpush.msra.mxu0 0.0
        %1938 = vmatpush.msra.mxu0 0.0
        %1939 = vmatpush.msra.mxu0 0.0
        %1940 = vmatpush.msra.mxu0 0.0
        %1941 = vmatpush.msra.mxu0 0.0
        %1942 = vmatpush.msra.mxu0 %v1923
        %1943 = vmatpush.msra.mxu0 %v1922
        %1944 = vmatpush.msra.mxu0 %v1921
        %1945 = vmatpush.msra.mxu0 %v1920
        %1946 = vmatmul.f32.gmra.mxu0 %v1925
        %v1947 = vpop.f32.mrf.mxu0
        %v1948 = vadd.f32 0.0, %v1947
        %1949 = vmatmul.f32.gmra.mxu0 %v1928
        %v1950 = vpop.f32.mrf.mxu0
        %v1951 = vadd.f32 0.0, %v1950
        %1952 = vdwg.mxu0
        %v1953 = vadd.f32 %v1917, %v1948
        %v1954 = vadd.f32 %v1917, %v1951
        %v1955 = vld [vmem:[#allocation2 + $0x1] sm:$0xff]
        %v1956 = vld [vmem:[#allocation2 + $0x9] sm:$0xff]
        %s1957 = scalar_lea.vmem [#allocation9], 32
        %v1958 = vld [vmem:[%s1957] sm:$0xff]
        %v1959 = vld [vmem:[%s1957 + $0x8] sm:$0xff]
        %v1960 = vld [vmem:[%s1957 + $0x10] sm:$0xff]
        %v1961 = vld [vmem:[%s1957 + $0x18] sm:$0xff]
        %v1963 = vsel %vm707, %v1955, 0
        %v1966 = vsel %vm707, %v1956, 0
        %1968 = vmatpush.msra.mxu0 0.0
        %1969 = vmatpush.msra.mxu0 0.0
        %1970 = vmatpush.msra.mxu0 0.0
        %1971 = vmatpush.msra.mxu0 0.0
        %1972 = vmatpush.msra.mxu0 0.0
        %1973 = vmatpush.msra.mxu0 0.0
        %1974 = vmatpush.msra.mxu0 0.0
        %1975 = vmatpush.msra.mxu0 0.0
        %1976 = vmatpush.msra.mxu0 0.0
        %1977 = vmatpush.msra.mxu0 0.0
        %1978 = vmatpush.msra.mxu0 0.0
        %1979 = vmatpush.msra.mxu0 0.0
        %1980 = vmatpush.msra.mxu0 %v1961
        %1981 = vmatpush.msra.mxu0 %v1960
        %1982 = vmatpush.msra.mxu0 %v1959
        %1983 = vmatpush.msra.mxu0 %v1958
        %1984 = vmatmul.f32.gmra.mxu0 %v1963
        %v1985 = vpop.f32.mrf.mxu0
        %v1986 = vadd.f32 0.0, %v1985
        %1987 = vmatmul.f32.gmra.mxu0 %v1966
        %v1988 = vpop.f32.mrf.mxu0
        %v1989 = vadd.f32 0.0, %v1988
        %1990 = vdwg.mxu0
        %v1991 = vadd.f32 %v1953, %v1986
        %v1992 = vadd.f32 %v1954, %v1989
        %v1993 = vld [vmem:[#allocation2 + $0x2] sm:$0xff]
        %v1994 = vld [vmem:[#allocation2 + $0xa] sm:$0xff]
        %s1995 = scalar_lea.vmem [#allocation9], 64
        %v1996 = vld [vmem:[%s1995] sm:$0xff]
        %v1997 = vld [vmem:[%s1995 + $0x8] sm:$0xff]
        %v1998 = vld [vmem:[%s1995 + $0x10] sm:$0xff]
        %v1999 = vld [vmem:[%s1995 + $0x18] sm:$0xff]
        %v2001 = vsel %vm707, %v1993, 0
        %v2004 = vsel %vm707, %v1994, 0
        %2006 = vmatpush.msra.mxu0 0.0
        %2007 = vmatpush.msra.mxu0 0.0
        %2008 = vmatpush.msra.mxu0 0.0
        %2009 = vmatpush.msra.mxu0 0.0
        %2010 = vmatpush.msra.mxu0 0.0
        %2011 = vmatpush.msra.mxu0 0.0
        %2012 = vmatpush.msra.mxu0 0.0
        %2013 = vmatpush.msra.mxu0 0.0
        %2014 = vmatpush.msra.mxu0 0.0
        %2015 = vmatpush.msra.mxu0 0.0
        %2016 = vmatpush.msra.mxu0 0.0
        %2017 = vmatpush.msra.mxu0 0.0
        %2018 = vmatpush.msra.mxu0 %v1999
        %2019 = vmatpush.msra.mxu0 %v1998
        %2020 = vmatpush.msra.mxu0 %v1997
        %2021 = vmatpush.msra.mxu0 %v1996
        %2022 = vmatmul.f32.gmra.mxu0 %v2001
        %v2023 = vpop.f32.mrf.mxu0
        %v2024 = vadd.f32 0.0, %v2023
        %2025 = vmatmul.f32.gmra.mxu0 %v2004
        %v2026 = vpop.f32.mrf.mxu0
        %v2027 = vadd.f32 0.0, %v2026
        %2028 = vdwg.mxu0
        %v2029 = vadd.f32 %v1991, %v2024
        %v2030 = vadd.f32 %v1992, %v2027
        %v2031 = vld [vmem:[#allocation2 + $0x3] sm:$0xff]
        %v2032 = vld [vmem:[#allocation2 + $0xb] sm:$0xff]
        %s2033 = scalar_lea.vmem [#allocation9], 96
        %v2034 = vld [vmem:[%s2033] sm:$0xff]
        %v2035 = vld [vmem:[%s2033 + $0x8] sm:$0xff]
        %v2036 = vld [vmem:[%s2033 + $0x10] sm:$0xff]
        %v2037 = vld [vmem:[%s2033 + $0x18] sm:$0xff]
        %v2039 = vsel %vm707, %v2031, 0
        %v2042 = vsel %vm707, %v2032, 0
        %2044 = vmatpush.msra.mxu0 0.0
        %2045 = vmatpush.msra.mxu0 0.0
        %2046 = vmatpush.msra.mxu0 0.0
        %2047 = vmatpush.msra.mxu0 0.0
        %2048 = vmatpush.msra.mxu0 0.0
        %2049 = vmatpush.msra.mxu0 0.0
        %2050 = vmatpush.msra.mxu0 0.0
        %2051 = vmatpush.msra.mxu0 0.0
        %2052 = vmatpush.msra.mxu0 0.0
        %2053 = vmatpush.msra.mxu0 0.0
        %2054 = vmatpush.msra.mxu0 0.0
        %2055 = vmatpush.msra.mxu0 0.0
        %2056 = vmatpush.msra.mxu0 %v2037
        %2057 = vmatpush.msra.mxu0 %v2036
        %2058 = vmatpush.msra.mxu0 %v2035
        %2059 = vmatpush.msra.mxu0 %v2034
        %2060 = vmatmul.f32.gmra.mxu0 %v2039
        %v2061 = vpop.f32.mrf.mxu0
        %v2062 = vadd.f32 0.0, %v2061
        %2063 = vmatmul.f32.gmra.mxu0 %v2042
        %v2064 = vpop.f32.mrf.mxu0
        %v2065 = vadd.f32 0.0, %v2064
        %2066 = vdwg.mxu0
        %v2067 = vadd.f32 %v2029, %v2062
        %v2068 = vadd.f32 %v2030, %v2065
        %v2069 = vld [vmem:[#allocation2 + $0x4] sm:$0xff]
        %v2070 = vld [vmem:[#allocation2 + $0xc] sm:$0xff]
        %s2071 = scalar_lea.vmem [#allocation9], 128
        %v2072 = vld [vmem:[%s2071] sm:$0xff]
        %v2073 = vld [vmem:[%s2071 + $0x8] sm:$0xff]
        %v2074 = vld [vmem:[%s2071 + $0x10] sm:$0xff]
        %v2075 = vld [vmem:[%s2071 + $0x18] sm:$0xff]
        %v2077 = vsel %vm707, %v2069, 0
        %v2080 = vsel %vm707, %v2070, 0
        %2082 = vmatpush.msra.mxu0 0.0
        %2083 = vmatpush.msra.mxu0 0.0
        %2084 = vmatpush.msra.mxu0 0.0
        %2085 = vmatpush.msra.mxu0 0.0
        %2086 = vmatpush.msra.mxu0 0.0
        %2087 = vmatpush.msra.mxu0 0.0
        %2088 = vmatpush.msra.mxu0 0.0
        %2089 = vmatpush.msra.mxu0 0.0
        %2090 = vmatpush.msra.mxu0 0.0
        %2091 = vmatpush.msra.mxu0 0.0
        %2092 = vmatpush.msra.mxu0 0.0
        %2093 = vmatpush.msra.mxu0 0.0
        %2094 = vmatpush.msra.mxu0 %v2075
        %2095 = vmatpush.msra.mxu0 %v2074
        %2096 = vmatpush.msra.mxu0 %v2073
        %2097 = vmatpush.msra.mxu0 %v2072
        %2098 = vmatmul.f32.gmra.mxu0 %v2077
        %v2099 = vpop.f32.mrf.mxu0
        %v2100 = vadd.f32 0.0, %v2099
        %2101 = vmatmul.f32.gmra.mxu0 %v2080
        %v2102 = vpop.f32.mrf.mxu0
        %v2103 = vadd.f32 0.0, %v2102
        %2104 = vdwg.mxu0
        %v2105 = vadd.f32 %v2067, %v2100
        %v2106 = vadd.f32 %v2068, %v2103
        %v2107 = vmul.f32 %v2105, %v754
        %v2108 = vmul.f32 %v2106, %v759
        %v2109 = vadd.f32 %v1707, %v2107
        %v2110 = vadd.f32 %v1708, %v2108
        %v2111 = vld [vmem:[%s17] sm:$0x1]
        %v2112 = vld [vmem:[%s18] sm:$0x1]
        %v2113 = vsel %vm707, %v2109, 0.0
        %2114 = vadd.xlane.f32.xlu0 %v2113
        %v2115 = vpop.xlane.xlu0 %2114
        %v2116 = vsel %vm707, %v2110, 0.0
        %2117 = vadd.xlane.f32.xlu0 %v2116
        %v2118 = vpop.xlane.xlu0 %2117
        %v2119 = vmul.f32 %v2115, %v1660
        %v2120 = vmul.f32 %v2118, %v1660
        %v2121 = vsub.f32 %v2109, %v2119
        %v2122 = vsub.f32 %v2110, %v2120
        %v2123 = vmul.f32 %v2121, %v2121
        %v2124 = vmul.f32 %v2122, %v2122
        %v2125 = vsel %vm707, %v2123, 0.0
        %2126 = vadd.xlane.f32.xlu0 %v2125
        %v2127 = vpop.xlane.xlu0 %2126
        %v2128 = vsel %vm707, %v2124, 0.0
        %2129 = vadd.xlane.f32.xlu0 %v2128
        %v2130 = vpop.xlane.xlu0 %2129
        %v2131 = vmul.f32 %v2127, %v1660
        %v2132 = vmul.f32 %v2130, %v1660
        %v2133 = vadd.f32 %v2131, 1e-05
        %v2134 = vadd.f32 %v2132, 1e-05
        %v2135 = vrsqrt.pop %v2133
        %v2136 = vmul.f32 %v2135, %v2133
        %v2137 = vmul.f32 %v2136, %v2135
        %v2138 = vmul.f32 0.5, %v2137
        %v2139 = vsub.f32 1.5, %v2138
        %v2140 = vmul.f32 %v2135, %v2139
        %vm2141 = vweird.f32 %v2133
        %vm2142 = vweird.f32 %v2135
        %vm2143 = vmor %vm2141, %vm2142
        %v2144 = vsel %vm2143, %v2135, %v2140
        %v2145 = vrsqrt.pop %v2134
        %v2146 = vmul.f32 %v2145, %v2134
        %v2147 = vmul.f32 %v2146, %v2145
        %v2148 = vmul.f32 0.5, %v2147
        %v2149 = vsub.f32 1.5, %v2148
        %v2150 = vmul.f32 %v2145, %v2149
        %vm2151 = vweird.f32 %v2134
        %vm2152 = vweird.f32 %v2145
        %vm2153 = vmor %vm2151, %vm2152
        %v2154 = vsel %vm2153, %v2145, %v2150
        %v2155 = vmul.f32 %v2121, %v2144
        %v2156 = vmul.f32 %v2122, %v2154
        %v2158 = vperm.slane %v2111, 0
        %v2160 = vmul.f32 %v2155, %v2158
        %v2161 = vmul.f32 %v2156, %v2158
        %v2163 = vperm.slane %v2112, 0
        %v2165 = vadd.f32 %v2160, %v2163
        %v2166 = vadd.f32 %v2161, %v2163
        %v2167 = vmul.f32 %v2165, %v754
        %v2168 = vmul.f32 %v2166, %v759
        %v2169 = vadd.f32 %v761, %v2167
        %v2170 = vadd.f32 %v762, %v2168
        %2171 = vst.msk [vmem:[%s688] sm:$0xff] %vm707, %v2169
        %2172 = vst.msk [vmem:[%s688 + $0x8] sm:$0xff] %vm707, %v2170
        %s2173 = sand.u32 %s458, 1
        %s2174 = scalar_lea.sflag [#allocation5], %s2173
        %s2175 = sand.u32 %s458, 1
        %s2176 = smul.addr %s2175, 16
        %s2177 = scalar_lea.vmem [#allocation11], %s2176
        // Predicated region
        $region113: #{tpu_custom_call.1} parent=95 // pred_check
          %p2178 = pneg %p468
        $region114: #{tpu_custom_call.1} parent=95 // pred_check_branch
          %2180 = sbr.rel (%p2178) target = $region116
        $region115: #{tpu_custom_call.1} parent=95 // pred_region
          %2182 = vsyncadd %s2174, 0
          %s2183 = smul.addr %s36, 2
          %s2184 = smul.addr %s2183, 8
          %s2185 = scalar_lea.hbm %s19, %s2184
          %s2186 = sshll.u32 %s2177, 4
          %s2187 = int_to_ptr.vmem [resolvable:$true] %s2186
          %s2188 = sshll.u32 %s2185, 4
          %s2189 = int_to_ptr.hbm [resolvable:$true] %s2188
          %2194 = dma.vmem_to_hbm [thread:$0]  %s2187, 256, %s2189, %s2174, 128, 128, 8
        $region116: #{tpu_custom_call.1} parent=95 // pred_fallthru
          _
      $region96: #{tpu_custom_call.1} parent=5 // pred_fallthru
        _
      %p2195 = scmp.le.s32.totalorder 2, %s31
      // Predicated region
      $region117: #{tpu_custom_call.1} parent=5 // pred_check
        %p2196 = pneg %p2195
      $region118: #{tpu_custom_call.1} parent=5 // pred_check_branch
        %2198 = sbr.rel (%p2196) target = $region120
      $region119: #{tpu_custom_call.1} parent=5 // pred_region
        %s2199 = ssub.s32 %s31, 2
        // Predicated region
        $region121: #{tpu_custom_call.1} parent=119 // pred_check
          %p2200 = pneg %p474
        $region122: #{tpu_custom_call.1} parent=119 // pred_check_branch
          %2202 = sbr.rel (%p2200) target = $region124
        $region123: #{tpu_custom_call.1} parent=119 // pred_region
          %s2203 = sand.u32 %s459, 1
          %s2204 = scalar_lea.sflag [#allocation5], %s2203
          %s2205 = sand.u32 %s459, 1
          %s2206 = smul.addr %s2205, 16
          %s2207 = scalar_lea.vmem [#allocation11], %s2206
          %2209 = dma.done %s2204, 256
        $region124: #{tpu_custom_call.1} parent=119 // pred_fallthru
          _
      $region120: #{tpu_custom_call.1} parent=5 // pred_fallthru
        _
    $region6: #{tpu_custom_call.1} parent=1 // loop_footer
      %s35 = sadd.s32 1, %s31
    $region7: #{tpu_custom_call.1} parent=1 // loop_footer_branch
      %30 = sbr.rel target = $region3
    $region8: #{tpu_custom_call.1} parent=1 // loop_exit
      _
    %2210 = vsyncpa [#allocation4], 1
    %s2211 = scalar_lea.sflag [#allocation4], 1
    %2212 = vsyncpa %s2211, 1
    %2213 = vsyncpa [#allocation7], 1
    %2214 = vsyncpa [#allocation10], 1
    %2215 = vsyncpa [#allocation5], 1
    %s2216 = scalar_lea.sflag [#allocation5], 1
    %2217 = vsyncpa %s2216, 1

</llo_original>
